<compile_context>
chip_gen: v6e
topology: v6e:2x2x1
jax: 0.10.0
libtpu: 0.0.40
codegen_flags: <defaults>
</compile_context>

<pallas_src>
import functools

import jax
import jax.numpy as jnp
from jax.experimental import pallas as pl
from jax.experimental.pallas import tpu as pltpu

# ---------------- config (miniature BERT; real model: hidden=768, 12 layers/heads) ----------------
VOCAB = 100
MAX_POS = 32
TYPE_VOCAB = 2
HIDDEN = 32
N_HEADS = 4
HEAD_DIM = HIDDEN // N_HEADS
FFN = 64
N_LAYERS = 2
OUTPUT_DIM = 3
CLS_PAD = 128          # pad classifier output to a lane-dense 128-wide store
SUBLANE = 8            # per-batch output slab padded to a full (8,128) tile
EPS = 1e-12            # BERT LayerNorm eps


def _const_spec(shape):
    nd = len(shape)
    return pl.BlockSpec(shape, lambda b, _nd=nd: (0,) * _nd)


# ---------------- single fused kernel: whole encoder stack + pooler + classifier ----------------
def _bert_stack_kernel(S,
                       x_ref, m_ref,
                       eg_ref, eb_ref,
                       wqkv_ref, bqkv_ref, wo_ref, bo_ref, ln1g_ref, ln1b_ref,
                       wi_ref, bi_ref, wo2_ref, bo2_ref, ln2g_ref, ln2b_ref,
                       pw_ref, pb_ref, cw_ref, cb_ref,
                       o_ref):
    def layer_norm(x, g, b):
        mu = jnp.mean(x, axis=-1, keepdims=True)
        var = jnp.mean((x - mu) ** 2, axis=-1, keepdims=True)
        return (x - mu) * jax.lax.rsqrt(var + EPS) * g + b

    # Embedding LayerNorm (f32).
    x = layer_norm(x_ref[0], eg_ref[...], eb_ref[...])                  # [S, H]
    # Additive mask broadcast hoisted once (JAX does not CSE broadcast_in_dim).
    mask_k = m_ref[...].reshape(1, 1, S)                                # [1, 1, S]

    # Static unroll over the (small) layer stack; all intermediates stay in VMEM/vregs.
    for l in range(N_LAYERS):
        # Fused QKV: one bf16 [H, 3H] matmul, f32 accumulate (1/sqrt(d) pre-folded into Q).
        qkv = jnp.dot(x.astype(jnp.bfloat16), wqkv_ref[l],
                      preferred_element_type=jnp.float32) + bqkv_ref[l]          # [S, 3H]
        q = qkv[:, 0 * HIDDEN:1 * HIDDEN].reshape(S, N_HEADS, HEAD_DIM)
        k = qkv[:, 1 * HIDDEN:2 * HIDDEN].reshape(S, N_HEADS, HEAD_DIM)
        v = qkv[:, 2 * HIDDEN:3 * HIDDEN].reshape(S, N_HEADS, HEAD_DIM)

        # Batched multi-head attention (no per-head slicing / lane concat).
        s = jnp.einsum("qhd,khd->hqk", q.astype(jnp.bfloat16), k.astype(jnp.bfloat16),
                       preferred_element_type=jnp.float32)                       # [nh, S, S]
        s = s + mask_k
        s = s - jnp.max(s, axis=-1, keepdims=True)
        p = jnp.exp(s)
        # softmax denominator on the EUP instead of a VALU divide
        p = p * pl.reciprocal(jnp.sum(p, axis=-1, keepdims=True), approx=True)
        ctx = jnp.einsum("hqk,khd->qhd", p.astype(jnp.bfloat16), v.astype(jnp.bfloat16),
                         preferred_element_type=jnp.float32)                     # [S, nh, d]
        ctx = ctx.reshape(S, HIDDEN)

        attn_out = jnp.dot(ctx.astype(jnp.bfloat16), wo_ref[l],
                           preferred_element_type=jnp.float32) + bo_ref[l]
        x = layer_norm(attn_out + x, ln1g_ref[l], ln1b_ref[l])

        hdn = jnp.dot(x.astype(jnp.bfloat16), wi_ref[l],
                      preferred_element_type=jnp.float32) + bi_ref[l]
        # TODO(synk): HF BERT uses exact erf-GELU; tanh approximation used here.
        hdn = jax.nn.gelu(hdn, approximate=True)
        hdn = jnp.dot(hdn.astype(jnp.bfloat16), wo2_ref[l],
                      preferred_element_type=jnp.float32) + bo2_ref[l]
        x = layer_norm(hdn + x, ln2g_ref[l], ln2b_ref[l])
        # TODO(synk): dropout omitted (inference / eval mode => identity)

    # Pooler on [CLS] token + classifier head, fused into the same kernel.
    cls = x[0:1, :]                                                              # [1, H]
    pooled = jnp.tanh(jnp.dot(cls.astype(jnp.bfloat16), pw_ref[...],
                              preferred_element_type=jnp.float32) + pb_ref[...])
    logits = jnp.dot(pooled.astype(jnp.bfloat16), cw_ref[...],
                     preferred_element_type=jnp.float32) + cb_ref[...]           # [1, 128]
    # Lane-dense, unmasked (8,128)-tile store per batch element.
    o_ref[...] = jnp.broadcast_to(logits, (1, SUBLANE, CLS_PAD)).astype(o_ref.dtype)


# ---------------- deterministic synthetic parameters (no checkpoint load) ----------------
def init_params(key):
    keys = iter(jax.random.split(key, 8 + 8 * N_LAYERS))

    def dense(fan_in, fan_out):
        return jax.random.normal(next(keys), (fan_in, fan_out), jnp.float32) * 0.02

    p = {
        "word_emb": jax.random.normal(next(keys), (VOCAB, HIDDEN), jnp.float32) * 0.02,
        "pos_emb": jax.random.normal(next(keys), (MAX_POS, HIDDEN), jnp.float32) * 0.02,
        "type_emb": jax.random.normal(next(keys), (TYPE_VOCAB, HIDDEN), jnp.float32) * 0.02,
        "emb_ln_g": jnp.ones((HIDDEN,), jnp.float32),
        "emb_ln_b": jnp.zeros((HIDDEN,), jnp.float32),
        "layers": [],
    }
    for _ in range(N_LAYERS):
        p["layers"].append({
            "wq": dense(HIDDEN, HIDDEN), "bq": jnp.zeros((HIDDEN,), jnp.float32),
            "wk": dense(HIDDEN, HIDDEN), "bk": jnp.zeros((HIDDEN,), jnp.float32),
            "wv": dense(HIDDEN, HIDDEN), "bv": jnp.zeros((HIDDEN,), jnp.float32),
            "wo": dense(HIDDEN, HIDDEN), "bo": jnp.zeros((HIDDEN,), jnp.float32),
            "ln1_g": jnp.ones((HIDDEN,), jnp.float32), "ln1_b": jnp.zeros((HIDDEN,), jnp.float32),
            "wi": dense(HIDDEN, FFN), "bi": jnp.zeros((FFN,), jnp.float32),
            "wo2": dense(FFN, HIDDEN), "bo2": jnp.zeros((HIDDEN,), jnp.float32),
            "ln2_g": jnp.ones((HIDDEN,), jnp.float32), "ln2_b": jnp.zeros((HIDDEN,), jnp.float32),
        })
    p["pool_w"] = dense(HIDDEN, HIDDEN)
    p["pool_b"] = jnp.zeros((HIDDEN,), jnp.float32)
    p["cls_w"] = dense(HIDDEN, OUTPUT_DIM)
    p["cls_b"] = jnp.zeros((OUTPUT_DIM,), jnp.float32)
    return p


def pack_params(p):
    """One-time (outside jit) weight packing: stack layers, fuse QKV (with 1/sqrt(d) folded
    into Q), cast matmul weights to bf16, pad classifier head to a lane-dense width."""
    scale = 1.0 / (HEAD_DIM ** 0.5)

    def stk(fn):
        return jnp.stack([fn(l) for l in p["layers"]], axis=0)

    def w16(x):
        return x.astype(jnp.bfloat16)

    return {
        "word_emb": p["word_emb"], "pos_emb": p["pos_emb"], "type_emb": p["type_emb"],
        "emb_ln_g": p["emb_ln_g"].reshape(1, HIDDEN),
        "emb_ln_b": p["emb_ln_b"].reshape(1, HIDDEN),
        "wqkv": w16(stk(lambda l: jnp.concatenate(
            [l["wq"] * scale, l["wk"], l["wv"]], axis=1))),                       # [L,H,3H] bf16
        "bqkv": stk(lambda l: jnp.concatenate(
            [l["bq"] * scale, l["bk"], l["bv"]]).reshape(1, 3 * HIDDEN)),
        "wo": w16(stk(lambda l: l["wo"])),
        "bo": stk(lambda l: l["bo"].reshape(1, HIDDEN)),
        "ln1_g": stk(lambda l: l["ln1_g"].reshape(1, HIDDEN)),
        "ln1_b": stk(lambda l: l["ln1_b"].reshape(1, HIDDEN)),
        "wi": w16(stk(lambda l: l["wi"])),
        "bi": stk(lambda l: l["bi"].reshape(1, FFN)),
        "wo2": w16(stk(lambda l: l["wo2"])),
        "bo2": stk(lambda l: l["bo2"].reshape(1, HIDDEN)),
        "ln2_g": stk(lambda l: l["ln2_g"].reshape(1, HIDDEN)),
        "ln2_b": stk(lambda l: l["ln2_b"].reshape(1, HIDDEN)),
        "pool_w": w16(p["pool_w"]),
        "pool_b": p["pool_b"].reshape(1, HIDDEN),
        "cls_w": w16(jnp.zeros((HIDDEN, CLS_PAD), jnp.float32).at[:, :OUTPUT_DIM].set(p["cls_w"])),
        "cls_b": jnp.zeros((1, CLS_PAD), jnp.float32).at[0, :OUTPUT_DIM].set(p["cls_b"]),
    }


# ---------------- forward pass: BertModel(...) -> res[1] (pooled [CLS]) -> mlp ----------------
def bert_classifier(packed, input_ids, token_type_ids, attention_mask):
    B, S = input_ids.shape

    # Embedding gathers are glue — plain JAX (fused by XLA under jit).
    x = (packed["word_emb"][input_ids]
         + packed["pos_emb"][jnp.arange(S)][None, :, :]
         + packed["type_emb"][token_type_ids])                                   # [B, S, H]
    mask = ((1.0 - attention_mask.astype(jnp.float32)) * -10000.0).reshape(B, 1, S)

    weights = (packed["emb_ln_g"], packed["emb_ln_b"],
               packed["wqkv"], packed["bqkv"], packed["wo"], packed["bo"],
               packed["ln1_g"], packed["ln1_b"],
               packed["wi"], packed["bi"], packed["wo2"], packed["bo2"],
               packed["ln2_g"], packed["ln2_b"],
               packed["pool_w"], packed["pool_b"], packed["cls_w"], packed["cls_b"])

    in_specs = ([pl.BlockSpec((1, S, HIDDEN), lambda b: (b, 0, 0)),   # per-batch activations
                 pl.BlockSpec((1, 1, S), lambda b: (b, 0, 0))]        # per-batch additive mask
                + [_const_spec(w.shape) for w in weights])            # weights resident (const idx)

    # TODO(synk): at real BERT-base sizes, make the layer index a grid axis ("arbitrary") with
    # per-layer weight BlockSpecs so weights stream/double-buffer (bf16 ~14 MB/layer), carry x in
    # a persistent VMEM scratch, and budget VMEM separately: ~44-48 MiB on v7x (64 MiB phys) vs
    # ~96-112 MiB on v5e/v6e (128 MiB phys).
    out = pl.pallas_call(
        functools.partial(_bert_stack_kernel, S),
        out_shape=jax.ShapeDtypeStruct((B, SUBLANE, CLS_PAD), jnp.float32),
        grid=(B,),
        in_specs=in_specs,
        out_specs=pl.BlockSpec((1, SUBLANE, CLS_PAD), lambda b: (b, 0, 0)),
        compiler_params=pltpu.CompilerParams(
            # batch elements are independent -> shard across both TCs on v7x; no-op on v5e/v6e
            dimension_semantics=("parallel",),
            vmem_limit_bytes=32 * 1024 * 1024,
        ),
    )(x, mask, *weights)
    return out[:, 0, :OUTPUT_DIM]


if __name__ == "__main__":
    key = jax.random.PRNGKey(0)
    pkey, ikey = jax.random.split(key)
    params = init_params(pkey)
    packed = pack_params(params)   # one-time weight packing, hoisted out of the jitted forward

    B, S = 2, 8
    input_ids = jax.random.randint(ikey, (B, S), 0, VOCAB, dtype=jnp.int32)
    token_type_ids = jnp.zeros((B, S), jnp.int32)
    attention_mask = jnp.ones((B, S), jnp.int32).at[1, 6:].set(0)  # pad tail of 2nd seq

    fwd = jax.jit(bert_classifier)
    logits = fwd(packed, input_ids, token_type_ids, attention_mask)
    jax.block_until_ready(logits)
    assert logits.shape == (B, OUTPUT_DIM)
    print("KERNEL_OK")
</pallas_src>

<mosaic_0001>
module attributes {stable_mosaic.version = 11 : i64} {
  func.func @_bert_stack_kernel(%arg0: i32, %arg1: memref<1x8x32xf32, #tpu.memory_space<vmem>>, %arg2: memref<1x1x8xf32, #tpu.memory_space<vmem>>, %arg3: memref<1x32xf32, #tpu.memory_space<vmem>>, %arg4: memref<1x32xf32, #tpu.memory_space<vmem>>, %arg5: memref<2x32x96xbf16, #tpu.memory_space<vmem>>, %arg6: memref<2x1x96xf32, #tpu.memory_space<vmem>>, %arg7: memref<2x32x32xbf16, #tpu.memory_space<vmem>>, %arg8: memref<2x1x32xf32, #tpu.memory_space<vmem>>, %arg9: memref<2x1x32xf32, #tpu.memory_space<vmem>>, %arg10: memref<2x1x32xf32, #tpu.memory_space<vmem>>, %arg11: memref<2x32x64xbf16, #tpu.memory_space<vmem>>, %arg12: memref<2x1x64xf32, #tpu.memory_space<vmem>>, %arg13: memref<2x64x32xbf16, #tpu.memory_space<vmem>>, %arg14: memref<2x1x32xf32, #tpu.memory_space<vmem>>, %arg15: memref<2x1x32xf32, #tpu.memory_space<vmem>>, %arg16: memref<2x1x32xf32, #tpu.memory_space<vmem>>, %arg17: memref<32x32xbf16, #tpu.memory_space<vmem>>, %arg18: memref<1x32xf32, #tpu.memory_space<vmem>>, %arg19: memref<32x128xbf16, #tpu.memory_space<vmem>>, %arg20: memref<1x128xf32, #tpu.memory_space<vmem>>, %arg21: memref<1x8x128xf32, #tpu.memory_space<vmem>>) attributes {dimension_semantics = [#tpu.dimension_semantics<parallel>], iteration_bounds = array<i64: 2>, scalar_prefetch = 0 : i64, scratch_operands = 0 : i64, tpu.core_type = #tpu.core_type<tc>, window_params = [{transform_indices = @transform_0, window_bounds = array<i64: 1, 8, 32>}, {transform_indices = @transform_1, window_bounds = array<i64: 1, 1, 8>}, {pipeline_mode = #tpu.pipeline_mode<synchronous>, transform_indices = @transform_2, window_bounds = array<i64: 1, 32>}, {pipeline_mode = #tpu.pipeline_mode<synchronous>, transform_indices = @transform_3, window_bounds = array<i64: 1, 32>}, {pipeline_mode = #tpu.pipeline_mode<synchronous>, transform_indices = @transform_4, window_bounds = array<i64: 2, 32, 96>}, {pipeline_mode = #tpu.pipeline_mode<synchronous>, transform_indices = @transform_5, window_bounds = array<i64: 2, 1, 96>}, {pipeline_mode = #tpu.pipeline_mode<synchronous>, transform_indices = @transform_6, window_bounds = array<i64: 2, 32, 32>}, {pipeline_mode = #tpu.pipeline_mode<synchronous>, transform_indices = @transform_7, window_bounds = array<i64: 2, 1, 32>}, {pipeline_mode = #tpu.pipeline_mode<synchronous>, transform_indices = @transform_8, window_bounds = array<i64: 2, 1, 32>}, {pipeline_mode = #tpu.pipeline_mode<synchronous>, transform_indices = @transform_9, window_bounds = array<i64: 2, 1, 32>}, {pipeline_mode = #tpu.pipeline_mode<synchronous>, transform_indices = @transform_10, window_bounds = array<i64: 2, 32, 64>}, {pipeline_mode = #tpu.pipeline_mode<synchronous>, transform_indices = @transform_11, window_bounds = array<i64: 2, 1, 64>}, {pipeline_mode = #tpu.pipeline_mode<synchronous>, transform_indices = @transform_12, window_bounds = array<i64: 2, 64, 32>}, {pipeline_mode = #tpu.pipeline_mode<synchronous>, transform_indices = @transform_13, window_bounds = array<i64: 2, 1, 32>}, {pipeline_mode = #tpu.pipeline_mode<synchronous>, transform_indices = @transform_14, window_bounds = array<i64: 2, 1, 32>}, {pipeline_mode = #tpu.pipeline_mode<synchronous>, transform_indices = @transform_15, window_bounds = array<i64: 2, 1, 32>}, {pipeline_mode = #tpu.pipeline_mode<synchronous>, transform_indices = @transform_16, window_bounds = array<i64: 32, 32>}, {pipeline_mode = #tpu.pipeline_mode<synchronous>, transform_indices = @transform_17, window_bounds = array<i64: 1, 32>}, {pipeline_mode = #tpu.pipeline_mode<synchronous>, transform_indices = @transform_18, window_bounds = array<i64: 32, 128>}, {pipeline_mode = #tpu.pipeline_mode<synchronous>, transform_indices = @transform_19, window_bounds = array<i64: 1, 128>}, {transform_indices = @transform_20, window_bounds = array<i64: 1, 8, 128>}]} {
    %c0 = arith.constant 0 : index
    %c0_0 = arith.constant 0 : index
    %c0_1 = arith.constant 0 : index
    %0 = vector.load %arg1[%c0, %c0_0, %c0_1] : memref<1x8x32xf32, #tpu.memory_space<vmem>>, vector<1x8x32xf32>
    %1 = vector.shape_cast %0 : vector<1x8x32xf32> to vector<8x32xf32>
    %c0_2 = arith.constant 0 : index
    %c0_3 = arith.constant 0 : index
    %2 = vector.load %arg3[%c0_2, %c0_3] : memref<1x32xf32, #tpu.memory_space<vmem>>, vector<1x32xf32>
    %c0_4 = arith.constant 0 : index
    %c0_5 = arith.constant 0 : index
    %3 = vector.load %arg4[%c0_4, %c0_5] : memref<1x32xf32, #tpu.memory_space<vmem>>, vector<1x32xf32>
    %cst = arith.constant dense<0.000000e+00> : vector<8xf32>
    %4 = vector.multi_reduction <add>, %1, %cst [1] : vector<8x32xf32> to vector<8xf32>
    %5 = vector.shape_cast %4 : vector<8xf32> to vector<8x1xf32>
    %cst_6 = arith.constant 3.200000e+01 : f32
    %6 = vector.broadcast %cst_6 : f32 to vector<8x1xf32>
    %7 = arith.divf %5, %6 : vector<8x1xf32>
    %8 = vector.broadcast %7 : vector<8x1xf32> to vector<8x32xf32>
    %9 = arith.subf %1, %8 : vector<8x32xf32>
    %10 = arith.mulf %9, %9 : vector<8x32xf32>
    %cst_7 = arith.constant dense<0.000000e+00> : vector<8xf32>
    %11 = vector.multi_reduction <add>, %10, %cst_7 [1] : vector<8x32xf32> to vector<8xf32>
    %12 = vector.shape_cast %11 : vector<8xf32> to vector<8x1xf32>
    %cst_8 = arith.constant 3.200000e+01 : f32
    %13 = vector.broadcast %cst_8 : f32 to vector<8x1xf32>
    %14 = arith.divf %12, %13 : vector<8x1xf32>
    %15 = vector.broadcast %7 : vector<8x1xf32> to vector<8x32xf32>
    %16 = arith.subf %1, %15 : vector<8x32xf32>
    %cst_9 = arith.constant 9.99999996E-13 : f32
    %17 = vector.broadcast %cst_9 : f32 to vector<8x1xf32>
    %18 = arith.addf %14, %17 : vector<8x1xf32>
    %19 = math.rsqrt %18 : vector<8x1xf32>
    %20 = vector.broadcast %19 : vector<8x1xf32> to vector<8x32xf32>
    %21 = arith.mulf %16, %20 : vector<8x32xf32>
    %22 = vector.broadcast %2 : vector<1x32xf32> to vector<8x32xf32>
    %23 = arith.mulf %21, %22 : vector<8x32xf32>
    %24 = vector.broadcast %3 : vector<1x32xf32> to vector<8x32xf32>
    %25 = arith.addf %23, %24 : vector<8x32xf32>
    %c0_10 = arith.constant 0 : index
    %c0_11 = arith.constant 0 : index
    %c0_12 = arith.constant 0 : index
    %26 = vector.load %arg2[%c0_10, %c0_11, %c0_12] : memref<1x1x8xf32, #tpu.memory_space<vmem>>, vector<1x1x8xf32>
    %27 = arith.truncf %25 : vector<8x32xf32> to vector<8x32xbf16>
    %c0_13 = arith.constant 0 : index
    %c0_14 = arith.constant 0 : index
    %c0_15 = arith.constant 0 : index
    %28 = vector.load %arg5[%c0_13, %c0_14, %c0_15] : memref<2x32x96xbf16, #tpu.memory_space<vmem>>, vector<1x32x96xbf16>
    %29 = vector.shape_cast %28 : vector<1x32x96xbf16> to vector<32x96xbf16>
    %cst_16 = arith.constant dense<0.000000e+00> : vector<8x96xf32>
    %30 = tpu.matmul %27, %29, %cst_16 {dimension_numbers = #tpu.dot_dimension_numbers<[1], [0], [0], [1], [0, 0, 1, 1], [], []>} : vector<8x32xbf16>, vector<32x96xbf16>, vector<8x96xf32> -> vector<8x96xf32>
    %c0_17 = arith.constant 0 : index
    %c0_18 = arith.constant 0 : index
    %c0_19 = arith.constant 0 : index
    %31 = vector.load %arg6[%c0_17, %c0_18, %c0_19] : memref<2x1x96xf32, #tpu.memory_space<vmem>>, vector<1x1x96xf32>
    %32 = vector.shape_cast %31 : vector<1x1x96xf32> to vector<1x96xf32>
    %33 = vector.broadcast %32 : vector<1x96xf32> to vector<8x96xf32>
    %34 = arith.addf %30, %33 : vector<8x96xf32>
    %35 = vector.extract_strided_slice %34 {offsets = [0, 0], sizes = [8, 32], strides = [1, 1]} : vector<8x96xf32> to vector<8x32xf32>
    %36 = vector.shape_cast %35 : vector<8x32xf32> to vector<8x4x8xf32>
    %37 = vector.extract_strided_slice %34 {offsets = [0, 32], sizes = [8, 32], strides = [1, 1]} : vector<8x96xf32> to vector<8x32xf32>
    %38 = vector.shape_cast %37 : vector<8x32xf32> to vector<8x4x8xf32>
    %39 = vector.extract_strided_slice %34 {offsets = [0, 64], sizes = [8, 32], strides = [1, 1]} : vector<8x96xf32> to vector<8x32xf32>
    %40 = vector.shape_cast %39 : vector<8x32xf32> to vector<8x4x8xf32>
    %41 = arith.truncf %36 : vector<8x4x8xf32> to vector<8x4x8xbf16>
    %42 = arith.truncf %38 : vector<8x4x8xf32> to vector<8x4x8xbf16>
    "tpu.trace_start"() <{level = 10 : i32, message = "qhd,khd->hqk"}> : () -> ()
    %cst_20 = arith.constant dense<0.000000e+00> : vector<4x8x8xf32>
    %43 = tpu.matmul %41, %42, %cst_20 {dimension_numbers = #tpu.dot_dimension_numbers<[2], [2], [0], [0], [0, 1, 0, 0, 1, 0], [1], [1]>} : vector<8x4x8xbf16>, vector<8x4x8xbf16>, vector<4x8x8xf32> -> vector<4x8x8xf32>
    "tpu.trace_stop"() : () -> ()
    %44 = vector.broadcast %26 : vector<1x1x8xf32> to vector<4x8x8xf32>
    %45 = arith.addf %43, %44 : vector<4x8x8xf32>
    %cst_21 = arith.constant dense<0xFF800000> : vector<4x8xf32>
    %46 = vector.multi_reduction <maximumf>, %45, %cst_21 [2] : vector<4x8x8xf32> to vector<4x8xf32>
    %47 = vector.shape_cast %46 : vector<4x8xf32> to vector<4x8x1xf32>
    %48 = vector.broadcast %47 : vector<4x8x1xf32> to vector<4x8x8xf32>
    %49 = arith.subf %45, %48 : vector<4x8x8xf32>
    %50 = math.exp %49 : vector<4x8x8xf32>
    %cst_22 = arith.constant dense<0.000000e+00> : vector<4x8xf32>
    %51 = vector.multi_reduction <add>, %50, %cst_22 [2] : vector<4x8x8xf32> to vector<4x8xf32>
    %52 = vector.shape_cast %51 : vector<4x8xf32> to vector<4x8x1xf32>
    %53 = tpu.reciprocal %52 {approx = true} : vector<4x8x1xf32> -> vector<4x8x1xf32>
    %54 = vector.broadcast %53 : vector<4x8x1xf32> to vector<4x8x8xf32>
    %55 = arith.mulf %50, %54 : vector<4x8x8xf32>
    %56 = arith.truncf %55 : vector<4x8x8xf32> to vector<4x8x8xbf16>
    %57 = arith.truncf %40 : vector<8x4x8xf32> to vector<8x4x8xbf16>
    "tpu.trace_start"() <{level = 10 : i32, message = "hqk,khd->qhd"}> : () -> ()
    %cst_23 = arith.constant dense<0.000000e+00> : vector<4x8x8xf32>
    %58 = tpu.matmul %57, %56, %cst_23 {dimension_numbers = #tpu.dot_dimension_numbers<[0], [2], [2], [1], [0, 1, 0, 2, 1, 1], [1], [0]>} : vector<8x4x8xbf16>, vector<4x8x8xbf16>, vector<4x8x8xf32> -> vector<4x8x8xf32>
    %59 = tpu.transpose %58, [2, 0, 1] : vector<4x8x8xf32> -> vector<8x4x8xf32>
    "tpu.trace_stop"() : () -> ()
    %60 = vector.shape_cast %59 : vector<8x4x8xf32> to vector<8x32xf32>
    %61 = arith.truncf %60 : vector<8x32xf32> to vector<8x32xbf16>
    %c0_24 = arith.constant 0 : index
    %c0_25 = arith.constant 0 : index
    %c0_26 = arith.constant 0 : index
    %62 = vector.load %arg7[%c0_24, %c0_25, %c0_26] : memref<2x32x32xbf16, #tpu.memory_space<vmem>>, vector<1x32x32xbf16>
    %63 = vector.shape_cast %62 : vector<1x32x32xbf16> to vector<32x32xbf16>
    %cst_27 = arith.constant dense<0.000000e+00> : vector<8x32xf32>
    %64 = tpu.matmul %61, %63, %cst_27 {dimension_numbers = #tpu.dot_dimension_numbers<[1], [0], [0], [1], [0, 0, 1, 1], [], []>} : vector<8x32xbf16>, vector<32x32xbf16>, vector<8x32xf32> -> vector<8x32xf32>
    %c0_28 = arith.constant 0 : index
    %c0_29 = arith.constant 0 : index
    %c0_30 = arith.constant 0 : index
    %65 = vector.load %arg8[%c0_28, %c0_29, %c0_30] : memref<2x1x32xf32, #tpu.memory_space<vmem>>, vector<1x1x32xf32>
    %66 = vector.shape_cast %65 : vector<1x1x32xf32> to vector<1x32xf32>
    %67 = vector.broadcast %66 : vector<1x32xf32> to vector<8x32xf32>
    %68 = arith.addf %64, %67 : vector<8x32xf32>
    %69 = arith.addf %68, %25 : vector<8x32xf32>
    %c0_31 = arith.constant 0 : index
    %c0_32 = arith.constant 0 : index
    %c0_33 = arith.constant 0 : index
    %70 = vector.load %arg9[%c0_31, %c0_32, %c0_33] : memref<2x1x32xf32, #tpu.memory_space<vmem>>, vector<1x1x32xf32>
    %71 = vector.shape_cast %70 : vector<1x1x32xf32> to vector<1x32xf32>
    %c0_34 = arith.constant 0 : index
    %c0_35 = arith.constant 0 : index
    %c0_36 = arith.constant 0 : index
    %72 = vector.load %arg10[%c0_34, %c0_35, %c0_36] : memref<2x1x32xf32, #tpu.memory_space<vmem>>, vector<1x1x32xf32>
    %73 = vector.shape_cast %72 : vector<1x1x32xf32> to vector<1x32xf32>
    %cst_37 = arith.constant dense<0.000000e+00> : vector<8xf32>
    %74 = vector.multi_reduction <add>, %69, %cst_37 [1] : vector<8x32xf32> to vector<8xf32>
    %75 = vector.shape_cast %74 : vector<8xf32> to vector<8x1xf32>
    %cst_38 = arith.constant 3.200000e+01 : f32
    %76 = vector.broadcast %cst_38 : f32 to vector<8x1xf32>
    %77 = arith.divf %75, %76 : vector<8x1xf32>
    %78 = vector.broadcast %77 : vector<8x1xf32> to vector<8x32xf32>
    %79 = arith.subf %69, %78 : vector<8x32xf32>
    %80 = arith.mulf %79, %79 : vector<8x32xf32>
    %cst_39 = arith.constant dense<0.000000e+00> : vector<8xf32>
    %81 = vector.multi_reduction <add>, %80, %cst_39 [1] : vector<8x32xf32> to vector<8xf32>
    %82 = vector.shape_cast %81 : vector<8xf32> to vector<8x1xf32>
    %cst_40 = arith.constant 3.200000e+01 : f32
    %83 = vector.broadcast %cst_40 : f32 to vector<8x1xf32>
    %84 = arith.divf %82, %83 : vector<8x1xf32>
    %85 = vector.broadcast %77 : vector<8x1xf32> to vector<8x32xf32>
    %86 = arith.subf %69, %85 : vector<8x32xf32>
    %cst_41 = arith.constant 9.99999996E-13 : f32
    %87 = vector.broadcast %cst_41 : f32 to vector<8x1xf32>
    %88 = arith.addf %84, %87 : vector<8x1xf32>
    %89 = math.rsqrt %88 : vector<8x1xf32>
    %90 = vector.broadcast %89 : vector<8x1xf32> to vector<8x32xf32>
    %91 = arith.mulf %86, %90 : vector<8x32xf32>
    %92 = vector.broadcast %71 : vector<1x32xf32> to vector<8x32xf32>
    %93 = arith.mulf %91, %92 : vector<8x32xf32>
    %94 = vector.broadcast %73 : vector<1x32xf32> to vector<8x32xf32>
    %95 = arith.addf %93, %94 : vector<8x32xf32>
    %96 = arith.truncf %95 : vector<8x32xf32> to vector<8x32xbf16>
    %c0_42 = arith.constant 0 : index
    %c0_43 = arith.constant 0 : index
    %c0_44 = arith.constant 0 : index
    %97 = vector.load %arg11[%c0_42, %c0_43, %c0_44] : memref<2x32x64xbf16, #tpu.memory_space<vmem>>, vector<1x32x64xbf16>
    %98 = vector.shape_cast %97 : vector<1x32x64xbf16> to vector<32x64xbf16>
    %cst_45 = arith.constant dense<0.000000e+00> : vector<8x64xf32>
    %99 = tpu.matmul %96, %98, %cst_45 {dimension_numbers = #tpu.dot_dimension_numbers<[1], [0], [0], [1], [0, 0, 1, 1], [], []>} : vector<8x32xbf16>, vector<32x64xbf16>, vector<8x64xf32> -> vector<8x64xf32>
    %c0_46 = arith.constant 0 : index
    %c0_47 = arith.constant 0 : index
    %c0_48 = arith.constant 0 : index
    %100 = vector.load %arg12[%c0_46, %c0_47, %c0_48] : memref<2x1x64xf32, #tpu.memory_space<vmem>>, vector<1x1x64xf32>
    %101 = vector.shape_cast %100 : vector<1x1x64xf32> to vector<1x64xf32>
    %102 = vector.broadcast %101 : vector<1x64xf32> to vector<8x64xf32>
    %103 = arith.addf %99, %102 : vector<8x64xf32>
    %104 = arith.mulf %103, %103 : vector<8x64xf32>
    %105 = arith.mulf %103, %104 : vector<8x64xf32>
    %cst_49 = arith.constant 4.471500e-02 : f32
    %106 = vector.broadcast %cst_49 : f32 to vector<8x64xf32>
    %107 = arith.mulf %106, %105 : vector<8x64xf32>
    %108 = arith.addf %103, %107 : vector<8x64xf32>
    %cst_50 = arith.constant 0.797884583 : f32
    %109 = vector.broadcast %cst_50 : f32 to vector<8x64xf32>
    %110 = arith.mulf %109, %108 : vector<8x64xf32>
    %111 = math.tanh %110 : vector<8x64xf32>
    %cst_51 = arith.constant 1.000000e+00 : f32
    %112 = vector.broadcast %cst_51 : f32 to vector<8x64xf32>
    %113 = arith.addf %112, %111 : vector<8x64xf32>
    %cst_52 = arith.constant 5.000000e-01 : f32
    %114 = vector.broadcast %cst_52 : f32 to vector<8x64xf32>
    %115 = arith.mulf %114, %113 : vector<8x64xf32>
    %116 = arith.mulf %103, %115 : vector<8x64xf32>
    %117 = arith.truncf %116 : vector<8x64xf32> to vector<8x64xbf16>
    %c0_53 = arith.constant 0 : index
    %c0_54 = arith.constant 0 : index
    %c0_55 = arith.constant 0 : index
    %118 = vector.load %arg13[%c0_53, %c0_54, %c0_55] : memref<2x64x32xbf16, #tpu.memory_space<vmem>>, vector<1x64x32xbf16>
    %119 = vector.shape_cast %118 : vector<1x64x32xbf16> to vector<64x32xbf16>
    %cst_56 = arith.constant dense<0.000000e+00> : vector<8x32xf32>
    %120 = tpu.matmul %117, %119, %cst_56 {dimension_numbers = #tpu.dot_dimension_numbers<[1], [0], [0], [1], [0, 0, 1, 1], [], []>} : vector<8x64xbf16>, vector<64x32xbf16>, vector<8x32xf32> -> vector<8x32xf32>
    %c0_57 = arith.constant 0 : index
    %c0_58 = arith.constant 0 : index
    %c0_59 = arith.constant 0 : index
    %121 = vector.load %arg14[%c0_57, %c0_58, %c0_59] : memref<2x1x32xf32, #tpu.memory_space<vmem>>, vector<1x1x32xf32>
    %122 = vector.shape_cast %121 : vector<1x1x32xf32> to vector<1x32xf32>
    %123 = vector.broadcast %122 : vector<1x32xf32> to vector<8x32xf32>
    %124 = arith.addf %120, %123 : vector<8x32xf32>
    %125 = arith.addf %124, %95 : vector<8x32xf32>
    %c0_60 = arith.constant 0 : index
    %c0_61 = arith.constant 0 : index
    %c0_62 = arith.constant 0 : index
    %126 = vector.load %arg15[%c0_60, %c0_61, %c0_62] : memref<2x1x32xf32, #tpu.memory_space<vmem>>, vector<1x1x32xf32>
    %127 = vector.shape_cast %126 : vector<1x1x32xf32> to vector<1x32xf32>
    %c0_63 = arith.constant 0 : index
    %c0_64 = arith.constant 0 : index
    %c0_65 = arith.constant 0 : index
    %128 = vector.load %arg16[%c0_63, %c0_64, %c0_65] : memref<2x1x32xf32, #tpu.memory_space<vmem>>, vector<1x1x32xf32>
    %129 = vector.shape_cast %128 : vector<1x1x32xf32> to vector<1x32xf32>
    %cst_66 = arith.constant dense<0.000000e+00> : vector<8xf32>
    %130 = vector.multi_reduction <add>, %125, %cst_66 [1] : vector<8x32xf32> to vector<8xf32>
    %131 = vector.shape_cast %130 : vector<8xf32> to vector<8x1xf32>
    %cst_67 = arith.constant 3.200000e+01 : f32
    %132 = vector.broadcast %cst_67 : f32 to vector<8x1xf32>
    %133 = arith.divf %131, %132 : vector<8x1xf32>
    %134 = vector.broadcast %133 : vector<8x1xf32> to vector<8x32xf32>
    %135 = arith.subf %125, %134 : vector<8x32xf32>
    %136 = arith.mulf %135, %135 : vector<8x32xf32>
    %cst_68 = arith.constant dense<0.000000e+00> : vector<8xf32>
    %137 = vector.multi_reduction <add>, %136, %cst_68 [1] : vector<8x32xf32> to vector<8xf32>
    %138 = vector.shape_cast %137 : vector<8xf32> to vector<8x1xf32>
    %cst_69 = arith.constant 3.200000e+01 : f32
    %139 = vector.broadcast %cst_69 : f32 to vector<8x1xf32>
    %140 = arith.divf %138, %139 : vector<8x1xf32>
    %141 = vector.broadcast %133 : vector<8x1xf32> to vector<8x32xf32>
    %142 = arith.subf %125, %141 : vector<8x32xf32>
    %cst_70 = arith.constant 9.99999996E-13 : f32
    %143 = vector.broadcast %cst_70 : f32 to vector<8x1xf32>
    %144 = arith.addf %140, %143 : vector<8x1xf32>
    %145 = math.rsqrt %144 : vector<8x1xf32>
    %146 = vector.broadcast %145 : vector<8x1xf32> to vector<8x32xf32>
    %147 = arith.mulf %142, %146 : vector<8x32xf32>
    %148 = vector.broadcast %127 : vector<1x32xf32> to vector<8x32xf32>
    %149 = arith.mulf %147, %148 : vector<8x32xf32>
    %150 = vector.broadcast %129 : vector<1x32xf32> to vector<8x32xf32>
    %151 = arith.addf %149, %150 : vector<8x32xf32>
    %152 = arith.truncf %151 : vector<8x32xf32> to vector<8x32xbf16>
    %c1 = arith.constant 1 : index
    %c0_71 = arith.constant 0 : index
    %c0_72 = arith.constant 0 : index
    %153 = vector.load %arg5[%c1, %c0_71, %c0_72] : memref<2x32x96xbf16, #tpu.memory_space<vmem>>, vector<1x32x96xbf16>
    %154 = vector.shape_cast %153 : vector<1x32x96xbf16> to vector<32x96xbf16>
    %cst_73 = arith.constant dense<0.000000e+00> : vector<8x96xf32>
    %155 = tpu.matmul %152, %154, %cst_73 {dimension_numbers = #tpu.dot_dimension_numbers<[1], [0], [0], [1], [0, 0, 1, 1], [], []>} : vector<8x32xbf16>, vector<32x96xbf16>, vector<8x96xf32> -> vector<8x96xf32>
    %c1_74 = arith.constant 1 : index
    %c0_75 = arith.constant 0 : index
    %c0_76 = arith.constant 0 : index
    %156 = vector.load %arg6[%c1_74, %c0_75, %c0_76] : memref<2x1x96xf32, #tpu.memory_space<vmem>>, vector<1x1x96xf32>
    %157 = vector.shape_cast %156 : vector<1x1x96xf32> to vector<1x96xf32>
    %158 = vector.broadcast %157 : vector<1x96xf32> to vector<8x96xf32>
    %159 = arith.addf %155, %158 : vector<8x96xf32>
    %160 = vector.extract_strided_slice %159 {offsets = [0, 0], sizes = [8, 32], strides = [1, 1]} : vector<8x96xf32> to vector<8x32xf32>
    %161 = vector.shape_cast %160 : vector<8x32xf32> to vector<8x4x8xf32>
    %162 = vector.extract_strided_slice %159 {offsets = [0, 32], sizes = [8, 32], strides = [1, 1]} : vector<8x96xf32> to vector<8x32xf32>
    %163 = vector.shape_cast %162 : vector<8x32xf32> to vector<8x4x8xf32>
    %164 = vector.extract_strided_slice %159 {offsets = [0, 64], sizes = [8, 32], strides = [1, 1]} : vector<8x96xf32> to vector<8x32xf32>
    %165 = vector.shape_cast %164 : vector<8x32xf32> to vector<8x4x8xf32>
    %166 = arith.truncf %161 : vector<8x4x8xf32> to vector<8x4x8xbf16>
    %167 = arith.truncf %163 : vector<8x4x8xf32> to vector<8x4x8xbf16>
    "tpu.trace_start"() <{level = 10 : i32, message = "qhd,khd->hqk"}> : () -> ()
    %cst_77 = arith.constant dense<0.000000e+00> : vector<4x8x8xf32>
    %168 = tpu.matmul %166, %167, %cst_77 {dimension_numbers = #tpu.dot_dimension_numbers<[2], [2], [0], [0], [0, 1, 0, 0, 1, 0], [1], [1]>} : vector<8x4x8xbf16>, vector<8x4x8xbf16>, vector<4x8x8xf32> -> vector<4x8x8xf32>
    "tpu.trace_stop"() : () -> ()
    %169 = vector.broadcast %26 : vector<1x1x8xf32> to vector<4x8x8xf32>
    %170 = arith.addf %168, %169 : vector<4x8x8xf32>
    %cst_78 = arith.constant dense<0xFF800000> : vector<4x8xf32>
    %171 = vector.multi_reduction <maximumf>, %170, %cst_78 [2] : vector<4x8x8xf32> to vector<4x8xf32>
    %172 = vector.shape_cast %171 : vector<4x8xf32> to vector<4x8x1xf32>
    %173 = vector.broadcast %172 : vector<4x8x1xf32> to vector<4x8x8xf32>
    %174 = arith.subf %170, %173 : vector<4x8x8xf32>
    %175 = math.exp %174 : vector<4x8x8xf32>
    %cst_79 = arith.constant dense<0.000000e+00> : vector<4x8xf32>
    %176 = vector.multi_reduction <add>, %175, %cst_79 [2] : vector<4x8x8xf32> to vector<4x8xf32>
    %177 = vector.shape_cast %176 : vector<4x8xf32> to vector<4x8x1xf32>
    %178 = tpu.reciprocal %177 {approx = true} : vector<4x8x1xf32> -> vector<4x8x1xf32>
    %179 = vector.broadcast %178 : vector<4x8x1xf32> to vector<4x8x8xf32>
    %180 = arith.mulf %175, %179 : vector<4x8x8xf32>
    %181 = arith.truncf %180 : vector<4x8x8xf32> to vector<4x8x8xbf16>
    %182 = arith.truncf %165 : vector<8x4x8xf32> to vector<8x4x8xbf16>
    "tpu.trace_start"() <{level = 10 : i32, message = "hqk,khd->qhd"}> : () -> ()
    %cst_80 = arith.constant dense<0.000000e+00> : vector<4x8x8xf32>
    %183 = tpu.matmul %182, %181, %cst_80 {dimension_numbers = #tpu.dot_dimension_numbers<[0], [2], [2], [1], [0, 1, 0, 2, 1, 1], [1], [0]>} : vector<8x4x8xbf16>, vector<4x8x8xbf16>, vector<4x8x8xf32> -> vector<4x8x8xf32>
    %184 = tpu.transpose %183, [2, 0, 1] : vector<4x8x8xf32> -> vector<8x4x8xf32>
    "tpu.trace_stop"() : () -> ()
    %185 = vector.shape_cast %184 : vector<8x4x8xf32> to vector<8x32xf32>
    %186 = arith.truncf %185 : vector<8x32xf32> to vector<8x32xbf16>
    %c1_81 = arith.constant 1 : index
    %c0_82 = arith.constant 0 : index
    %c0_83 = arith.constant 0 : index
    %187 = vector.load %arg7[%c1_81, %c0_82, %c0_83] : memref<2x32x32xbf16, #tpu.memory_space<vmem>>, vector<1x32x32xbf16>
    %188 = vector.shape_cast %187 : vector<1x32x32xbf16> to vector<32x32xbf16>
    %cst_84 = arith.constant dense<0.000000e+00> : vector<8x32xf32>
    %189 = tpu.matmul %186, %188, %cst_84 {dimension_numbers = #tpu.dot_dimension_numbers<[1], [0], [0], [1], [0, 0, 1, 1], [], []>} : vector<8x32xbf16>, vector<32x32xbf16>, vector<8x32xf32> -> vector<8x32xf32>
    %c1_85 = arith.constant 1 : index
    %c0_86 = arith.constant 0 : index
    %c0_87 = arith.constant 0 : index
    %190 = vector.load %arg8[%c1_85, %c0_86, %c0_87] : memref<2x1x32xf32, #tpu.memory_space<vmem>>, vector<1x1x32xf32>
    %191 = vector.shape_cast %190 : vector<1x1x32xf32> to vector<1x32xf32>
    %192 = vector.broadcast %191 : vector<1x32xf32> to vector<8x32xf32>
    %193 = arith.addf %189, %192 : vector<8x32xf32>
    %194 = arith.addf %193, %151 : vector<8x32xf32>
    %c1_88 = arith.constant 1 : index
    %c0_89 = arith.constant 0 : index
    %c0_90 = arith.constant 0 : index
    %195 = vector.load %arg9[%c1_88, %c0_89, %c0_90] : memref<2x1x32xf32, #tpu.memory_space<vmem>>, vector<1x1x32xf32>
    %196 = vector.shape_cast %195 : vector<1x1x32xf32> to vector<1x32xf32>
    %c1_91 = arith.constant 1 : index
    %c0_92 = arith.constant 0 : index
    %c0_93 = arith.constant 0 : index
    %197 = vector.load %arg10[%c1_91, %c0_92, %c0_93] : memref<2x1x32xf32, #tpu.memory_space<vmem>>, vector<1x1x32xf32>
    %198 = vector.shape_cast %197 : vector<1x1x32xf32> to vector<1x32xf32>
    %cst_94 = arith.constant dense<0.000000e+00> : vector<8xf32>
    %199 = vector.multi_reduction <add>, %194, %cst_94 [1] : vector<8x32xf32> to vector<8xf32>
    %200 = vector.shape_cast %199 : vector<8xf32> to vector<8x1xf32>
    %cst_95 = arith.constant 3.200000e+01 : f32
    %201 = vector.broadcast %cst_95 : f32 to vector<8x1xf32>
    %202 = arith.divf %200, %201 : vector<8x1xf32>
    %203 = vector.broadcast %202 : vector<8x1xf32> to vector<8x32xf32>
    %204 = arith.subf %194, %203 : vector<8x32xf32>
    %205 = arith.mulf %204, %204 : vector<8x32xf32>
    %cst_96 = arith.constant dense<0.000000e+00> : vector<8xf32>
    %206 = vector.multi_reduction <add>, %205, %cst_96 [1] : vector<8x32xf32> to vector<8xf32>
    %207 = vector.shape_cast %206 : vector<8xf32> to vector<8x1xf32>
    %cst_97 = arith.constant 3.200000e+01 : f32
    %208 = vector.broadcast %cst_97 : f32 to vector<8x1xf32>
    %209 = arith.divf %207, %208 : vector<8x1xf32>
    %210 = vector.broadcast %202 : vector<8x1xf32> to vector<8x32xf32>
    %211 = arith.subf %194, %210 : vector<8x32xf32>
    %cst_98 = arith.constant 9.99999996E-13 : f32
    %212 = vector.broadcast %cst_98 : f32 to vector<8x1xf32>
    %213 = arith.addf %209, %212 : vector<8x1xf32>
    %214 = math.rsqrt %213 : vector<8x1xf32>
    %215 = vector.broadcast %214 : vector<8x1xf32> to vector<8x32xf32>
    %216 = arith.mulf %211, %215 : vector<8x32xf32>
    %217 = vector.broadcast %196 : vector<1x32xf32> to vector<8x32xf32>
    %218 = arith.mulf %216, %217 : vector<8x32xf32>
    %219 = vector.broadcast %198 : vector<1x32xf32> to vector<8x32xf32>
    %220 = arith.addf %218, %219 : vector<8x32xf32>
    %221 = arith.truncf %220 : vector<8x32xf32> to vector<8x32xbf16>
    %c1_99 = arith.constant 1 : index
    %c0_100 = arith.constant 0 : index
    %c0_101 = arith.constant 0 : index
    %222 = vector.load %arg11[%c1_99, %c0_100, %c0_101] : memref<2x32x64xbf16, #tpu.memory_space<vmem>>, vector<1x32x64xbf16>
    %223 = vector.shape_cast %222 : vector<1x32x64xbf16> to vector<32x64xbf16>
    %cst_102 = arith.constant dense<0.000000e+00> : vector<8x64xf32>
    %224 = tpu.matmul %221, %223, %cst_102 {dimension_numbers = #tpu.dot_dimension_numbers<[1], [0], [0], [1], [0, 0, 1, 1], [], []>} : vector<8x32xbf16>, vector<32x64xbf16>, vector<8x64xf32> -> vector<8x64xf32>
    %c1_103 = arith.constant 1 : index
    %c0_104 = arith.constant 0 : index
    %c0_105 = arith.constant 0 : index
    %225 = vector.load %arg12[%c1_103, %c0_104, %c0_105] : memref<2x1x64xf32, #tpu.memory_space<vmem>>, vector<1x1x64xf32>
    %226 = vector.shape_cast %225 : vector<1x1x64xf32> to vector<1x64xf32>
    %227 = vector.broadcast %226 : vector<1x64xf32> to vector<8x64xf32>
    %228 = arith.addf %224, %227 : vector<8x64xf32>
    %229 = arith.mulf %228, %228 : vector<8x64xf32>
    %230 = arith.mulf %228, %229 : vector<8x64xf32>
    %cst_106 = arith.constant 4.471500e-02 : f32
    %231 = vector.broadcast %cst_106 : f32 to vector<8x64xf32>
    %232 = arith.mulf %231, %230 : vector<8x64xf32>
    %233 = arith.addf %228, %232 : vector<8x64xf32>
    %cst_107 = arith.constant 0.797884583 : f32
    %234 = vector.broadcast %cst_107 : f32 to vector<8x64xf32>
    %235 = arith.mulf %234, %233 : vector<8x64xf32>
    %236 = math.tanh %235 : vector<8x64xf32>
    %cst_108 = arith.constant 1.000000e+00 : f32
    %237 = vector.broadcast %cst_108 : f32 to vector<8x64xf32>
    %238 = arith.addf %237, %236 : vector<8x64xf32>
    %cst_109 = arith.constant 5.000000e-01 : f32
    %239 = vector.broadcast %cst_109 : f32 to vector<8x64xf32>
    %240 = arith.mulf %239, %238 : vector<8x64xf32>
    %241 = arith.mulf %228, %240 : vector<8x64xf32>
    %242 = arith.truncf %241 : vector<8x64xf32> to vector<8x64xbf16>
    %c1_110 = arith.constant 1 : index
    %c0_111 = arith.constant 0 : index
    %c0_112 = arith.constant 0 : index
    %243 = vector.load %arg13[%c1_110, %c0_111, %c0_112] : memref<2x64x32xbf16, #tpu.memory_space<vmem>>, vector<1x64x32xbf16>
    %244 = vector.shape_cast %243 : vector<1x64x32xbf16> to vector<64x32xbf16>
    %cst_113 = arith.constant dense<0.000000e+00> : vector<8x32xf32>
    %245 = tpu.matmul %242, %244, %cst_113 {dimension_numbers = #tpu.dot_dimension_numbers<[1], [0], [0], [1], [0, 0, 1, 1], [], []>} : vector<8x64xbf16>, vector<64x32xbf16>, vector<8x32xf32> -> vector<8x32xf32>
    %c1_114 = arith.constant 1 : index
    %c0_115 = arith.constant 0 : index
    %c0_116 = arith.constant 0 : index
    %246 = vector.load %arg14[%c1_114, %c0_115, %c0_116] : memref<2x1x32xf32, #tpu.memory_space<vmem>>, vector<1x1x32xf32>
    %247 = vector.shape_cast %246 : vector<1x1x32xf32> to vector<1x32xf32>
    %248 = vector.broadcast %247 : vector<1x32xf32> to vector<8x32xf32>
    %249 = arith.addf %245, %248 : vector<8x32xf32>
    %250 = arith.addf %249, %220 : vector<8x32xf32>
    %c1_117 = arith.constant 1 : index
    %c0_118 = arith.constant 0 : index
    %c0_119 = arith.constant 0 : index
    %251 = vector.load %arg15[%c1_117, %c0_118, %c0_119] : memref<2x1x32xf32, #tpu.memory_space<vmem>>, vector<1x1x32xf32>
    %252 = vector.shape_cast %251 : vector<1x1x32xf32> to vector<1x32xf32>
    %c1_120 = arith.constant 1 : index
    %c0_121 = arith.constant 0 : index
    %c0_122 = arith.constant 0 : index
    %253 = vector.load %arg16[%c1_120, %c0_121, %c0_122] : memref<2x1x32xf32, #tpu.memory_space<vmem>>, vector<1x1x32xf32>
    %254 = vector.shape_cast %253 : vector<1x1x32xf32> to vector<1x32xf32>
    %cst_123 = arith.constant dense<0.000000e+00> : vector<8xf32>
    %255 = vector.multi_reduction <add>, %250, %cst_123 [1] : vector<8x32xf32> to vector<8xf32>
    %256 = vector.shape_cast %255 : vector<8xf32> to vector<8x1xf32>
    %cst_124 = arith.constant 3.200000e+01 : f32
    %257 = vector.broadcast %cst_124 : f32 to vector<8x1xf32>
    %258 = arith.divf %256, %257 : vector<8x1xf32>
    %259 = vector.broadcast %258 : vector<8x1xf32> to vector<8x32xf32>
    %260 = arith.subf %250, %259 : vector<8x32xf32>
    %261 = arith.mulf %260, %260 : vector<8x32xf32>
    %cst_125 = arith.constant dense<0.000000e+00> : vector<8xf32>
    %262 = vector.multi_reduction <add>, %261, %cst_125 [1] : vector<8x32xf32> to vector<8xf32>
    %263 = vector.shape_cast %262 : vector<8xf32> to vector<8x1xf32>
    %cst_126 = arith.constant 3.200000e+01 : f32
    %264 = vector.broadcast %cst_126 : f32 to vector<8x1xf32>
    %265 = arith.divf %263, %264 : vector<8x1xf32>
    %266 = vector.broadcast %258 : vector<8x1xf32> to vector<8x32xf32>
    %267 = arith.subf %250, %266 : vector<8x32xf32>
    %cst_127 = arith.constant 9.99999996E-13 : f32
    %268 = vector.broadcast %cst_127 : f32 to vector<8x1xf32>
    %269 = arith.addf %265, %268 : vector<8x1xf32>
    %270 = math.rsqrt %269 : vector<8x1xf32>
    %271 = vector.broadcast %270 : vector<8x1xf32> to vector<8x32xf32>
    %272 = arith.mulf %267, %271 : vector<8x32xf32>
    %273 = vector.broadcast %252 : vector<1x32xf32> to vector<8x32xf32>
    %274 = arith.mulf %272, %273 : vector<8x32xf32>
    %275 = vector.broadcast %254 : vector<1x32xf32> to vector<8x32xf32>
    %276 = arith.addf %274, %275 : vector<8x32xf32>
    %277 = vector.extract_strided_slice %276 {offsets = [0, 0], sizes = [1, 32], strides = [1, 1]} : vector<8x32xf32> to vector<1x32xf32>
    %278 = arith.truncf %277 : vector<1x32xf32> to vector<1x32xbf16>
    %c0_128 = arith.constant 0 : index
    %c0_129 = arith.constant 0 : index
    %279 = vector.load %arg17[%c0_128, %c0_129] : memref<32x32xbf16, #tpu.memory_space<vmem>>, vector<32x32xbf16>
    %cst_130 = arith.constant dense<0.000000e+00> : vector<1x32xf32>
    %280 = tpu.matmul %278, %279, %cst_130 {dimension_numbers = #tpu.dot_dimension_numbers<[1], [0], [0], [1], [0, 0, 1, 1], [], []>} : vector<1x32xbf16>, vector<32x32xbf16>, vector<1x32xf32> -> vector<1x32xf32>
    %c0_131 = arith.constant 0 : index
    %c0_132 = arith.constant 0 : index
    %281 = vector.load %arg18[%c0_131, %c0_132] : memref<1x32xf32, #tpu.memory_space<vmem>>, vector<1x32xf32>
    %282 = arith.addf %280, %281 : vector<1x32xf32>
    %283 = math.tanh %282 : vector<1x32xf32>
    %284 = arith.truncf %283 : vector<1x32xf32> to vector<1x32xbf16>
    %c0_133 = arith.constant 0 : index
    %c0_134 = arith.constant 0 : index
    %285 = vector.load %arg19[%c0_133, %c0_134] : memref<32x128xbf16, #tpu.memory_space<vmem>>, vector<32x128xbf16>
    %cst_135 = arith.constant dense<0.000000e+00> : vector<1x128xf32>
    %286 = tpu.matmul %284, %285, %cst_135 {dimension_numbers = #tpu.dot_dimension_numbers<[1], [0], [0], [1], [0, 0, 1, 1], [], []>} : vector<1x32xbf16>, vector<32x128xbf16>, vector<1x128xf32> -> vector<1x128xf32>
    %c0_136 = arith.constant 0 : index
    %c0_137 = arith.constant 0 : index
    %287 = vector.load %arg20[%c0_136, %c0_137] : memref<1x128xf32, #tpu.memory_space<vmem>>, vector<1x128xf32>
    %288 = arith.addf %286, %287 : vector<1x128xf32>
    %289 = vector.shape_cast %288 : vector<1x128xf32> to vector<1x1x128xf32>
    %290 = vector.broadcast %289 : vector<1x1x128xf32> to vector<1x8x128xf32>
    %c0_138 = arith.constant 0 : index
    %c0_139 = arith.constant 0 : index
    %c0_140 = arith.constant 0 : index
    %291 = vector.load %arg21[%c0_138, %c0_139, %c0_140] : memref<1x8x128xf32, #tpu.memory_space<vmem>>, vector<1x8x128xf32>
    tpu.vector_store %arg21[%c0_138, %c0_139, %c0_140], %290 {strides = array<i32>} : memref<1x8x128xf32, #tpu.memory_space<vmem>>, vector<1x8x128xf32>,
    return
  }
  func.func @transform_0(%arg0: i32) -> (i32, i32, i32) {
    %c0_i32 = arith.constant 0 : i32
    %c0_i32_0 = arith.constant 0 : i32
    %c0_i32_1 = arith.constant 0 : i32
    return %arg0, %c0_i32, %c0_i32_0 : i32, i32, i32
  }
  func.func @transform_1(%arg0: i32) -> (i32, i32, i32) {
    %c0_i32 = arith.constant 0 : i32
    %c0_i32_0 = arith.constant 0 : i32
    %c0_i32_1 = arith.constant 0 : i32
    return %arg0, %c0_i32, %c0_i32_0 : i32, i32, i32
  }
  func.func @transform_2(%arg0: i32) -> (i32, i32) {
    %c0_i32 = arith.constant 0 : i32
    %c0_i32_0 = arith.constant 0 : i32
    %c0_i32_1 = arith.constant 0 : i32
    return %c0_i32, %c0_i32_0 : i32, i32
  }
  func.func @transform_3(%arg0: i32) -> (i32, i32) {
    %c0_i32 = arith.constant 0 : i32
    %c0_i32_0 = arith.constant 0 : i32
    %c0_i32_1 = arith.constant 0 : i32
    return %c0_i32, %c0_i32_0 : i32, i32
  }
  func.func @transform_4(%arg0: i32) -> (i32, i32, i32) {
    %c0_i32 = arith.constant 0 : i32
    %c0_i32_0 = arith.constant 0 : i32
    %c0_i32_1 = arith.constant 0 : i32
    %c0_i32_2 = arith.constant 0 : i32
    return %c0_i32, %c0_i32_0, %c0_i32_1 : i32, i32, i32
  }
  func.func @transform_5(%arg0: i32) -> (i32, i32, i32) {
    %c0_i32 = arith.constant 0 : i32
    %c0_i32_0 = arith.constant 0 : i32
    %c0_i32_1 = arith.constant 0 : i32
    %c0_i32_2 = arith.constant 0 : i32
    return %c0_i32, %c0_i32_0, %c0_i32_1 : i32, i32, i32
  }
  func.func @transform_6(%arg0: i32) -> (i32, i32, i32) {
    %c0_i32 = arith.constant 0 : i32
    %c0_i32_0 = arith.constant 0 : i32
    %c0_i32_1 = arith.constant 0 : i32
    %c0_i32_2 = arith.constant 0 : i32
    return %c0_i32, %c0_i32_0, %c0_i32_1 : i32, i32, i32
  }
  func.func @transform_7(%arg0: i32) -> (i32, i32, i32) {
    %c0_i32 = arith.constant 0 : i32
    %c0_i32_0 = arith.constant 0 : i32
    %c0_i32_1 = arith.constant 0 : i32
    %c0_i32_2 = arith.constant 0 : i32
    return %c0_i32, %c0_i32_0, %c0_i32_1 : i32, i32, i32
  }
  func.func @transform_8(%arg0: i32) -> (i32, i32, i32) {
    %c0_i32 = arith.constant 0 : i32
    %c0_i32_0 = arith.constant 0 : i32
    %c0_i32_1 = arith.constant 0 : i32
    %c0_i32_2 = arith.constant 0 : i32
    return %c0_i32, %c0_i32_0, %c0_i32_1 : i32, i32, i32
  }
  func.func @transform_9(%arg0: i32) -> (i32, i32, i32) {
    %c0_i32 = arith.constant 0 : i32
    %c0_i32_0 = arith.constant 0 : i32
    %c0_i32_1 = arith.constant 0 : i32
    %c0_i32_2 = arith.constant 0 : i32
    return %c0_i32, %c0_i32_0, %c0_i32_1 : i32, i32, i32
  }
  func.func @transform_10(%arg0: i32) -> (i32, i32, i32) {
    %c0_i32 = arith.constant 0 : i32
    %c0_i32_0 = arith.constant 0 : i32
    %c0_i32_1 = arith.constant 0 : i32
    %c0_i32_2 = arith.constant 0 : i32
    return %c0_i32, %c0_i32_0, %c0_i32_1 : i32, i32, i32
  }
  func.func @transform_11(%arg0: i32) -> (i32, i32, i32) {
    %c0_i32 = arith.constant 0 : i32
    %c0_i32_0 = arith.constant 0 : i32
    %c0_i32_1 = arith.constant 0 : i32
    %c0_i32_2 = arith.constant 0 : i32
    return %c0_i32, %c0_i32_0, %c0_i32_1 : i32, i32, i32
  }
  func.func @transform_12(%arg0: i32) -> (i32, i32, i32) {
    %c0_i32 = arith.constant 0 : i32
    %c0_i32_0 = arith.constant 0 : i32
    %c0_i32_1 = arith.constant 0 : i32
    %c0_i32_2 = arith.constant 0 : i32
    return %c0_i32, %c0_i32_0, %c0_i32_1 : i32, i32, i32
  }
  func.func @transform_13(%arg0: i32) -> (i32, i32, i32) {
    %c0_i32 = arith.constant 0 : i32
    %c0_i32_0 = arith.constant 0 : i32
    %c0_i32_1 = arith.constant 0 : i32
    %c0_i32_2 = arith.constant 0 : i32
    return %c0_i32, %c0_i32_0, %c0_i32_1 : i32, i32, i32
  }
  func.func @transform_14(%arg0: i32) -> (i32, i32, i32) {
    %c0_i32 = arith.constant 0 : i32
    %c0_i32_0 = arith.constant 0 : i32
    %c0_i32_1 = arith.constant 0 : i32
    %c0_i32_2 = arith.constant 0 : i32
    return %c0_i32, %c0_i32_0, %c0_i32_1 : i32, i32, i32
  }
  func.func @transform_15(%arg0: i32) -> (i32, i32, i32) {
    %c0_i32 = arith.constant 0 : i32
    %c0_i32_0 = arith.constant 0 : i32
    %c0_i32_1 = arith.constant 0 : i32
    %c0_i32_2 = arith.constant 0 : i32
    return %c0_i32, %c0_i32_0, %c0_i32_1 : i32, i32, i32
  }
  func.func @transform_16(%arg0: i32) -> (i32, i32) {
    %c0_i32 = arith.constant 0 : i32
    %c0_i32_0 = arith.constant 0 : i32
    %c0_i32_1 = arith.constant 0 : i32
    return %c0_i32, %c0_i32_0 : i32, i32
  }
  func.func @transform_17(%arg0: i32) -> (i32, i32) {
    %c0_i32 = arith.constant 0 : i32
    %c0_i32_0 = arith.constant 0 : i32
    %c0_i32_1 = arith.constant 0 : i32
    return %c0_i32, %c0_i32_0 : i32, i32
  }
  func.func @transform_18(%arg0: i32) -> (i32, i32) {
    %c0_i32 = arith.constant 0 : i32
    %c0_i32_0 = arith.constant 0 : i32
    %c0_i32_1 = arith.constant 0 : i32
    return %c0_i32, %c0_i32_0 : i32, i32
  }
  func.func @transform_19(%arg0: i32) -> (i32, i32) {
    %c0_i32 = arith.constant 0 : i32
    %c0_i32_0 = arith.constant 0 : i32
    %c0_i32_1 = arith.constant 0 : i32
    return %c0_i32, %c0_i32_0 : i32, i32
  }
  func.func @transform_20(%arg0: i32) -> (i32, i32, i32) {
    %c0_i32 = arith.constant 0 : i32
    %c0_i32_0 = arith.constant 0 : i32
    %c0_i32_1 = arith.constant 0 : i32
    return %arg0, %c0_i32, %c0_i32_0 : i32, i32, i32
  }
}

</mosaic_0001>

<llo_original>
// kernel: bert_classifier.1
$region0: #{bert_classifier.1}
  #allocation0 [shape = 'u32[]', space=smem, size = 0x4, offset = 0x4, fixed_abs, tag = 'smem constant byte address 0x4 - core index']
  #allocation1 [shape = 'u32[144,128]{1,0:T(1,128)}', space=vmem, size = 0x12000, scoped, tag = 'internal scratch']
  %s0 = inlined_call_operand.vmem [shape: f32[2,8,32], index: 0, kind: input, shape index: {}]
  %s1 = inlined_call_operand.vmem [shape: f32[2,1,8], index: 1, kind: input, shape index: {}]
  %s2 = inlined_call_operand.vmem [shape: f32[1,32], index: 2, kind: input, shape index: {}]
  %s3 = inlined_call_operand.vmem [shape: f32[1,32], index: 3, kind: input, shape index: {}]
  %s4 = inlined_call_operand.vmem [shape: bf16[2,32,96], index: 4, kind: input, shape index: {}]
  %s5 = inlined_call_operand.vmem [shape: f32[2,1,96], index: 5, kind: input, shape index: {}]
  %s6 = inlined_call_operand.vmem [shape: bf16[2,32,32], index: 6, kind: input, shape index: {}]
  %s7 = inlined_call_operand.vmem [shape: f32[2,1,32], index: 7, kind: input, shape index: {}]
  %s8 = inlined_call_operand.vmem [shape: f32[2,1,32], index: 8, kind: input, shape index: {}]
  %s9 = inlined_call_operand.vmem [shape: f32[2,1,32], index: 9, kind: input, shape index: {}]
  %s10 = inlined_call_operand.vmem [shape: bf16[2,32,64], index: 10, kind: input, shape index: {}]
  %s11 = inlined_call_operand.vmem [shape: f32[2,1,64], index: 11, kind: input, shape index: {}]
  %s12 = inlined_call_operand.vmem [shape: bf16[2,64,32], index: 12, kind: input, shape index: {}]
  %s13 = inlined_call_operand.vmem [shape: f32[2,1,32], index: 13, kind: input, shape index: {}]
  %s14 = inlined_call_operand.vmem [shape: f32[2,1,32], index: 14, kind: input, shape index: {}]
  %s15 = inlined_call_operand.vmem [shape: f32[2,1,32], index: 15, kind: input, shape index: {}]
  %s16 = inlined_call_operand.vmem [shape: bf16[32,32], index: 16, kind: input, shape index: {}]
  %s17 = inlined_call_operand.vmem [shape: f32[1,32], index: 17, kind: input, shape index: {}]
  %s18 = inlined_call_operand.vmem [shape: bf16[32,128], index: 18, kind: input, shape index: {}]
  %s19 = inlined_call_operand.vmem [shape: f32[1,128], index: 19, kind: input, shape index: {}]
  %s20 = inlined_call_operand.vmem [shape: f32[2,8,128], index: 20, kind: output, shape index: {}]
  %s21 = sld [smem:[#allocation0]]
  $region113: #{bert_classifier.1} parent=0
    _
  %s23 = ssub.s32 1, %s21
  %s24 = scalar_select 0, %s23, %s21
  loop: start=0, step=1, limit=4
  $region2: #{bert_classifier.1} parent=0 // loop_pre_header
    _
  $region3: #{bert_classifier.1} parent=0 // loop_header
    %s26 = sphi 0, %s30
    %p27 = scmp.ge.s32.totalorder %s26, 4
    %s36 = sphi 0, %s38
    %s39 = sphi 0, %s36
    %s40 = sphi 0, %s39
    %s56 = sphi 0, %s40
    %s62 = sphi 0, %s64
    %s65 = sphi 0, %s62
    %s66 = sphi 0, %s65
    %s82 = sphi 0, %s66
    %s86 = sphi 0, %s86
    %s88 = sphi 0, %s86
    %s89 = sphi 0, %s88
    %s103 = sphi 0, %s89
    %s107 = sphi 0, %s107
    %s109 = sphi 0, %s107
    %s110 = sphi 0, %s109
    %s124 = sphi 0, %s110
    %s128 = sphi 0, %s128
    %s130 = sphi 0, %s128
    %s131 = sphi 0, %s130
    %s145 = sphi 0, %s131
    %s149 = sphi 0, %s149
    %s151 = sphi 0, %s149
    %s152 = sphi 0, %s151
    %s166 = sphi 0, %s152
    %s170 = sphi 0, %s170
    %s172 = sphi 0, %s170
    %s173 = sphi 0, %s172
    %s187 = sphi 0, %s173
    %s191 = sphi 0, %s191
    %s193 = sphi 0, %s191
    %s194 = sphi 0, %s193
    %s208 = sphi 0, %s194
    %s212 = sphi 0, %s212
    %s214 = sphi 0, %s212
    %s215 = sphi 0, %s214
    %s229 = sphi 0, %s215
    %s233 = sphi 0, %s233
    %s235 = sphi 0, %s233
    %s236 = sphi 0, %s235
    %s250 = sphi 0, %s236
    %s254 = sphi 0, %s254
    %s256 = sphi 0, %s254
    %s257 = sphi 0, %s256
    %s271 = sphi 0, %s257
    %s275 = sphi 0, %s275
    %s277 = sphi 0, %s275
    %s278 = sphi 0, %s277
    %s292 = sphi 0, %s278
    %s296 = sphi 0, %s296
    %s298 = sphi 0, %s296
    %s299 = sphi 0, %s298
    %s313 = sphi 0, %s299
    %s317 = sphi 0, %s317
    %s319 = sphi 0, %s317
    %s320 = sphi 0, %s319
    %s334 = sphi 0, %s320
    %s338 = sphi 0, %s338
    %s340 = sphi 0, %s338
    %s341 = sphi 0, %s340
    %s355 = sphi 0, %s341
    %s359 = sphi 0, %s359
    %s361 = sphi 0, %s359
    %s362 = sphi 0, %s361
    %s376 = sphi 0, %s362
    %s380 = sphi 0, %s380
    %s382 = sphi 0, %s380
    %s383 = sphi 0, %s382
    %s397 = sphi 0, %s383
    %s401 = sphi 0, %s401
    %s403 = sphi 0, %s401
    %s404 = sphi 0, %s403
    %s418 = sphi 0, %s404
    %s422 = sphi 0, %s422
    %s424 = sphi 0, %s422
    %s425 = sphi 0, %s424
    %s439 = sphi 0, %s425
    %s443 = sphi 0, %s443
    %s445 = sphi 0, %s443
    %s446 = sphi 0, %s445
    %s460 = sphi 0, %s446
    %s466 = sphi 0, %s468
    %s469 = sphi 0, %s466
    %s470 = sphi 0, %s469
    %s486 = sphi 0, %s470
  $region4: #{bert_classifier.1} parent=0 // loop_header_branch
    %29 = sbr.rel (%p27) target = $region8
  $region5: #{bert_classifier.1} parent=0 // loop_body
    %s31 = ssub.s32 %s26, 1
    %s32 = ssub.s32 %s26, 2
    %s33 = sadd.s32 %s26, 1
    %s34 = ssub.s32 %s26, %s33
    %p35 = scmp.eq.s32.totalorder %s34, 0
    %s37 = sadd.s32 %s36, 1
    %s38 = scalar_select %p35, %s36, %s37
    %p41 = pneg %p35
    %p42 = scmp.eq.s32.totalorder %s26, 1
    %p43 = por %p41, %p42
    %p44 = scmp.ne.s32.totalorder %s36, %s39
    %p45 = scmp.eq.s32.totalorder %s26, 0
    %p46 = por %p44, %p45
    %p47 = scmp.ne.s32.totalorder %s36, %s39
    %p48 = scmp.eq.s32.totalorder %s31, 1
    %p49 = por %p47, %p48
    %p50 = scmp.ne.s32.totalorder %s39, %s40
    %p51 = scmp.eq.s32.totalorder %s31, 0
    %p52 = por %p50, %p51
    %p53 = scmp.ne.s32.totalorder %s39, %s40
    %p54 = scmp.eq.s32.totalorder %s32, 1
    %p55 = por %p53, %p54
    %p57 = scmp.ne.s32.totalorder %s40, %s56
    %p58 = scmp.eq.s32.totalorder %s32, 0
    %p59 = por %p57, %p58
    %s60 = ssub.s32 %s26, %s33
    %p61 = scmp.eq.s32.totalorder %s60, 0
    %s63 = sadd.s32 %s62, 1
    %s64 = scalar_select %p61, %s62, %s63
    %p67 = pneg %p61
    %p68 = scmp.eq.s32.totalorder %s26, 1
    %p69 = por %p67, %p68
    %p70 = scmp.ne.s32.totalorder %s62, %s65
    %p71 = scmp.eq.s32.totalorder %s26, 0
    %p72 = por %p70, %p71
    %p73 = scmp.ne.s32.totalorder %s62, %s65
    %p74 = scmp.eq.s32.totalorder %s31, 1
    %p75 = por %p73, %p74
    %p76 = scmp.ne.s32.totalorder %s65, %s66
    %p77 = scmp.eq.s32.totalorder %s31, 0
    %p78 = por %p76, %p77
    %p79 = scmp.ne.s32.totalorder %s65, %s66
    %p80 = scmp.eq.s32.totalorder %s32, 1
    %p81 = por %p79, %p80
    %p83 = scmp.ne.s32.totalorder %s66, %s82
    %p84 = scmp.eq.s32.totalorder %s32, 0
    %p85 = por %p83, %p84
    %s87 = sadd.s32 %s86, 1
    %p90 = scmp.eq.s32.totalorder %s26, 1
    %p91 = scmp.ne.s32.totalorder %s86, %s88
    %p92 = scmp.eq.s32.totalorder %s26, 0
    %p93 = por %p91, %p92
    %p94 = scmp.ne.s32.totalorder %s86, %s88
    %p95 = scmp.eq.s32.totalorder %s31, 1
    %p96 = por %p94, %p95
    %p97 = scmp.ne.s32.totalorder %s88, %s89
    %p98 = scmp.eq.s32.totalorder %s31, 0
    %p99 = por %p97, %p98
    %p100 = scmp.ne.s32.totalorder %s88, %s89
    %p101 = scmp.eq.s32.totalorder %s32, 1
    %p102 = por %p100, %p101
    %p104 = scmp.ne.s32.totalorder %s89, %s103
    %p105 = scmp.eq.s32.totalorder %s32, 0
    %p106 = por %p104, %p105
    %s108 = sadd.s32 %s107, 1
    %p111 = scmp.eq.s32.totalorder %s26, 1
    %p112 = scmp.ne.s32.totalorder %s107, %s109
    %p113 = scmp.eq.s32.totalorder %s26, 0
    %p114 = por %p112, %p113
    %p115 = scmp.ne.s32.totalorder %s107, %s109
    %p116 = scmp.eq.s32.totalorder %s31, 1
    %p117 = por %p115, %p116
    %p118 = scmp.ne.s32.totalorder %s109, %s110
    %p119 = scmp.eq.s32.totalorder %s31, 0
    %p120 = por %p118, %p119
    %p121 = scmp.ne.s32.totalorder %s109, %s110
    %p122 = scmp.eq.s32.totalorder %s32, 1
    %p123 = por %p121, %p122
    %p125 = scmp.ne.s32.totalorder %s110, %s124
    %p126 = scmp.eq.s32.totalorder %s32, 0
    %p127 = por %p125, %p126
    %s129 = sadd.s32 %s128, 1
    %p132 = scmp.eq.s32.totalorder %s26, 1
    %p133 = scmp.ne.s32.totalorder %s128, %s130
    %p134 = scmp.eq.s32.totalorder %s26, 0
    %p135 = por %p133, %p134
    %p136 = scmp.ne.s32.totalorder %s128, %s130
    %p137 = scmp.eq.s32.totalorder %s31, 1
    %p138 = por %p136, %p137
    %p139 = scmp.ne.s32.totalorder %s130, %s131
    %p140 = scmp.eq.s32.totalorder %s31, 0
    %p141 = por %p139, %p140
    %p142 = scmp.ne.s32.totalorder %s130, %s131
    %p143 = scmp.eq.s32.totalorder %s32, 1
    %p144 = por %p142, %p143
    %p146 = scmp.ne.s32.totalorder %s131, %s145
    %p147 = scmp.eq.s32.totalorder %s32, 0
    %p148 = por %p146, %p147
    %s150 = sadd.s32 %s149, 1
    %p153 = scmp.eq.s32.totalorder %s26, 1
    %p154 = scmp.ne.s32.totalorder %s149, %s151
    %p155 = scmp.eq.s32.totalorder %s26, 0
    %p156 = por %p154, %p155
    %p157 = scmp.ne.s32.totalorder %s149, %s151
    %p158 = scmp.eq.s32.totalorder %s31, 1
    %p159 = por %p157, %p158
    %p160 = scmp.ne.s32.totalorder %s151, %s152
    %p161 = scmp.eq.s32.totalorder %s31, 0
    %p162 = por %p160, %p161
    %p163 = scmp.ne.s32.totalorder %s151, %s152
    %p164 = scmp.eq.s32.totalorder %s32, 1
    %p165 = por %p163, %p164
    %p167 = scmp.ne.s32.totalorder %s152, %s166
    %p168 = scmp.eq.s32.totalorder %s32, 0
    %p169 = por %p167, %p168
    %s171 = sadd.s32 %s170, 1
    %p174 = scmp.eq.s32.totalorder %s26, 1
    %p175 = scmp.ne.s32.totalorder %s170, %s172
    %p176 = scmp.eq.s32.totalorder %s26, 0
    %p177 = por %p175, %p176
    %p178 = scmp.ne.s32.totalorder %s170, %s172
    %p179 = scmp.eq.s32.totalorder %s31, 1
    %p180 = por %p178, %p179
    %p181 = scmp.ne.s32.totalorder %s172, %s173
    %p182 = scmp.eq.s32.totalorder %s31, 0
    %p183 = por %p181, %p182
    %p184 = scmp.ne.s32.totalorder %s172, %s173
    %p185 = scmp.eq.s32.totalorder %s32, 1
    %p186 = por %p184, %p185
    %p188 = scmp.ne.s32.totalorder %s173, %s187
    %p189 = scmp.eq.s32.totalorder %s32, 0
    %p190 = por %p188, %p189
    %s192 = sadd.s32 %s191, 1
    %p195 = scmp.eq.s32.totalorder %s26, 1
    %p196 = scmp.ne.s32.totalorder %s191, %s193
    %p197 = scmp.eq.s32.totalorder %s26, 0
    %p198 = por %p196, %p197
    %p199 = scmp.ne.s32.totalorder %s191, %s193
    %p200 = scmp.eq.s32.totalorder %s31, 1
    %p201 = por %p199, %p200
    %p202 = scmp.ne.s32.totalorder %s193, %s194
    %p203 = scmp.eq.s32.totalorder %s31, 0
    %p204 = por %p202, %p203
    %p205 = scmp.ne.s32.totalorder %s193, %s194
    %p206 = scmp.eq.s32.totalorder %s32, 1
    %p207 = por %p205, %p206
    %p209 = scmp.ne.s32.totalorder %s194, %s208
    %p210 = scmp.eq.s32.totalorder %s32, 0
    %p211 = por %p209, %p210
    %s213 = sadd.s32 %s212, 1
    %p216 = scmp.eq.s32.totalorder %s26, 1
    %p217 = scmp.ne.s32.totalorder %s212, %s214
    %p218 = scmp.eq.s32.totalorder %s26, 0
    %p219 = por %p217, %p218
    %p220 = scmp.ne.s32.totalorder %s212, %s214
    %p221 = scmp.eq.s32.totalorder %s31, 1
    %p222 = por %p220, %p221
    %p223 = scmp.ne.s32.totalorder %s214, %s215
    %p224 = scmp.eq.s32.totalorder %s31, 0
    %p225 = por %p223, %p224
    %p226 = scmp.ne.s32.totalorder %s214, %s215
    %p227 = scmp.eq.s32.totalorder %s32, 1
    %p228 = por %p226, %p227
    %p230 = scmp.ne.s32.totalorder %s215, %s229
    %p231 = scmp.eq.s32.totalorder %s32, 0
    %p232 = por %p230, %p231
    %s234 = sadd.s32 %s233, 1
    %p237 = scmp.eq.s32.totalorder %s26, 1
    %p238 = scmp.ne.s32.totalorder %s233, %s235
    %p239 = scmp.eq.s32.totalorder %s26, 0
    %p240 = por %p238, %p239
    %p241 = scmp.ne.s32.totalorder %s233, %s235
    %p242 = scmp.eq.s32.totalorder %s31, 1
    %p243 = por %p241, %p242
    %p244 = scmp.ne.s32.totalorder %s235, %s236
    %p245 = scmp.eq.s32.totalorder %s31, 0
    %p246 = por %p244, %p245
    %p247 = scmp.ne.s32.totalorder %s235, %s236
    %p248 = scmp.eq.s32.totalorder %s32, 1
    %p249 = por %p247, %p248
    %p251 = scmp.ne.s32.totalorder %s236, %s250
    %p252 = scmp.eq.s32.totalorder %s32, 0
    %p253 = por %p251, %p252
    %s255 = sadd.s32 %s254, 1
    %p258 = scmp.eq.s32.totalorder %s26, 1
    %p259 = scmp.ne.s32.totalorder %s254, %s256
    %p260 = scmp.eq.s32.totalorder %s26, 0
    %p261 = por %p259, %p260
    %p262 = scmp.ne.s32.totalorder %s254, %s256
    %p263 = scmp.eq.s32.totalorder %s31, 1
    %p264 = por %p262, %p263
    %p265 = scmp.ne.s32.totalorder %s256, %s257
    %p266 = scmp.eq.s32.totalorder %s31, 0
    %p267 = por %p265, %p266
    %p268 = scmp.ne.s32.totalorder %s256, %s257
    %p269 = scmp.eq.s32.totalorder %s32, 1
    %p270 = por %p268, %p269
    %p272 = scmp.ne.s32.totalorder %s257, %s271
    %p273 = scmp.eq.s32.totalorder %s32, 0
    %p274 = por %p272, %p273
    %s276 = sadd.s32 %s275, 1
    %p279 = scmp.eq.s32.totalorder %s26, 1
    %p280 = scmp.ne.s32.totalorder %s275, %s277
    %p281 = scmp.eq.s32.totalorder %s26, 0
    %p282 = por %p280, %p281
    %p283 = scmp.ne.s32.totalorder %s275, %s277
    %p284 = scmp.eq.s32.totalorder %s31, 1
    %p285 = por %p283, %p284
    %p286 = scmp.ne.s32.totalorder %s277, %s278
    %p287 = scmp.eq.s32.totalorder %s31, 0
    %p288 = por %p286, %p287
    %p289 = scmp.ne.s32.totalorder %s277, %s278
    %p290 = scmp.eq.s32.totalorder %s32, 1
    %p291 = por %p289, %p290
    %p293 = scmp.ne.s32.totalorder %s278, %s292
    %p294 = scmp.eq.s32.totalorder %s32, 0
    %p295 = por %p293, %p294
    %s297 = sadd.s32 %s296, 1
    %p300 = scmp.eq.s32.totalorder %s26, 1
    %p301 = scmp.ne.s32.totalorder %s296, %s298
    %p302 = scmp.eq.s32.totalorder %s26, 0
    %p303 = por %p301, %p302
    %p304 = scmp.ne.s32.totalorder %s296, %s298
    %p305 = scmp.eq.s32.totalorder %s31, 1
    %p306 = por %p304, %p305
    %p307 = scmp.ne.s32.totalorder %s298, %s299
    %p308 = scmp.eq.s32.totalorder %s31, 0
    %p309 = por %p307, %p308
    %p310 = scmp.ne.s32.totalorder %s298, %s299
    %p311 = scmp.eq.s32.totalorder %s32, 1
    %p312 = por %p310, %p311
    %p314 = scmp.ne.s32.totalorder %s299, %s313
    %p315 = scmp.eq.s32.totalorder %s32, 0
    %p316 = por %p314, %p315
    %s318 = sadd.s32 %s317, 1
    %p321 = scmp.eq.s32.totalorder %s26, 1
    %p322 = scmp.ne.s32.totalorder %s317, %s319
    %p323 = scmp.eq.s32.totalorder %s26, 0
    %p324 = por %p322, %p323
    %p325 = scmp.ne.s32.totalorder %s317, %s319
    %p326 = scmp.eq.s32.totalorder %s31, 1
    %p327 = por %p325, %p326
    %p328 = scmp.ne.s32.totalorder %s319, %s320
    %p329 = scmp.eq.s32.totalorder %s31, 0
    %p330 = por %p328, %p329
    %p331 = scmp.ne.s32.totalorder %s319, %s320
    %p332 = scmp.eq.s32.totalorder %s32, 1
    %p333 = por %p331, %p332
    %p335 = scmp.ne.s32.totalorder %s320, %s334
    %p336 = scmp.eq.s32.totalorder %s32, 0
    %p337 = por %p335, %p336
    %s339 = sadd.s32 %s338, 1
    %p342 = scmp.eq.s32.totalorder %s26, 1
    %p343 = scmp.ne.s32.totalorder %s338, %s340
    %p344 = scmp.eq.s32.totalorder %s26, 0
    %p345 = por %p343, %p344
    %p346 = scmp.ne.s32.totalorder %s338, %s340
    %p347 = scmp.eq.s32.totalorder %s31, 1
    %p348 = por %p346, %p347
    %p349 = scmp.ne.s32.totalorder %s340, %s341
    %p350 = scmp.eq.s32.totalorder %s31, 0
    %p351 = por %p349, %p350
    %p352 = scmp.ne.s32.totalorder %s340, %s341
    %p353 = scmp.eq.s32.totalorder %s32, 1
    %p354 = por %p352, %p353
    %p356 = scmp.ne.s32.totalorder %s341, %s355
    %p357 = scmp.eq.s32.totalorder %s32, 0
    %p358 = por %p356, %p357
    %s360 = sadd.s32 %s359, 1
    %p363 = scmp.eq.s32.totalorder %s26, 1
    %p364 = scmp.ne.s32.totalorder %s359, %s361
    %p365 = scmp.eq.s32.totalorder %s26, 0
    %p366 = por %p364, %p365
    %p367 = scmp.ne.s32.totalorder %s359, %s361
    %p368 = scmp.eq.s32.totalorder %s31, 1
    %p369 = por %p367, %p368
    %p370 = scmp.ne.s32.totalorder %s361, %s362
    %p371 = scmp.eq.s32.totalorder %s31, 0
    %p372 = por %p370, %p371
    %p373 = scmp.ne.s32.totalorder %s361, %s362
    %p374 = scmp.eq.s32.totalorder %s32, 1
    %p375 = por %p373, %p374
    %p377 = scmp.ne.s32.totalorder %s362, %s376
    %p378 = scmp.eq.s32.totalorder %s32, 0
    %p379 = por %p377, %p378
    %s381 = sadd.s32 %s380, 1
    %p384 = scmp.eq.s32.totalorder %s26, 1
    %p385 = scmp.ne.s32.totalorder %s380, %s382
    %p386 = scmp.eq.s32.totalorder %s26, 0
    %p387 = por %p385, %p386
    %p388 = scmp.ne.s32.totalorder %s380, %s382
    %p389 = scmp.eq.s32.totalorder %s31, 1
    %p390 = por %p388, %p389
    %p391 = scmp.ne.s32.totalorder %s382, %s383
    %p392 = scmp.eq.s32.totalorder %s31, 0
    %p393 = por %p391, %p392
    %p394 = scmp.ne.s32.totalorder %s382, %s383
    %p395 = scmp.eq.s32.totalorder %s32, 1
    %p396 = por %p394, %p395
    %p398 = scmp.ne.s32.totalorder %s383, %s397
    %p399 = scmp.eq.s32.totalorder %s32, 0
    %p400 = por %p398, %p399
    %s402 = sadd.s32 %s401, 1
    %p405 = scmp.eq.s32.totalorder %s26, 1
    %p406 = scmp.ne.s32.totalorder %s401, %s403
    %p407 = scmp.eq.s32.totalorder %s26, 0
    %p408 = por %p406, %p407
    %p409 = scmp.ne.s32.totalorder %s401, %s403
    %p410 = scmp.eq.s32.totalorder %s31, 1
    %p411 = por %p409, %p410
    %p412 = scmp.ne.s32.totalorder %s403, %s404
    %p413 = scmp.eq.s32.totalorder %s31, 0
    %p414 = por %p412, %p413
    %p415 = scmp.ne.s32.totalorder %s403, %s404
    %p416 = scmp.eq.s32.totalorder %s32, 1
    %p417 = por %p415, %p416
    %p419 = scmp.ne.s32.totalorder %s404, %s418
    %p420 = scmp.eq.s32.totalorder %s32, 0
    %p421 = por %p419, %p420
    %s423 = sadd.s32 %s422, 1
    %p426 = scmp.eq.s32.totalorder %s26, 1
    %p427 = scmp.ne.s32.totalorder %s422, %s424
    %p428 = scmp.eq.s32.totalorder %s26, 0
    %p429 = por %p427, %p428
    %p430 = scmp.ne.s32.totalorder %s422, %s424
    %p431 = scmp.eq.s32.totalorder %s31, 1
    %p432 = por %p430, %p431
    %p433 = scmp.ne.s32.totalorder %s424, %s425
    %p434 = scmp.eq.s32.totalorder %s31, 0
    %p435 = por %p433, %p434
    %p436 = scmp.ne.s32.totalorder %s424, %s425
    %p437 = scmp.eq.s32.totalorder %s32, 1
    %p438 = por %p436, %p437
    %p440 = scmp.ne.s32.totalorder %s425, %s439
    %p441 = scmp.eq.s32.totalorder %s32, 0
    %p442 = por %p440, %p441
    %s444 = sadd.s32 %s443, 1
    %p447 = scmp.eq.s32.totalorder %s26, 1
    %p448 = scmp.ne.s32.totalorder %s443, %s445
    %p449 = scmp.eq.s32.totalorder %s26, 0
    %p450 = por %p448, %p449
    %p451 = scmp.ne.s32.totalorder %s443, %s445
    %p452 = scmp.eq.s32.totalorder %s31, 1
    %p453 = por %p451, %p452
    %p454 = scmp.ne.s32.totalorder %s445, %s446
    %p455 = scmp.eq.s32.totalorder %s31, 0
    %p456 = por %p454, %p455
    %p457 = scmp.ne.s32.totalorder %s445, %s446
    %p458 = scmp.eq.s32.totalorder %s32, 1
    %p459 = por %p457, %p458
    %p461 = scmp.ne.s32.totalorder %s446, %s460
    %p462 = scmp.eq.s32.totalorder %s32, 0
    %p463 = por %p461, %p462
    %s464 = ssub.s32 %s26, %s33
    %p465 = scmp.eq.s32.totalorder %s464, 0
    %s467 = sadd.s32 %s466, 1
    %s468 = scalar_select %p465, %s466, %s467
    %p471 = pneg %p465
    %p472 = scmp.eq.s32.totalorder %s26, 1
    %p473 = por %p471, %p472
    %p474 = scmp.ne.s32.totalorder %s466, %s469
    %p475 = scmp.eq.s32.totalorder %s26, 0
    %p476 = por %p474, %p475
    %p477 = scmp.ne.s32.totalorder %s466, %s469
    %p478 = scmp.eq.s32.totalorder %s31, 1
    %p479 = por %p477, %p478
    %p480 = scmp.ne.s32.totalorder %s469, %s470
    %p481 = scmp.eq.s32.totalorder %s31, 0
    %p482 = por %p480, %p481
    %p483 = scmp.ne.s32.totalorder %s469, %s470
    %p484 = scmp.eq.s32.totalorder %s32, 1
    %p485 = por %p483, %p484
    %p487 = scmp.ne.s32.totalorder %s470, %s486
    %p488 = scmp.eq.s32.totalorder %s32, 0
    %p489 = por %p487, %p488
    %p490 = scmp.le.s32.totalorder 1, %s26
    %p491 = scmp.lt.s32.totalorder %s26, 3
    %p492 = pnand %p490, %p491
    %p493 = pneg %p492
    // Predicated region
    $region9: #{bert_classifier.1} parent=5 // pred_check
      _
    $region10: #{bert_classifier.1} parent=5 // pred_check_branch
      %495 = sbr.rel (%p492) target = $region12
    $region11: #{bert_classifier.1} parent=5 // pred_region
      %s496 = ssub.s32 %s26, 1
      // Predicated region
      $region13: #{bert_classifier.1} parent=11 // pred_check
        %p497 = pneg %p99
      $region14: #{bert_classifier.1} parent=11 // pred_check_branch
        %499 = sbr.rel (%p497) target = $region16
      $region15: #{bert_classifier.1} parent=11 // pred_region
        _
      $region16: #{bert_classifier.1} parent=11 // pred_fallthru
        _
      // Predicated region
      $region17: #{bert_classifier.1} parent=11 // pred_check
        %p500 = pneg %p120
      $region18: #{bert_classifier.1} parent=11 // pred_check_branch
        %502 = sbr.rel (%p500) target = $region20
      $region19: #{bert_classifier.1} parent=11 // pred_region
        _
      $region20: #{bert_classifier.1} parent=11 // pred_fallthru
        _
      // Predicated region
      $region21: #{bert_classifier.1} parent=11 // pred_check
        %p503 = pneg %p141
      $region22: #{bert_classifier.1} parent=11 // pred_check_branch
        %505 = sbr.rel (%p503) target = $region24
      $region23: #{bert_classifier.1} parent=11 // pred_region
        _
      $region24: #{bert_classifier.1} parent=11 // pred_fallthru
        _
      // Predicated region
      $region25: #{bert_classifier.1} parent=11 // pred_check
        %p506 = pneg %p162
      $region26: #{bert_classifier.1} parent=11 // pred_check_branch
        %508 = sbr.rel (%p506) target = $region28
      $region27: #{bert_classifier.1} parent=11 // pred_region
        _
      $region28: #{bert_classifier.1} parent=11 // pred_fallthru
        _
      // Predicated region
      $region29: #{bert_classifier.1} parent=11 // pred_check
        %p509 = pneg %p183
      $region30: #{bert_classifier.1} parent=11 // pred_check_branch
        %511 = sbr.rel (%p509) target = $region32
      $region31: #{bert_classifier.1} parent=11 // pred_region
        _
      $region32: #{bert_classifier.1} parent=11 // pred_fallthru
        _
      // Predicated region
      $region33: #{bert_classifier.1} parent=11 // pred_check
        %p512 = pneg %p204
      $region34: #{bert_classifier.1} parent=11 // pred_check_branch
        %514 = sbr.rel (%p512) target = $region36
      $region35: #{bert_classifier.1} parent=11 // pred_region
        _
      $region36: #{bert_classifier.1} parent=11 // pred_fallthru
        _
      // Predicated region
      $region37: #{bert_classifier.1} parent=11 // pred_check
        %p515 = pneg %p225
      $region38: #{bert_classifier.1} parent=11 // pred_check_branch
        %517 = sbr.rel (%p515) target = $region40
      $region39: #{bert_classifier.1} parent=11 // pred_region
        _
      $region40: #{bert_classifier.1} parent=11 // pred_fallthru
        _
      // Predicated region
      $region41: #{bert_classifier.1} parent=11 // pred_check
        %p518 = pneg %p246
      $region42: #{bert_classifier.1} parent=11 // pred_check_branch
        %520 = sbr.rel (%p518) target = $region44
      $region43: #{bert_classifier.1} parent=11 // pred_region
        _
      $region44: #{bert_classifier.1} parent=11 // pred_fallthru
        _
      // Predicated region
      $region45: #{bert_classifier.1} parent=11 // pred_check
        %p521 = pneg %p267
      $region46: #{bert_classifier.1} parent=11 // pred_check_branch
        %523 = sbr.rel (%p521) target = $region48
      $region47: #{bert_classifier.1} parent=11 // pred_region
        _
      $region48: #{bert_classifier.1} parent=11 // pred_fallthru
        _
      // Predicated region
      $region49: #{bert_classifier.1} parent=11 // pred_check
        %p524 = pneg %p288
      $region50: #{bert_classifier.1} parent=11 // pred_check_branch
        %526 = sbr.rel (%p524) target = $region52
      $region51: #{bert_classifier.1} parent=11 // pred_region
        _
      $region52: #{bert_classifier.1} parent=11 // pred_fallthru
        _
      // Predicated region
      $region53: #{bert_classifier.1} parent=11 // pred_check
        %p527 = pneg %p309
      $region54: #{bert_classifier.1} parent=11 // pred_check_branch
        %529 = sbr.rel (%p527) target = $region56
      $region55: #{bert_classifier.1} parent=11 // pred_region
        _
      $region56: #{bert_classifier.1} parent=11 // pred_fallthru
        _
      // Predicated region
      $region57: #{bert_classifier.1} parent=11 // pred_check
        %p530 = pneg %p330
      $region58: #{bert_classifier.1} parent=11 // pred_check_branch
        %532 = sbr.rel (%p530) target = $region60
      $region59: #{bert_classifier.1} parent=11 // pred_region
        _
      $region60: #{bert_classifier.1} parent=11 // pred_fallthru
        _
      // Predicated region
      $region61: #{bert_classifier.1} parent=11 // pred_check
        %p533 = pneg %p351
      $region62: #{bert_classifier.1} parent=11 // pred_check_branch
        %535 = sbr.rel (%p533) target = $region64
      $region63: #{bert_classifier.1} parent=11 // pred_region
        _
      $region64: #{bert_classifier.1} parent=11 // pred_fallthru
        _
      // Predicated region
      $region65: #{bert_classifier.1} parent=11 // pred_check
        %p536 = pneg %p372
      $region66: #{bert_classifier.1} parent=11 // pred_check_branch
        %538 = sbr.rel (%p536) target = $region68
      $region67: #{bert_classifier.1} parent=11 // pred_region
        _
      $region68: #{bert_classifier.1} parent=11 // pred_fallthru
        _
      // Predicated region
      $region69: #{bert_classifier.1} parent=11 // pred_check
        %p539 = pneg %p393
      $region70: #{bert_classifier.1} parent=11 // pred_check_branch
        %541 = sbr.rel (%p539) target = $region72
      $region71: #{bert_classifier.1} parent=11 // pred_region
        _
      $region72: #{bert_classifier.1} parent=11 // pred_fallthru
        _
      // Predicated region
      $region73: #{bert_classifier.1} parent=11 // pred_check
        %p542 = pneg %p414
      $region74: #{bert_classifier.1} parent=11 // pred_check_branch
        %544 = sbr.rel (%p542) target = $region76
      $region75: #{bert_classifier.1} parent=11 // pred_region
        _
      $region76: #{bert_classifier.1} parent=11 // pred_fallthru
        _
      // Predicated region
      $region77: #{bert_classifier.1} parent=11 // pred_check
        %p545 = pneg %p435
      $region78: #{bert_classifier.1} parent=11 // pred_check_branch
        %547 = sbr.rel (%p545) target = $region80
      $region79: #{bert_classifier.1} parent=11 // pred_region
        _
      $region80: #{bert_classifier.1} parent=11 // pred_fallthru
        _
      // Predicated region
      $region81: #{bert_classifier.1} parent=11 // pred_check
        %p548 = pneg %p456
      $region82: #{bert_classifier.1} parent=11 // pred_check_branch
        %550 = sbr.rel (%p548) target = $region84
      $region83: #{bert_classifier.1} parent=11 // pred_region
        _
      $region84: #{bert_classifier.1} parent=11 // pred_fallthru
        _
    $region12: #{bert_classifier.1} parent=5 // pred_fallthru
      _
    %p551 = scmp.lt.s32.totalorder %s26, 2
    // Predicated region
    $region85: #{bert_classifier.1} parent=5 // pred_check
      %p552 = pneg %p551
    $region86: #{bert_classifier.1} parent=5 // pred_check_branch
      %554 = sbr.rel (%p552) target = $region88
    $region87: #{bert_classifier.1} parent=5 // pred_region
      // Predicated region
      $region89: #{bert_classifier.1} parent=87 // pred_check
        %p555 = pneg %p46
      $region90: #{bert_classifier.1} parent=87 // pred_check_branch
        %557 = sbr.rel (%p555) target = $region92
      $region91: #{bert_classifier.1} parent=87 // pred_region
        %p558 = scmp.lt.s32.totalorder %s26, 1
        %s559 = scalar_select %p558, %s26, 1
        %s560 = smul.addr %s559, 8
        %s561 = scalar_lea.vmem %s0, %s560
      $region92: #{bert_classifier.1} parent=87 // pred_fallthru
        _
      // Predicated region
      $region93: #{bert_classifier.1} parent=87 // pred_check
        %p562 = pneg %p72
      $region94: #{bert_classifier.1} parent=87 // pred_check_branch
        %564 = sbr.rel (%p562) target = $region96
      $region95: #{bert_classifier.1} parent=87 // pred_region
        %p565 = scmp.lt.s32.totalorder %s26, 1
        %s566 = scalar_select %p565, %s26, 1
        %s567 = scalar_lea.vmem %s1, %s566
      $region96: #{bert_classifier.1} parent=87 // pred_fallthru
        _
    $region88: #{bert_classifier.1} parent=5 // pred_fallthru
      _
    %p568 = scmp.le.s32.totalorder 1, %s26
    %p569 = scmp.lt.s32.totalorder %s26, 3
    %p570 = pnand %p568, %p569
    %p571 = pneg %p570
    // Predicated region
    $region97: #{bert_classifier.1} parent=5 // pred_check
      _
    $region98: #{bert_classifier.1} parent=5 // pred_check_branch
      %573 = sbr.rel (%p570) target = $region100
    $region99: #{bert_classifier.1} parent=5 // pred_region
      %s574 = ssub.s32 %s26, 1
      %p575 = scmp.lt.s32.totalorder %s31, 1
      %s576 = scalar_select %p575, %s31, 1
      %s577 = smul.addr %s576, 8
      %s578 = scalar_lea.vmem %s0, %s577
      %p579 = pneg %p52
      %p580 = pneg %p49
      %p581 = scmp.lt.s32.totalorder %s31, 1
      %s582 = scalar_select %p581, %s31, 1
      %s583 = scalar_lea.vmem %s1, %s582
      %p584 = pneg %p78
      %p585 = pneg %p75
      %p586 = pneg %p99
      %p587 = pneg %p96
      %p588 = pneg %p120
      %p589 = pneg %p117
      %p590 = pneg %p141
      %p591 = pneg %p138
      %p592 = pneg %p162
      %p593 = pneg %p159
      %p594 = pneg %p183
      %p595 = pneg %p180
      %p596 = pneg %p204
      %p597 = pneg %p201
      %p598 = pneg %p225
      %p599 = pneg %p222
      %p600 = pneg %p246
      %p601 = pneg %p243
      %p602 = pneg %p267
      %p603 = pneg %p264
      %p604 = pneg %p288
      %p605 = pneg %p285
      %p606 = pneg %p309
      %p607 = pneg %p306
      %p608 = pneg %p330
      %p609 = pneg %p327
      %p610 = pneg %p351
      %p611 = pneg %p348
      %p612 = pneg %p372
      %p613 = pneg %p369
      %p614 = pneg %p393
      %p615 = pneg %p390
      %p616 = pneg %p414
      %p617 = pneg %p411
      %p618 = pneg %p435
      %p619 = pneg %p432
      %p620 = pneg %p456
      %p621 = pneg %p453
      %p622 = pneg %p482
      %p623 = pneg %p479
      %p624 = scmp.lt.s32.totalorder %s31, 1
      %s625 = scalar_select %p624, %s31, 1
      %s626 = smul.addr %s625, 8
      %s627 = scalar_lea.vmem %s20, %s626
      %p628 = scmp.lt.s32.totalorder %s31, 1
      %s629 = scalar_select %p628, %s31, 1
      %s630 = smul.addr %s629, 8
      %s631 = scalar_lea.vmem %s0, %s630
      %p632 = scmp.lt.s32.totalorder %s31, 1
      %s633 = scalar_select %p632, %s31, 1
      %s634 = scalar_lea.vmem %s1, %s633
      %p635 = scmp.lt.s32.totalorder %s31, 1
      %s636 = scalar_select %p635, %s31, 1
      %s637 = smul.addr %s636, 8
      %s638 = scalar_lea.vmem %s20, %s637
      %v640 = vld [vmem:[%s631] sm:$0xff]
      %v641 = vld [vmem:[%s2] sm:$0x1]
      %v642 = vld [vmem:[%s3] sm:$0x1]
      %vm643 = vcmask 261120
      %v644 = vsel %vm643, %v640, 0.0
      %645 = vadd.xlane.f32.xlu0 %v644
      %v646 = vpop.xlane.xlu0 %645
      %v647 = vrcp.pop 32.0
      %v648 = vmul.f32 %v646, %v647
      %v649 = vsub.f32 %v640, %v648
      %v650 = vmul.f32 %v649, %v649
      %v651 = vsel %vm643, %v650, 0.0
      %652 = vadd.xlane.f32.xlu0 %v651
      %v653 = vpop.xlane.xlu0 %652
      %v654 = vmul.f32 %v653, %v647
      %v655 = vadd.f32 %v654, 1e-12
      %v656 = vrsqrt.pop %v655
      %v657 = vmul.f32 %v649, %v656
      %v659 = vlaneseq
      %v660 = vshrl.u32 %v659, 7
      %v661 = vsub.s32 0, %v660
      %v662 = vrot.slane %v641, %v661
      %v664 = vmul.f32 %v657, %v662
      %v666 = vlaneseq
      %v667 = vshrl.u32 %v666, 7
      %v668 = vsub.s32 0, %v667
      %v669 = vrot.slane %v642, %v668
      %v671 = vadd.f32 %v664, %v669
      %v672 = vld [vmem:[%s634] sm:$0x1]
      %v673 = vpack.c.bf16 %v671, %v671
      %v674 = vld [vmem:[%s4] sm:$0xf]
      %v675 = vld [vmem:[%s4 + $0x4] sm:$0xf]
      %v676 = vld [vmem:[%s4 + $0x8] sm:$0xf]
      %v677 = vld [vmem:[%s4 + $0xc] sm:$0xf]
      %v678 = vld [vmem:[%s5] sm:$0x1]
      %v680 = vlaneseq
      %v681 = vshrl.u32 %v680, 7
      %v682 = vsub.s32 0, %v681
      %v683 = vrot.slane %v678, %v682
      %v689 = vunpack.c.l.b16 %v674
      %v690 = vunpack.c.l.b16 %v675
      %v691 = vunpack.c.l.b16 %v676
      %v692 = vunpack.c.l.b16 %v677
      %v693 = vpack.c.b16 %v690, %v689
      %v694 = vpack.c.b16 %v692, %v691
      %v698 = vsel %vm643, %v673, 0
      %700 = vmatprep.subr.bf16.mxu0 0
      %701 = vmatpush1.bf16.msra.mxu0 0
      %702 = vmatprep.subr.bf16.mxu0 0
      %703 = vmatpush1.bf16.msra.mxu0 0
      %704 = vmatprep.subr.bf16.mxu0 0
      %705 = vmatpush1.bf16.msra.mxu0 0
      %706 = vmatprep.subr.bf16.mxu0 0
      %707 = vmatpush1.bf16.msra.mxu0 0
      %708 = vmatprep.subr.bf16.mxu0 0
      %709 = vmatpush1.bf16.msra.mxu0 0
      %710 = vmatprep.subr.bf16.mxu0 0
      %711 = vmatpush1.bf16.msra.mxu0 0
      %712 = vmatprep.subr.bf16.mxu0 0
      %713 = vmatpush1.bf16.msra.mxu0 %v694
      %714 = vmatprep.subr.bf16.mxu0 0
      %715 = vmatpush1.bf16.msra.mxu0 %v693
      %716 = vmatprep.subr.bf16.mxu0 0
      %717 = vmatpush2.bf16.msra.mxu0 0
      %718 = vmatprep.subr.bf16.mxu0 0
      %719 = vmatpush2.bf16.msra.mxu0 0
      %720 = vmatprep.subr.bf16.mxu0 0
      %721 = vmatpush2.bf16.msra.mxu0 0
      %722 = vmatprep.subr.bf16.mxu0 0
      %723 = vmatpush2.bf16.msra.mxu0 0
      %724 = vmatprep.subr.bf16.mxu0 0
      %725 = vmatpush2.bf16.msra.mxu0 0
      %726 = vmatprep.subr.bf16.mxu0 0
      %727 = vmatpush2.bf16.msra.mxu0 0
      %728 = vmatprep.subr.bf16.mxu0 0
      %729 = vmatpush2.bf16.msra.mxu0 0
      %730 = vmatprep.subr.bf16.mxu0 0
      %731 = vmatpush2.bf16.msra.mxu0 0
      %732 = vmatprep.mubr.bf16.mxu0 0
      %733 = vmatmul.mubr.bf16.gmra.mxu0 %v698
      %v734 = vpop.f32.mrf.mxu0
      %v735 = vadd.f32 %v683, %v734
      %v736 = vpop.f32.mrf.mxu0
      %v737 = vpop.f32.mrf.mxu0
      %v738 = vpop.f32.mrf.mxu0
      %739 = vdwg.mxu0
      %741 = vrot.lane.b32.xlu0 %v735, 120
      %v742 = vpop.permute.xlu0 %741
      %744 = vrot.lane.b32.xlu0 %v735, 112
      %v745 = vpop.permute.xlu0 %744
      %747 = vrot.lane.b32.xlu0 %v735, 104
      %v748 = vpop.permute.xlu0 %747
      %v750 = vcombine.low %v735, %v745
      %v751 = vcombine.high %v735, %v745
      %v753 = vunpack.c.l.s4 1983009808
      %v754 = vunpack.c.0.s8 %v753
      %v755 = vlaneseq
      %v756 = vshrl.u32 %v755, 7
      %v757 = vsub.s32 %v754, %v756
      %v758 = vrot.slane %v750, %v757
      %v760 = vunpack.c.l.s4 1983009808
      %v761 = vunpack.c.0.s8 %v760
      %v762 = vlaneseq
      %v763 = vshrl.u32 %v762, 7
      %v764 = vsub.s32 %v761, %v763
      %v765 = vrot.slane %v751, %v764
      %v766 = vcombine.low %v742, %v748
      %v767 = vcombine.high %v742, %v748
      %v769 = vunpack.c.l.s4 1983009808
      %v770 = vunpack.c.0.s8 %v769
      %v771 = vlaneseq
      %v772 = vshrl.u32 %v771, 7
      %v773 = vsub.s32 %v770, %v772
      %v774 = vrot.slane %v766, %v773
      %v776 = vunpack.c.l.s4 1983009808
      %v777 = vunpack.c.0.s8 %v776
      %v778 = vlaneseq
      %v779 = vshrl.u32 %v778, 7
      %v780 = vsub.s32 %v777, %v779
      %v781 = vrot.slane %v767, %v780
      %v782 = vcombine.low %v758, %v774
      %v783 = vcombine.high %v758, %v774
      %v785 = vunpack.c.l.s4 1934713408
      %v786 = vunpack.c.0.s8 %v785
      %v787 = vlaneseq
      %v788 = vshrl.u32 %v787, 7
      %v789 = vsub.s32 %v786, %v788
      %v790 = vrot.slane %v782, %v789
      %v792 = vunpack.c.l.s4 1934713408
      %v793 = vunpack.c.0.s8 %v792
      %v794 = vlaneseq
      %v795 = vshrl.u32 %v794, 7
      %v796 = vsub.s32 %v793, %v795
      %v797 = vrot.slane %v783, %v796
      %v798 = vcombine.low %v765, %v781
      %v799 = vcombine.high %v765, %v781
      %v801 = vunpack.c.l.s4 1934713408
      %v802 = vunpack.c.0.s8 %v801
      %v803 = vlaneseq
      %v804 = vshrl.u32 %v803, 7
      %v805 = vsub.s32 %v802, %v804
      %v806 = vrot.slane %v798, %v805
      %v808 = vunpack.c.l.s4 1934713408
      %v809 = vunpack.c.0.s8 %v808
      %v810 = vlaneseq
      %v811 = vshrl.u32 %v810, 7
      %v812 = vsub.s32 %v809, %v811
      %v813 = vrot.slane %v799, %v812
      %v814 = vcombine.high %v790, 0.0
      %v815 = vcombine.high %v797, 0.0
      %v816 = vcombine.high %v806, 0.0
      %v817 = vcombine.high %v813, 0.0
      %818 = vrot.lane.b32.xlu0 %v735, 96
      %v819 = vpop.permute.xlu0 %818
      %820 = vrot.lane.b32.xlu0 %v742, 96
      %v821 = vpop.permute.xlu0 %820
      %822 = vrot.lane.b32.xlu0 %v745, 96
      %v823 = vpop.permute.xlu0 %822
      %824 = vrot.lane.b32.xlu0 %v748, 96
      %v825 = vpop.permute.xlu0 %824
      %v830 = vcombine.low %v819, %v823
      %v831 = vcombine.high %v819, %v823
      %v833 = vunpack.c.l.s4 1983009808
      %v834 = vunpack.c.0.s8 %v833
      %v835 = vlaneseq
      %v836 = vshrl.u32 %v835, 7
      %v837 = vsub.s32 %v834, %v836
      %v838 = vrot.slane %v830, %v837
      %v840 = vunpack.c.l.s4 1983009808
      %v841 = vunpack.c.0.s8 %v840
      %v842 = vlaneseq
      %v843 = vshrl.u32 %v842, 7
      %v844 = vsub.s32 %v841, %v843
      %v845 = vrot.slane %v831, %v844
      %v846 = vcombine.low %v821, %v825
      %v847 = vcombine.high %v821, %v825
      %v849 = vunpack.c.l.s4 1983009808
      %v850 = vunpack.c.0.s8 %v849
      %v851 = vlaneseq
      %v852 = vshrl.u32 %v851, 7
      %v853 = vsub.s32 %v850, %v852
      %v854 = vrot.slane %v846, %v853
      %v856 = vunpack.c.l.s4 1983009808
      %v857 = vunpack.c.0.s8 %v856
      %v858 = vlaneseq
      %v859 = vshrl.u32 %v858, 7
      %v860 = vsub.s32 %v857, %v859
      %v861 = vrot.slane %v847, %v860
      %v862 = vcombine.low %v838, %v854
      %v863 = vcombine.high %v838, %v854
      %v865 = vunpack.c.l.s4 1934713408
      %v866 = vunpack.c.0.s8 %v865
      %v867 = vlaneseq
      %v868 = vshrl.u32 %v867, 7
      %v869 = vsub.s32 %v866, %v868
      %v870 = vrot.slane %v862, %v869
      %v872 = vunpack.c.l.s4 1934713408
      %v873 = vunpack.c.0.s8 %v872
      %v874 = vlaneseq
      %v875 = vshrl.u32 %v874, 7
      %v876 = vsub.s32 %v873, %v875
      %v877 = vrot.slane %v863, %v876
      %v878 = vcombine.low %v845, %v861
      %v879 = vcombine.high %v845, %v861
      %v881 = vunpack.c.l.s4 1934713408
      %v882 = vunpack.c.0.s8 %v881
      %v883 = vlaneseq
      %v884 = vshrl.u32 %v883, 7
      %v885 = vsub.s32 %v882, %v884
      %v886 = vrot.slane %v878, %v885
      %v888 = vunpack.c.l.s4 1934713408
      %v889 = vunpack.c.0.s8 %v888
      %v890 = vlaneseq
      %v891 = vshrl.u32 %v890, 7
      %v892 = vsub.s32 %v889, %v891
      %v893 = vrot.slane %v879, %v892
      %v894 = vcombine.high %v870, 0.0
      %v895 = vcombine.high %v877, 0.0
      %v896 = vcombine.high %v886, 0.0
      %v897 = vcombine.high %v893, 0.0
      %898 = vrot.lane.b32.xlu0 %v735, 64
      %v899 = vpop.permute.xlu0 %898
      %900 = vrot.lane.b32.xlu0 %v742, 64
      %v901 = vpop.permute.xlu0 %900
      %902 = vrot.lane.b32.xlu0 %v745, 64
      %v903 = vpop.permute.xlu0 %902
      %904 = vrot.lane.b32.xlu0 %v748, 64
      %v905 = vpop.permute.xlu0 %904
      %v910 = vcombine.low %v899, %v903
      %v911 = vcombine.high %v899, %v903
      %v913 = vunpack.c.l.s4 1983009808
      %v914 = vunpack.c.0.s8 %v913
      %v915 = vlaneseq
      %v916 = vshrl.u32 %v915, 7
      %v917 = vsub.s32 %v914, %v916
      %v918 = vrot.slane %v910, %v917
      %v920 = vunpack.c.l.s4 1983009808
      %v921 = vunpack.c.0.s8 %v920
      %v922 = vlaneseq
      %v923 = vshrl.u32 %v922, 7
      %v924 = vsub.s32 %v921, %v923
      %v925 = vrot.slane %v911, %v924
      %v926 = vcombine.low %v901, %v905
      %v927 = vcombine.high %v901, %v905
      %v929 = vunpack.c.l.s4 1983009808
      %v930 = vunpack.c.0.s8 %v929
      %v931 = vlaneseq
      %v932 = vshrl.u32 %v931, 7
      %v933 = vsub.s32 %v930, %v932
      %v934 = vrot.slane %v926, %v933
      %v936 = vunpack.c.l.s4 1983009808
      %v937 = vunpack.c.0.s8 %v936
      %v938 = vlaneseq
      %v939 = vshrl.u32 %v938, 7
      %v940 = vsub.s32 %v937, %v939
      %v941 = vrot.slane %v927, %v940
      %v942 = vcombine.low %v918, %v934
      %v943 = vcombine.high %v918, %v934
      %v945 = vunpack.c.l.s4 1934713408
      %v946 = vunpack.c.0.s8 %v945
      %v947 = vlaneseq
      %v948 = vshrl.u32 %v947, 7
      %v949 = vsub.s32 %v946, %v948
      %v950 = vrot.slane %v942, %v949
      %v952 = vunpack.c.l.s4 1934713408
      %v953 = vunpack.c.0.s8 %v952
      %v954 = vlaneseq
      %v955 = vshrl.u32 %v954, 7
      %v956 = vsub.s32 %v953, %v955
      %v957 = vrot.slane %v943, %v956
      %v958 = vcombine.low %v925, %v941
      %v959 = vcombine.high %v925, %v941
      %v961 = vunpack.c.l.s4 1934713408
      %v962 = vunpack.c.0.s8 %v961
      %v963 = vlaneseq
      %v964 = vshrl.u32 %v963, 7
      %v965 = vsub.s32 %v962, %v964
      %v966 = vrot.slane %v958, %v965
      %v968 = vunpack.c.l.s4 1934713408
      %v969 = vunpack.c.0.s8 %v968
      %v970 = vlaneseq
      %v971 = vshrl.u32 %v970, 7
      %v972 = vsub.s32 %v969, %v971
      %v973 = vrot.slane %v959, %v972
      %v974 = vcombine.high %v950, 0.0
      %v975 = vcombine.high %v957, 0.0
      %v976 = vcombine.high %v966, 0.0
      %v977 = vcombine.high %v973, 0.0
      %v978 = vpack.c.bf16 %v790, %v790
      %v979 = vpack.c.bf16 %v814, %v814
      %v980 = vpack.c.bf16 %v797, %v797
      %v981 = vpack.c.bf16 %v815, %v815
      %v982 = vpack.c.bf16 %v806, %v806
      %v983 = vpack.c.bf16 %v816, %v816
      %v984 = vpack.c.bf16 %v813, %v813
      %v985 = vpack.c.bf16 %v817, %v817
      %v986 = vpack.c.bf16 %v870, %v870
      %v987 = vpack.c.bf16 %v894, %v894
      %v988 = vpack.c.bf16 %v877, %v877
      %v989 = vpack.c.bf16 %v895, %v895
      %v990 = vpack.c.bf16 %v886, %v886
      %v991 = vpack.c.bf16 %v896, %v896
      %v992 = vpack.c.bf16 %v893, %v893
      %v993 = vpack.c.bf16 %v897, %v897
      %v995 = vlaneseq
      %v996 = vshrl.u32 %v995, 7
      %v997 = vsub.s32 0, %v996
      %v998 = vrot.slane %v672, %v997
      %v1000 = vcombine.low %v978, %v982
      %v1002 = vunpack.c.l.s4 1983009808
      %v1003 = vunpack.c.0.s8 %v1002
      %v1004 = vlaneseq
      %v1005 = vshrl.u32 %v1004, 7
      %v1006 = vsub.s32 %v1003, %v1005
      %v1007 = vrot.slane %v1000, %v1006
      %v1008 = vcombine.low %v980, %v984
      %v1010 = vunpack.c.l.s4 1983009808
      %v1011 = vunpack.c.0.s8 %v1010
      %v1012 = vlaneseq
      %v1013 = vshrl.u32 %v1012, 7
      %v1014 = vsub.s32 %v1011, %v1013
      %v1015 = vrot.slane %v1008, %v1014
      %v1016 = vcombine.low %v1007, %v1015
      %v1018 = vunpack.c.l.s4 1934713408
      %v1019 = vunpack.c.0.s8 %v1018
      %v1020 = vlaneseq
      %v1021 = vshrl.u32 %v1020, 7
      %v1022 = vsub.s32 %v1019, %v1021
      %v1023 = vrot.slane %v1016, %v1022
      %v1024 = vcombine.high %v1023, 0
      %v1025 = vcombine.low %v979, %v983
      %v1027 = vunpack.c.l.s4 1983009808
      %v1028 = vunpack.c.0.s8 %v1027
      %v1029 = vlaneseq
      %v1030 = vshrl.u32 %v1029, 7
      %v1031 = vsub.s32 %v1028, %v1030
      %v1032 = vrot.slane %v1025, %v1031
      %v1033 = vcombine.low %v981, %v985
      %v1035 = vunpack.c.l.s4 1983009808
      %v1036 = vunpack.c.0.s8 %v1035
      %v1037 = vlaneseq
      %v1038 = vshrl.u32 %v1037, 7
      %v1039 = vsub.s32 %v1036, %v1038
      %v1040 = vrot.slane %v1033, %v1039
      %v1041 = vcombine.low %v1032, %v1040
      %v1043 = vunpack.c.l.s4 1934713408
      %v1044 = vunpack.c.0.s8 %v1043
      %v1045 = vlaneseq
      %v1046 = vshrl.u32 %v1045, 7
      %v1047 = vsub.s32 %v1044, %v1046
      %v1048 = vrot.slane %v1041, %v1047
      %v1049 = vcombine.high %v1048, 0
      %v1052 = vpack.i.b16 %v1048, %v1023
      %v1053 = vshrl.u32 %v1023, 16
      %v1054 = vshrl.u32 %v1048, 16
      %v1055 = vpack.i.b16 %v1054, %v1053
      %v1058 = vpack.i.b16 %v1049, %v1024
      %v1059 = vshrl.u32 %v1024, 16
      %v1060 = vshrl.u32 %v1049, 16
      %v1061 = vpack.i.b16 %v1060, %v1059
      %1062 = vxpose.xlu0.c.b16.start [1/8] %v986, 128
      %1063 = vxpose.xlu0.c.b16.cont [2/8] 0, 128
      %1064 = vxpose.xlu0.c.b16.cont [3/8] 0, 128
      %1065 = vxpose.xlu0.c.b16.cont [4/8] 0, 128
      %1066 = vxpose.xlu0.c.b16.cont [5/8] 0, 128
      %1067 = vxpose.xlu0.c.b16.cont [6/8] 0, 128
      %1068 = vxpose.xlu0.c.b16.cont [7/8] 0, 128
      %1069 = vxpose.xlu0.c.b16.end [8/8] 0, 128
      %v1070 = vpop.trf.xlu0
      %v1071 = vpop.trf.xlu0
      %v1072 = vpop.trf.xlu0
      %v1073 = vpop.trf.xlu0
      %v1074 = vpop.trf.xlu0
      %v1075 = vpop.trf.xlu0
      %v1076 = vpop.trf.xlu0
      %v1077 = vpop.trf.xlu0
      %1078 = vxpose.xlu0.c.b16.start [1/8] %v987, 128
      %1079 = vxpose.xlu0.c.b16.cont [2/8] 0, 128
      %1080 = vxpose.xlu0.c.b16.cont [3/8] 0, 128
      %1081 = vxpose.xlu0.c.b16.cont [4/8] 0, 128
      %1082 = vxpose.xlu0.c.b16.cont [5/8] 0, 128
      %1083 = vxpose.xlu0.c.b16.cont [6/8] 0, 128
      %1084 = vxpose.xlu0.c.b16.cont [7/8] 0, 128
      %1085 = vxpose.xlu0.c.b16.end [8/8] 0, 128
      %v1086 = vpop.trf.xlu0
      %v1087 = vpop.trf.xlu0
      %v1088 = vpop.trf.xlu0
      %v1089 = vpop.trf.xlu0
      %v1090 = vpop.trf.xlu0
      %v1091 = vpop.trf.xlu0
      %v1092 = vpop.trf.xlu0
      %v1093 = vpop.trf.xlu0
      %1094 = vxpose.xlu0.c.b16.start [1/8] %v988, 128
      %1095 = vxpose.xlu0.c.b16.cont [2/8] 0, 128
      %1096 = vxpose.xlu0.c.b16.cont [3/8] 0, 128
      %1097 = vxpose.xlu0.c.b16.cont [4/8] 0, 128
      %1098 = vxpose.xlu0.c.b16.cont [5/8] 0, 128
      %1099 = vxpose.xlu0.c.b16.cont [6/8] 0, 128
      %1100 = vxpose.xlu0.c.b16.cont [7/8] 0, 128
      %1101 = vxpose.xlu0.c.b16.end [8/8] 0, 128
      %v1102 = vpop.trf.xlu0
      %v1103 = vpop.trf.xlu0
      %v1104 = vpop.trf.xlu0
      %v1105 = vpop.trf.xlu0
      %v1106 = vpop.trf.xlu0
      %v1107 = vpop.trf.xlu0
      %v1108 = vpop.trf.xlu0
      %v1109 = vpop.trf.xlu0
      %1110 = vxpose.xlu0.c.b16.start [1/8] %v989, 128
      %1111 = vxpose.xlu0.c.b16.cont [2/8] 0, 128
      %1112 = vxpose.xlu0.c.b16.cont [3/8] 0, 128
      %1113 = vxpose.xlu0.c.b16.cont [4/8] 0, 128
      %1114 = vxpose.xlu0.c.b16.cont [5/8] 0, 128
      %1115 = vxpose.xlu0.c.b16.cont [6/8] 0, 128
      %1116 = vxpose.xlu0.c.b16.cont [7/8] 0, 128
      %1117 = vxpose.xlu0.c.b16.end [8/8] 0, 128
      %v1118 = vpop.trf.xlu0
      %v1119 = vpop.trf.xlu0
      %v1120 = vpop.trf.xlu0
      %v1121 = vpop.trf.xlu0
      %v1122 = vpop.trf.xlu0
      %v1123 = vpop.trf.xlu0
      %v1124 = vpop.trf.xlu0
      %v1125 = vpop.trf.xlu0
      %1126 = vxpose.xlu0.c.b16.start [1/8] %v990, 128
      %1127 = vxpose.xlu0.c.b16.cont [2/8] 0, 128
      %1128 = vxpose.xlu0.c.b16.cont [3/8] 0, 128
      %1129 = vxpose.xlu0.c.b16.cont [4/8] 0, 128
      %1130 = vxpose.xlu0.c.b16.cont [5/8] 0, 128
      %1131 = vxpose.xlu0.c.b16.cont [6/8] 0, 128
      %1132 = vxpose.xlu0.c.b16.cont [7/8] 0, 128
      %1133 = vxpose.xlu0.c.b16.end [8/8] 0, 128
      %v1134 = vpop.trf.xlu0
      %v1135 = vpop.trf.xlu0
      %v1136 = vpop.trf.xlu0
      %v1137 = vpop.trf.xlu0
      %v1138 = vpop.trf.xlu0
      %v1139 = vpop.trf.xlu0
      %v1140 = vpop.trf.xlu0
      %v1141 = vpop.trf.xlu0
      %1142 = vxpose.xlu0.c.b16.start [1/8] %v991, 128
      %1143 = vxpose.xlu0.c.b16.cont [2/8] 0, 128
      %1144 = vxpose.xlu0.c.b16.cont [3/8] 0, 128
      %1145 = vxpose.xlu0.c.b16.cont [4/8] 0, 128
      %1146 = vxpose.xlu0.c.b16.cont [5/8] 0, 128
      %1147 = vxpose.xlu0.c.b16.cont [6/8] 0, 128
      %1148 = vxpose.xlu0.c.b16.cont [7/8] 0, 128
      %1149 = vxpose.xlu0.c.b16.end [8/8] 0, 128
      %v1150 = vpop.trf.xlu0
      %v1151 = vpop.trf.xlu0
      %v1152 = vpop.trf.xlu0
      %v1153 = vpop.trf.xlu0
      %v1154 = vpop.trf.xlu0
      %v1155 = vpop.trf.xlu0
      %v1156 = vpop.trf.xlu0
      %v1157 = vpop.trf.xlu0
      %1158 = vxpose.xlu0.c.b16.start [1/8] %v992, 128
      %1159 = vxpose.xlu0.c.b16.cont [2/8] 0, 128
      %1160 = vxpose.xlu0.c.b16.cont [3/8] 0, 128
      %1161 = vxpose.xlu0.c.b16.cont [4/8] 0, 128
      %1162 = vxpose.xlu0.c.b16.cont [5/8] 0, 128
      %1163 = vxpose.xlu0.c.b16.cont [6/8] 0, 128
      %1164 = vxpose.xlu0.c.b16.cont [7/8] 0, 128
      %1165 = vxpose.xlu0.c.b16.end [8/8] 0, 128
      %v1166 = vpop.trf.xlu0
      %v1167 = vpop.trf.xlu0
      %v1168 = vpop.trf.xlu0
      %v1169 = vpop.trf.xlu0
      %v1170 = vpop.trf.xlu0
      %v1171 = vpop.trf.xlu0
      %v1172 = vpop.trf.xlu0
      %v1173 = vpop.trf.xlu0
      %1174 = vxpose.xlu0.c.b16.start [1/8] %v993, 128
      %1175 = vxpose.xlu0.c.b16.cont [2/8] 0, 128
      %1176 = vxpose.xlu0.c.b16.cont [3/8] 0, 128
      %1177 = vxpose.xlu0.c.b16.cont [4/8] 0, 128
      %1178 = vxpose.xlu0.c.b16.cont [5/8] 0, 128
      %1179 = vxpose.xlu0.c.b16.cont [6/8] 0, 128
      %1180 = vxpose.xlu0.c.b16.cont [7/8] 0, 128
      %1181 = vxpose.xlu0.c.b16.end [8/8] 0, 128
      %v1182 = vpop.trf.xlu0
      %v1183 = vpop.trf.xlu0
      %v1184 = vpop.trf.xlu0
      %v1185 = vpop.trf.xlu0
      %v1186 = vpop.trf.xlu0
      %v1187 = vpop.trf.xlu0
      %v1188 = vpop.trf.xlu0
      %v1189 = vpop.trf.xlu0
      %v1190 = vcombine.low %v1070, %v1134
      %v1192 = vunpack.c.l.s4 1983009808
      %v1193 = vunpack.c.0.s8 %v1192
      %v1194 = vlaneseq
      %v1195 = vshrl.u32 %v1194, 7
      %v1196 = vsub.s32 %v1193, %v1195
      %v1197 = vrot.slane %v1190, %v1196
      %v1198 = vcombine.low %v1102, %v1166
      %v1200 = vunpack.c.l.s4 1983009808
      %v1201 = vunpack.c.0.s8 %v1200
      %v1202 = vlaneseq
      %v1203 = vshrl.u32 %v1202, 7
      %v1204 = vsub.s32 %v1201, %v1203
      %v1205 = vrot.slane %v1198, %v1204
      %v1206 = vcombine.low %v1197, %v1205
      %v1207 = vcombine.high %v1197, %v1205
      %v1209 = vunpack.c.l.s4 1934713408
      %v1210 = vunpack.c.0.s8 %v1209
      %v1211 = vlaneseq
      %v1212 = vshrl.u32 %v1211, 7
      %v1213 = vsub.s32 %v1210, %v1212
      %v1214 = vrot.slane %v1206, %v1213
      %v1216 = vunpack.c.l.s4 1934713408
      %v1217 = vunpack.c.0.s8 %v1216
      %v1218 = vlaneseq
      %v1219 = vshrl.u32 %v1218, 7
      %v1220 = vsub.s32 %v1217, %v1219
      %v1221 = vrot.slane %v1207, %v1220
      %v1222 = vcombine.high %v1214, 0
      %v1223 = vcombine.high %v1221, 0
      %v1224 = vcombine.low %v1086, %v1150
      %v1226 = vunpack.c.l.s4 1983009808
      %v1227 = vunpack.c.0.s8 %v1226
      %v1228 = vlaneseq
      %v1229 = vshrl.u32 %v1228, 7
      %v1230 = vsub.s32 %v1227, %v1229
      %v1231 = vrot.slane %v1224, %v1230
      %v1232 = vcombine.low %v1118, %v1182
      %v1234 = vunpack.c.l.s4 1983009808
      %v1235 = vunpack.c.0.s8 %v1234
      %v1236 = vlaneseq
      %v1237 = vshrl.u32 %v1236, 7
      %v1238 = vsub.s32 %v1235, %v1237
      %v1239 = vrot.slane %v1232, %v1238
      %v1240 = vcombine.low %v1231, %v1239
      %v1241 = vcombine.high %v1231, %v1239
      %v1243 = vunpack.c.l.s4 1934713408
      %v1244 = vunpack.c.0.s8 %v1243
      %v1245 = vlaneseq
      %v1246 = vshrl.u32 %v1245, 7
      %v1247 = vsub.s32 %v1244, %v1246
      %v1248 = vrot.slane %v1240, %v1247
      %v1250 = vunpack.c.l.s4 1934713408
      %v1251 = vunpack.c.0.s8 %v1250
      %v1252 = vlaneseq
      %v1253 = vshrl.u32 %v1252, 7
      %v1254 = vsub.s32 %v1251, %v1253
      %v1255 = vrot.slane %v1241, %v1254
      %v1256 = vcombine.high %v1248, 0
      %v1257 = vcombine.high %v1255, 0
      %v1260 = vpack.i.b16 %v1248, %v1214
      %v1262 = vshrl.u32 %v1214, 16
      %v1263 = vshrl.u32 %v1248, 16
      %v1264 = vpack.i.b16 %v1263, %v1262
      %v1268 = vpack.i.b16 %v1256, %v1222
      %v1270 = vshrl.u32 %v1222, 16
      %v1271 = vshrl.u32 %v1256, 16
      %v1272 = vpack.i.b16 %v1271, %v1270
      %v1276 = vpack.i.b16 %v1255, %v1221
      %v1278 = vshrl.u32 %v1221, 16
      %v1279 = vshrl.u32 %v1255, 16
      %v1280 = vpack.i.b16 %v1279, %v1278
      %v1284 = vpack.i.b16 %v1257, %v1223
      %v1286 = vshrl.u32 %v1223, 16
      %v1287 = vshrl.u32 %v1257, 16
      %v1288 = vpack.i.b16 %v1287, %v1286
      %1290 = vxpose.xlu0.c.b16.start [1/8] %v1260, 128
      %1291 = vxpose.xlu0.c.b16.cont [2/8] 0, 128
      %1292 = vxpose.xlu0.c.b16.cont [3/8] 0, 128
      %1293 = vxpose.xlu0.c.b16.cont [4/8] 0, 128
      %1294 = vxpose.xlu0.c.b16.cont [5/8] 0, 128
      %1295 = vxpose.xlu0.c.b16.cont [6/8] 0, 128
      %1296 = vxpose.xlu0.c.b16.cont [7/8] 0, 128
      %1297 = vxpose.xlu0.c.b16.end [8/8] 0, 128
      %v1298 = vpop.trf.xlu0
      %v1299 = vpop.trf.xlu0
      %v1300 = vpop.trf.xlu0
      %v1301 = vpop.trf.xlu0
      %v1302 = vpop.trf.xlu0
      %v1303 = vpop.trf.xlu0
      %v1304 = vpop.trf.xlu0
      %v1305 = vpop.trf.xlu0
      %1306 = vxpose.xlu0.c.b16.start [1/8] %v1264, 128
      %1307 = vxpose.xlu0.c.b16.cont [2/8] 0, 128
      %1308 = vxpose.xlu0.c.b16.cont [3/8] 0, 128
      %1309 = vxpose.xlu0.c.b16.cont [4/8] 0, 128
      %1310 = vxpose.xlu0.c.b16.cont [5/8] 0, 128
      %1311 = vxpose.xlu0.c.b16.cont [6/8] 0, 128
      %1312 = vxpose.xlu0.c.b16.cont [7/8] 0, 128
      %1313 = vxpose.xlu0.c.b16.end [8/8] 0, 128
      %v1314 = vpop.trf.xlu0
      %v1315 = vpop.trf.xlu0
      %v1316 = vpop.trf.xlu0
      %v1317 = vpop.trf.xlu0
      %v1318 = vpop.trf.xlu0
      %v1319 = vpop.trf.xlu0
      %v1320 = vpop.trf.xlu0
      %v1321 = vpop.trf.xlu0
      %1322 = vxpose.xlu0.c.b16.start [1/8] %v1268, 128
      %1323 = vxpose.xlu0.c.b16.cont [2/8] 0, 128
      %1324 = vxpose.xlu0.c.b16.cont [3/8] 0, 128
      %1325 = vxpose.xlu0.c.b16.cont [4/8] 0, 128
      %1326 = vxpose.xlu0.c.b16.cont [5/8] 0, 128
      %1327 = vxpose.xlu0.c.b16.cont [6/8] 0, 128
      %1328 = vxpose.xlu0.c.b16.cont [7/8] 0, 128
      %1329 = vxpose.xlu0.c.b16.end [8/8] 0, 128
      %v1330 = vpop.trf.xlu0
      %v1331 = vpop.trf.xlu0
      %v1332 = vpop.trf.xlu0
      %v1333 = vpop.trf.xlu0
      %v1334 = vpop.trf.xlu0
      %v1335 = vpop.trf.xlu0
      %v1336 = vpop.trf.xlu0
      %v1337 = vpop.trf.xlu0
      %1338 = vxpose.xlu0.c.b16.start [1/8] %v1272, 128
      %1339 = vxpose.xlu0.c.b16.cont [2/8] 0, 128
      %1340 = vxpose.xlu0.c.b16.cont [3/8] 0, 128
      %1341 = vxpose.xlu0.c.b16.cont [4/8] 0, 128
      %1342 = vxpose.xlu0.c.b16.cont [5/8] 0, 128
      %1343 = vxpose.xlu0.c.b16.cont [6/8] 0, 128
      %1344 = vxpose.xlu0.c.b16.cont [7/8] 0, 128
      %1345 = vxpose.xlu0.c.b16.end [8/8] 0, 128
      %v1346 = vpop.trf.xlu0
      %v1347 = vpop.trf.xlu0
      %v1348 = vpop.trf.xlu0
      %v1349 = vpop.trf.xlu0
      %v1350 = vpop.trf.xlu0
      %v1351 = vpop.trf.xlu0
      %v1352 = vpop.trf.xlu0
      %v1353 = vpop.trf.xlu0
      %1354 = vxpose.xlu0.c.b16.start [1/8] %v1276, 128
      %1355 = vxpose.xlu0.c.b16.cont [2/8] 0, 128
      %1356 = vxpose.xlu0.c.b16.cont [3/8] 0, 128
      %1357 = vxpose.xlu0.c.b16.cont [4/8] 0, 128
      %1358 = vxpose.xlu0.c.b16.cont [5/8] 0, 128
      %1359 = vxpose.xlu0.c.b16.cont [6/8] 0, 128
      %1360 = vxpose.xlu0.c.b16.cont [7/8] 0, 128
      %1361 = vxpose.xlu0.c.b16.end [8/8] 0, 128
      %v1362 = vpop.trf.xlu0
      %v1363 = vpop.trf.xlu0
      %v1364 = vpop.trf.xlu0
      %v1365 = vpop.trf.xlu0
      %v1366 = vpop.trf.xlu0
      %v1367 = vpop.trf.xlu0
      %v1368 = vpop.trf.xlu0
      %v1369 = vpop.trf.xlu0
      %1370 = vxpose.xlu0.c.b16.start [1/8] %v1280, 128
      %1371 = vxpose.xlu0.c.b16.cont [2/8] 0, 128
      %1372 = vxpose.xlu0.c.b16.cont [3/8] 0, 128
      %1373 = vxpose.xlu0.c.b16.cont [4/8] 0, 128
      %1374 = vxpose.xlu0.c.b16.cont [5/8] 0, 128
      %1375 = vxpose.xlu0.c.b16.cont [6/8] 0, 128
      %1376 = vxpose.xlu0.c.b16.cont [7/8] 0, 128
      %1377 = vxpose.xlu0.c.b16.end [8/8] 0, 128
      %v1378 = vpop.trf.xlu0
      %v1379 = vpop.trf.xlu0
      %v1380 = vpop.trf.xlu0
      %v1381 = vpop.trf.xlu0
      %v1382 = vpop.trf.xlu0
      %v1383 = vpop.trf.xlu0
      %v1384 = vpop.trf.xlu0
      %v1385 = vpop.trf.xlu0
      %1386 = vxpose.xlu0.c.b16.start [1/8] %v1284, 128
      %1387 = vxpose.xlu0.c.b16.cont [2/8] 0, 128
      %1388 = vxpose.xlu0.c.b16.cont [3/8] 0, 128
      %1389 = vxpose.xlu0.c.b16.cont [4/8] 0, 128
      %1390 = vxpose.xlu0.c.b16.cont [5/8] 0, 128
      %1391 = vxpose.xlu0.c.b16.cont [6/8] 0, 128
      %1392 = vxpose.xlu0.c.b16.cont [7/8] 0, 128
      %1393 = vxpose.xlu0.c.b16.end [8/8] 0, 128
      %v1394 = vpop.trf.xlu0
      %v1395 = vpop.trf.xlu0
      %v1396 = vpop.trf.xlu0
      %v1397 = vpop.trf.xlu0
      %v1398 = vpop.trf.xlu0
      %v1399 = vpop.trf.xlu0
      %v1400 = vpop.trf.xlu0
      %v1401 = vpop.trf.xlu0
      %1402 = vxpose.xlu0.c.b16.start [1/8] %v1288, 128
      %1403 = vxpose.xlu0.c.b16.cont [2/8] 0, 128
      %1404 = vxpose.xlu0.c.b16.cont [3/8] 0, 128
      %1405 = vxpose.xlu0.c.b16.cont [4/8] 0, 128
      %1406 = vxpose.xlu0.c.b16.cont [5/8] 0, 128
      %1407 = vxpose.xlu0.c.b16.cont [6/8] 0, 128
      %1408 = vxpose.xlu0.c.b16.cont [7/8] 0, 128
      %1409 = vxpose.xlu0.c.b16.end [8/8] 0, 128
      %v1410 = vpop.trf.xlu0
      %v1411 = vpop.trf.xlu0
      %v1412 = vpop.trf.xlu0
      %v1413 = vpop.trf.xlu0
      %v1414 = vpop.trf.xlu0
      %v1415 = vpop.trf.xlu0
      %v1416 = vpop.trf.xlu0
      %v1417 = vpop.trf.xlu0
      %v1418 = vcombine.low %v1298, %v1362
      %v1420 = vunpack.c.l.s4 1983009808
      %v1421 = vunpack.c.0.s8 %v1420
      %v1422 = vlaneseq
      %v1423 = vshrl.u32 %v1422, 7
      %v1424 = vsub.s32 %v1421, %v1423
      %v1425 = vrot.slane %v1418, %v1424
      %v1426 = vcombine.low %v1330, %v1394
      %v1428 = vunpack.c.l.s4 1983009808
      %v1429 = vunpack.c.0.s8 %v1428
      %v1430 = vlaneseq
      %v1431 = vshrl.u32 %v1430, 7
      %v1432 = vsub.s32 %v1429, %v1431
      %v1433 = vrot.slane %v1426, %v1432
      %v1434 = vcombine.low %v1425, %v1433
      %v1436 = vunpack.c.l.s4 1934713408
      %v1437 = vunpack.c.0.s8 %v1436
      %v1438 = vlaneseq
      %v1439 = vshrl.u32 %v1438, 7
      %v1440 = vsub.s32 %v1437, %v1439
      %v1441 = vrot.slane %v1434, %v1440
      %v1442 = vcombine.high %v1441, 0
      %v1443 = vcombine.low %v1314, %v1378
      %v1445 = vunpack.c.l.s4 1983009808
      %v1446 = vunpack.c.0.s8 %v1445
      %v1447 = vlaneseq
      %v1448 = vshrl.u32 %v1447, 7
      %v1449 = vsub.s32 %v1446, %v1448
      %v1450 = vrot.slane %v1443, %v1449
      %v1451 = vcombine.low %v1346, %v1410
      %v1453 = vunpack.c.l.s4 1983009808
      %v1454 = vunpack.c.0.s8 %v1453
      %v1455 = vlaneseq
      %v1456 = vshrl.u32 %v1455, 7
      %v1457 = vsub.s32 %v1454, %v1456
      %v1458 = vrot.slane %v1451, %v1457
      %v1459 = vcombine.low %v1450, %v1458
      %v1461 = vunpack.c.l.s4 1934713408
      %v1462 = vunpack.c.0.s8 %v1461
      %v1463 = vlaneseq
      %v1464 = vshrl.u32 %v1463, 7
      %v1465 = vsub.s32 %v1462, %v1464
      %v1466 = vrot.slane %v1459, %v1465
      %v1467 = vcombine.high %v1466, 0
      %v1470 = vpack.i.b16 %v1466, %v1441
      %v1471 = vshrl.u32 %v1441, 16
      %v1472 = vshrl.u32 %v1466, 16
      %v1473 = vpack.i.b16 %v1472, %v1471
      %v1476 = vpack.i.b16 %v1467, %v1442
      %v1477 = vshrl.u32 %v1442, 16
      %v1478 = vshrl.u32 %v1467, 16
      %v1479 = vpack.i.b16 %v1478, %v1477
      %vm1480 = vcmask 64512
      %v1482 = vsel %vm1480, %v1052, 0
      %vm1484 = vcmask 1043456
      %v1486 = vsel %vm1484, %v1470, 0
      %1488 = vmatprep.subr.bf16.mxu0 0
      %1489 = vmatpush1.bf16.msra.mxu0 0
      %1490 = vmatprep.subr.bf16.mxu0 0
      %1491 = vmatpush1.bf16.msra.mxu0 0
      %1492 = vmatprep.subr.bf16.mxu0 0
      %1493 = vmatpush1.bf16.msra.mxu0 0
      %1494 = vmatprep.subr.bf16.mxu0 0
      %1495 = vmatpush1.bf16.msra.mxu0 0
      %1496 = vmatprep.subr.bf16.mxu0 0
      %1497 = vmatpush1.bf16.msra.mxu0 0
      %1498 = vmatprep.subr.bf16.mxu0 0
      %1499 = vmatpush1.bf16.msra.mxu0 0
      %1500 = vmatprep.subr.bf16.mxu0 0
      %1501 = vmatpush1.bf16.msra.mxu0 0
      %1502 = vmatprep.subr.bf16.mxu0 0
      %1503 = vmatpush1.bf16.msra.mxu0 %v1486
      %1504 = vmatprep.subr.bf16.mxu0 0
      %1505 = vmatpush2.bf16.msra.mxu0 0
      %1506 = vmatprep.subr.bf16.mxu0 0
      %1507 = vmatpush2.bf16.msra.mxu0 0
      %1508 = vmatprep.subr.bf16.mxu0 0
      %1509 = vmatpush2.bf16.msra.mxu0 0
      %1510 = vmatprep.subr.bf16.mxu0 0
      %1511 = vmatpush2.bf16.msra.mxu0 0
      %1512 = vmatprep.subr.bf16.mxu0 0
      %1513 = vmatpush2.bf16.msra.mxu0 0
      %1514 = vmatprep.subr.bf16.mxu0 0
      %1515 = vmatpush2.bf16.msra.mxu0 0
      %1516 = vmatprep.subr.bf16.mxu0 0
      %1517 = vmatpush2.bf16.msra.mxu0 0
      %1518 = vmatprep.subr.bf16.mxu0 0
      %1519 = vmatpush2.bf16.msra.mxu0 0
      %1520 = vmatprep.mubr.bf16.mxu0 0
      %1521 = vmatmul.mubr.bf16.gmra.mxu0 %v1482
      %v1522 = vpop.f32.mrf.mxu0
      %v1523 = vadd.f32 %v998, %v1522
      %v1524 = vpop.f32.mrf.mxu0
      %v1525 = vpop.f32.mrf.mxu0
      %v1526 = vpop.f32.mrf.mxu0
      %1527 = vdwg.mxu0
      %v1529 = vsel %vm1480, %v1055, 0
      %v1532 = vsel %vm1484, %v1473, 0
      %1534 = vmatprep.subr.bf16.mxu0 0
      %1535 = vmatpush1.bf16.msra.mxu0 0
      %1536 = vmatprep.subr.bf16.mxu0 0
      %1537 = vmatpush1.bf16.msra.mxu0 0
      %1538 = vmatprep.subr.bf16.mxu0 0
      %1539 = vmatpush1.bf16.msra.mxu0 0
      %1540 = vmatprep.subr.bf16.mxu0 0
      %1541 = vmatpush1.bf16.msra.mxu0 0
      %1542 = vmatprep.subr.bf16.mxu0 0
      %1543 = vmatpush1.bf16.msra.mxu0 0
      %1544 = vmatprep.subr.bf16.mxu0 0
      %1545 = vmatpush1.bf16.msra.mxu0 0
      %1546 = vmatprep.subr.bf16.mxu0 0
      %1547 = vmatpush1.bf16.msra.mxu0 0
      %1548 = vmatprep.subr.bf16.mxu0 0
      %1549 = vmatpush1.bf16.msra.mxu0 %v1532
      %1550 = vmatprep.subr.bf16.mxu0 0
      %1551 = vmatpush2.bf16.msra.mxu0 0
      %1552 = vmatprep.subr.bf16.mxu0 0
      %1553 = vmatpush2.bf16.msra.mxu0 0
      %1554 = vmatprep.subr.bf16.mxu0 0
      %1555 = vmatpush2.bf16.msra.mxu0 0
      %1556 = vmatprep.subr.bf16.mxu0 0
      %1557 = vmatpush2.bf16.msra.mxu0 0
      %1558 = vmatprep.subr.bf16.mxu0 0
      %1559 = vmatpush2.bf16.msra.mxu0 0
      %1560 = vmatprep.subr.bf16.mxu0 0
      %1561 = vmatpush2.bf16.msra.mxu0 0
      %1562 = vmatprep.subr.bf16.mxu0 0
      %1563 = vmatpush2.bf16.msra.mxu0 0
      %1564 = vmatprep.subr.bf16.mxu0 0
      %1565 = vmatpush2.bf16.msra.mxu0 0
      %1566 = vmatprep.mubr.bf16.mxu0 0
      %1567 = vmatmul.mubr.bf16.gmra.mxu0 %v1529
      %v1568 = vpop.f32.mrf.mxu0
      %v1569 = vadd.f32 %v998, %v1568
      %v1570 = vpop.f32.mrf.mxu0
      %v1571 = vpop.f32.mrf.mxu0
      %v1572 = vpop.f32.mrf.mxu0
      %1573 = vdwg.mxu0
      %v1575 = vsel %vm1480, %v1058, 0
      %v1578 = vsel %vm1484, %v1476, 0
      %1580 = vmatprep.subr.bf16.mxu0 0
      %1581 = vmatpush1.bf16.msra.mxu0 0
      %1582 = vmatprep.subr.bf16.mxu0 0
      %1583 = vmatpush1.bf16.msra.mxu0 0
      %1584 = vmatprep.subr.bf16.mxu0 0
      %1585 = vmatpush1.bf16.msra.mxu0 0
      %1586 = vmatprep.subr.bf16.mxu0 0
      %1587 = vmatpush1.bf16.msra.mxu0 0
      %1588 = vmatprep.subr.bf16.mxu0 0
      %1589 = vmatpush1.bf16.msra.mxu0 0
      %1590 = vmatprep.subr.bf16.mxu0 0
      %1591 = vmatpush1.bf16.msra.mxu0 0
      %1592 = vmatprep.subr.bf16.mxu0 0
      %1593 = vmatpush1.bf16.msra.mxu0 0
      %1594 = vmatprep.subr.bf16.mxu0 0
      %1595 = vmatpush1.bf16.msra.mxu0 %v1578
      %1596 = vmatprep.subr.bf16.mxu0 0
      %1597 = vmatpush2.bf16.msra.mxu0 0
      %1598 = vmatprep.subr.bf16.mxu0 0
      %1599 = vmatpush2.bf16.msra.mxu0 0
      %1600 = vmatprep.subr.bf16.mxu0 0
      %1601 = vmatpush2.bf16.msra.mxu0 0
      %1602 = vmatprep.subr.bf16.mxu0 0
      %1603 = vmatpush2.bf16.msra.mxu0 0
      %1604 = vmatprep.subr.bf16.mxu0 0
      %1605 = vmatpush2.bf16.msra.mxu0 0
      %1606 = vmatprep.subr.bf16.mxu0 0
      %1607 = vmatpush2.bf16.msra.mxu0 0
      %1608 = vmatprep.subr.bf16.mxu0 0
      %1609 = vmatpush2.bf16.msra.mxu0 0
      %1610 = vmatprep.subr.bf16.mxu0 0
      %1611 = vmatpush2.bf16.msra.mxu0 0
      %1612 = vmatprep.mubr.bf16.mxu0 0
      %1613 = vmatmul.mubr.bf16.gmra.mxu0 %v1575
      %v1614 = vpop.f32.mrf.mxu0
      %v1615 = vadd.f32 %v998, %v1614
      %v1616 = vpop.f32.mrf.mxu0
      %v1617 = vpop.f32.mrf.mxu0
      %v1618 = vpop.f32.mrf.mxu0
      %1619 = vdwg.mxu0
      %v1621 = vsel %vm1480, %v1061, 0
      %v1624 = vsel %vm1484, %v1479, 0
      %1626 = vmatprep.subr.bf16.mxu0 0
      %1627 = vmatpush1.bf16.msra.mxu0 0
      %1628 = vmatprep.subr.bf16.mxu0 0
      %1629 = vmatpush1.bf16.msra.mxu0 0
      %1630 = vmatprep.subr.bf16.mxu0 0
      %1631 = vmatpush1.bf16.msra.mxu0 0
      %1632 = vmatprep.subr.bf16.mxu0 0
      %1633 = vmatpush1.bf16.msra.mxu0 0
      %1634 = vmatprep.subr.bf16.mxu0 0
      %1635 = vmatpush1.bf16.msra.mxu0 0
      %1636 = vmatprep.subr.bf16.mxu0 0
      %1637 = vmatpush1.bf16.msra.mxu0 0
      %1638 = vmatprep.subr.bf16.mxu0 0
      %1639 = vmatpush1.bf16.msra.mxu0 0
      %1640 = vmatprep.subr.bf16.mxu0 0
      %1641 = vmatpush1.bf16.msra.mxu0 %v1624
      %1642 = vmatprep.subr.bf16.mxu0 0
      %1643 = vmatpush2.bf16.msra.mxu0 0
      %1644 = vmatprep.subr.bf16.mxu0 0
      %1645 = vmatpush2.bf16.msra.mxu0 0
      %1646 = vmatprep.subr.bf16.mxu0 0
      %1647 = vmatpush2.bf16.msra.mxu0 0
      %1648 = vmatprep.subr.bf16.mxu0 0
      %1649 = vmatpush2.bf16.msra.mxu0 0
      %1650 = vmatprep.subr.bf16.mxu0 0
      %1651 = vmatpush2.bf16.msra.mxu0 0
      %1652 = vmatprep.subr.bf16.mxu0 0
      %1653 = vmatpush2.bf16.msra.mxu0 0
      %1654 = vmatprep.subr.bf16.mxu0 0
      %1655 = vmatpush2.bf16.msra.mxu0 0
      %1656 = vmatprep.subr.bf16.mxu0 0
      %1657 = vmatpush2.bf16.msra.mxu0 0
      %1658 = vmatprep.mubr.bf16.mxu0 0
      %1659 = vmatmul.mubr.bf16.gmra.mxu0 %v1621
      %v1660 = vpop.f32.mrf.mxu0
      %v1661 = vadd.f32 %v998, %v1660
      %v1662 = vpop.f32.mrf.mxu0
      %v1663 = vpop.f32.mrf.mxu0
      %v1664 = vpop.f32.mrf.mxu0
      %1665 = vdwg.mxu0
      %v1666 = vsel %vm1480, %v1523, -inf
      %1667 = vmax.xlane.f32.xlu0 %v1666
      %v1668 = vpop.xlane.xlu0 %1667
      %v1669 = vsel %vm1480, %v1569, -inf
      %1670 = vmax.xlane.f32.xlu0 %v1669
      %v1671 = vpop.xlane.xlu0 %1670
      %v1672 = vsel %vm1480, %v1615, -inf
      %1673 = vmax.xlane.f32.xlu0 %v1672
      %v1674 = vpop.xlane.xlu0 %1673
      %v1675 = vsel %vm1480, %v1661, -inf
      %1676 = vmax.xlane.f32.xlu0 %v1675
      %v1677 = vpop.xlane.xlu0 %1676
      %v1678 = vsub.f32 %v1523, %v1668
      %v1679 = vsub.f32 %v1569, %v1671
      %v1680 = vsub.f32 %v1615, %v1674
      %v1681 = vsub.f32 %v1661, %v1677
      %v1682 = vmul.f32 %v1678, 1.442695
      %v1683 = vpow.pop %v1682
      %v1684 = vmul.f32 %v1679, 1.442695
      %v1685 = vpow.pop %v1684
      %v1686 = vmul.f32 %v1680, 1.442695
      %v1687 = vpow.pop %v1686
      %v1688 = vmul.f32 %v1681, 1.442695
      %v1689 = vpow.pop %v1688
      %v1690 = vsel %vm1480, %v1683, 0.0
      %1691 = vadd.xlane.f32.xlu0 %v1690
      %v1692 = vpop.xlane.xlu0 %1691
      %v1693 = vsel %vm1480, %v1685, 0.0
      %1694 = vadd.xlane.f32.xlu0 %v1693
      %v1695 = vpop.xlane.xlu0 %1694
      %v1696 = vsel %vm1480, %v1687, 0.0
      %1697 = vadd.xlane.f32.xlu0 %v1696
      %v1698 = vpop.xlane.xlu0 %1697
      %v1699 = vsel %vm1480, %v1689, 0.0
      %1700 = vadd.xlane.f32.xlu0 %v1699
      %v1701 = vpop.xlane.xlu0 %1700
      %v1702 = vrcp.pop %v1692
      %v1703 = vrcp.pop %v1695
      %v1704 = vrcp.pop %v1698
      %v1705 = vrcp.pop %v1701
      %v1706 = vmul.f32 %v1683, %v1702
      %v1707 = vmul.f32 %v1685, %v1703
      %v1708 = vmul.f32 %v1687, %v1704
      %v1709 = vmul.f32 %v1689, %v1705
      %v1710 = vpack.c.bf16 %v1706, %v1706
      %v1711 = vpack.c.bf16 %v1707, %v1707
      %v1712 = vpack.c.bf16 %v1708, %v1708
      %v1713 = vpack.c.bf16 %v1709, %v1709
      %v1714 = vpack.c.bf16 %v950, %v950
      %v1715 = vpack.c.bf16 %v974, %v974
      %v1716 = vpack.c.bf16 %v957, %v957
      %v1717 = vpack.c.bf16 %v975, %v975
      %v1718 = vpack.c.bf16 %v966, %v966
      %v1719 = vpack.c.bf16 %v976, %v976
      %v1720 = vpack.c.bf16 %v973, %v973
      %v1721 = vpack.c.bf16 %v977, %v977
      %1722 = vxpose.xlu0.c.b16.start [1/8] %v1714, 128
      %1723 = vxpose.xlu0.c.b16.cont [2/8] 0, 128
      %1724 = vxpose.xlu0.c.b16.cont [3/8] 0, 128
      %1725 = vxpose.xlu0.c.b16.cont [4/8] 0, 128
      %1726 = vxpose.xlu0.c.b16.cont [5/8] 0, 128
      %1727 = vxpose.xlu0.c.b16.cont [6/8] 0, 128
      %1728 = vxpose.xlu0.c.b16.cont [7/8] 0, 128
      %1729 = vxpose.xlu0.c.b16.end [8/8] 0, 128
      %v1730 = vpop.trf.xlu0
      %v1731 = vpop.trf.xlu0
      %v1732 = vpop.trf.xlu0
      %v1733 = vpop.trf.xlu0
      %v1734 = vpop.trf.xlu0
      %v1735 = vpop.trf.xlu0
      %v1736 = vpop.trf.xlu0
      %v1737 = vpop.trf.xlu0
      %1738 = vxpose.xlu0.c.b16.start [1/8] %v1715, 128
      %1739 = vxpose.xlu0.c.b16.cont [2/8] 0, 128
      %1740 = vxpose.xlu0.c.b16.cont [3/8] 0, 128
      %1741 = vxpose.xlu0.c.b16.cont [4/8] 0, 128
      %1742 = vxpose.xlu0.c.b16.cont [5/8] 0, 128
      %1743 = vxpose.xlu0.c.b16.cont [6/8] 0, 128
      %1744 = vxpose.xlu0.c.b16.cont [7/8] 0, 128
      %1745 = vxpose.xlu0.c.b16.end [8/8] 0, 128
      %v1746 = vpop.trf.xlu0
      %v1747 = vpop.trf.xlu0
      %v1748 = vpop.trf.xlu0
      %v1749 = vpop.trf.xlu0
      %v1750 = vpop.trf.xlu0
      %v1751 = vpop.trf.xlu0
      %v1752 = vpop.trf.xlu0
      %v1753 = vpop.trf.xlu0
      %1754 = vxpose.xlu0.c.b16.start [1/8] %v1716, 128
      %1755 = vxpose.xlu0.c.b16.cont [2/8] 0, 128
      %1756 = vxpose.xlu0.c.b16.cont [3/8] 0, 128
      %1757 = vxpose.xlu0.c.b16.cont [4/8] 0, 128
      %1758 = vxpose.xlu0.c.b16.cont [5/8] 0, 128
      %1759 = vxpose.xlu0.c.b16.cont [6/8] 0, 128
      %1760 = vxpose.xlu0.c.b16.cont [7/8] 0, 128
      %1761 = vxpose.xlu0.c.b16.end [8/8] 0, 128
      %v1762 = vpop.trf.xlu0
      %v1763 = vpop.trf.xlu0
      %v1764 = vpop.trf.xlu0
      %v1765 = vpop.trf.xlu0
      %v1766 = vpop.trf.xlu0
      %v1767 = vpop.trf.xlu0
      %v1768 = vpop.trf.xlu0
      %v1769 = vpop.trf.xlu0
      %1770 = vxpose.xlu0.c.b16.start [1/8] %v1717, 128
      %1771 = vxpose.xlu0.c.b16.cont [2/8] 0, 128
      %1772 = vxpose.xlu0.c.b16.cont [3/8] 0, 128
      %1773 = vxpose.xlu0.c.b16.cont [4/8] 0, 128
      %1774 = vxpose.xlu0.c.b16.cont [5/8] 0, 128
      %1775 = vxpose.xlu0.c.b16.cont [6/8] 0, 128
      %1776 = vxpose.xlu0.c.b16.cont [7/8] 0, 128
      %1777 = vxpose.xlu0.c.b16.end [8/8] 0, 128
      %v1778 = vpop.trf.xlu0
      %v1779 = vpop.trf.xlu0
      %v1780 = vpop.trf.xlu0
      %v1781 = vpop.trf.xlu0
      %v1782 = vpop.trf.xlu0
      %v1783 = vpop.trf.xlu0
      %v1784 = vpop.trf.xlu0
      %v1785 = vpop.trf.xlu0
      %1786 = vxpose.xlu0.c.b16.start [1/8] %v1718, 128
      %1787 = vxpose.xlu0.c.b16.cont [2/8] 0, 128
      %1788 = vxpose.xlu0.c.b16.cont [3/8] 0, 128
      %1789 = vxpose.xlu0.c.b16.cont [4/8] 0, 128
      %1790 = vxpose.xlu0.c.b16.cont [5/8] 0, 128
      %1791 = vxpose.xlu0.c.b16.cont [6/8] 0, 128
      %1792 = vxpose.xlu0.c.b16.cont [7/8] 0, 128
      %1793 = vxpose.xlu0.c.b16.end [8/8] 0, 128
      %v1794 = vpop.trf.xlu0
      %v1795 = vpop.trf.xlu0
      %v1796 = vpop.trf.xlu0
      %v1797 = vpop.trf.xlu0
      %v1798 = vpop.trf.xlu0
      %v1799 = vpop.trf.xlu0
      %v1800 = vpop.trf.xlu0
      %v1801 = vpop.trf.xlu0
      %1802 = vxpose.xlu0.c.b16.start [1/8] %v1719, 128
      %1803 = vxpose.xlu0.c.b16.cont [2/8] 0, 128
      %1804 = vxpose.xlu0.c.b16.cont [3/8] 0, 128
      %1805 = vxpose.xlu0.c.b16.cont [4/8] 0, 128
      %1806 = vxpose.xlu0.c.b16.cont [5/8] 0, 128
      %1807 = vxpose.xlu0.c.b16.cont [6/8] 0, 128
      %1808 = vxpose.xlu0.c.b16.cont [7/8] 0, 128
      %1809 = vxpose.xlu0.c.b16.end [8/8] 0, 128
      %v1810 = vpop.trf.xlu0
      %v1811 = vpop.trf.xlu0
      %v1812 = vpop.trf.xlu0
      %v1813 = vpop.trf.xlu0
      %v1814 = vpop.trf.xlu0
      %v1815 = vpop.trf.xlu0
      %v1816 = vpop.trf.xlu0
      %v1817 = vpop.trf.xlu0
      %1818 = vxpose.xlu0.c.b16.start [1/8] %v1720, 128
      %1819 = vxpose.xlu0.c.b16.cont [2/8] 0, 128
      %1820 = vxpose.xlu0.c.b16.cont [3/8] 0, 128
      %1821 = vxpose.xlu0.c.b16.cont [4/8] 0, 128
      %1822 = vxpose.xlu0.c.b16.cont [5/8] 0, 128
      %1823 = vxpose.xlu0.c.b16.cont [6/8] 0, 128
      %1824 = vxpose.xlu0.c.b16.cont [7/8] 0, 128
      %1825 = vxpose.xlu0.c.b16.end [8/8] 0, 128
      %v1826 = vpop.trf.xlu0
      %v1827 = vpop.trf.xlu0
      %v1828 = vpop.trf.xlu0
      %v1829 = vpop.trf.xlu0
      %v1830 = vpop.trf.xlu0
      %v1831 = vpop.trf.xlu0
      %v1832 = vpop.trf.xlu0
      %v1833 = vpop.trf.xlu0
      %1834 = vxpose.xlu0.c.b16.start [1/8] %v1721, 128
      %1835 = vxpose.xlu0.c.b16.cont [2/8] 0, 128
      %1836 = vxpose.xlu0.c.b16.cont [3/8] 0, 128
      %1837 = vxpose.xlu0.c.b16.cont [4/8] 0, 128
      %1838 = vxpose.xlu0.c.b16.cont [5/8] 0, 128
      %1839 = vxpose.xlu0.c.b16.cont [6/8] 0, 128
      %1840 = vxpose.xlu0.c.b16.cont [7/8] 0, 128
      %1841 = vxpose.xlu0.c.b16.end [8/8] 0, 128
      %v1842 = vpop.trf.xlu0
      %v1843 = vpop.trf.xlu0
      %v1844 = vpop.trf.xlu0
      %v1845 = vpop.trf.xlu0
      %v1846 = vpop.trf.xlu0
      %v1847 = vpop.trf.xlu0
      %v1848 = vpop.trf.xlu0
      %v1849 = vpop.trf.xlu0
      %v1850 = vcombine.low %v1730, %v1794
      %v1852 = vunpack.c.l.s4 1983009808
      %v1853 = vunpack.c.0.s8 %v1852
      %v1854 = vlaneseq
      %v1855 = vshrl.u32 %v1854, 7
      %v1856 = vsub.s32 %v1853, %v1855
      %v1857 = vrot.slane %v1850, %v1856
      %v1858 = vcombine.low %v1762, %v1826
      %v1860 = vunpack.c.l.s4 1983009808
      %v1861 = vunpack.c.0.s8 %v1860
      %v1862 = vlaneseq
      %v1863 = vshrl.u32 %v1862, 7
      %v1864 = vsub.s32 %v1861, %v1863
      %v1865 = vrot.slane %v1858, %v1864
      %v1866 = vcombine.low %v1857, %v1865
      %v1867 = vcombine.high %v1857, %v1865
      %v1869 = vunpack.c.l.s4 1934713408
      %v1870 = vunpack.c.0.s8 %v1869
      %v1871 = vlaneseq
      %v1872 = vshrl.u32 %v1871, 7
      %v1873 = vsub.s32 %v1870, %v1872
      %v1874 = vrot.slane %v1866, %v1873
      %v1876 = vunpack.c.l.s4 1934713408
      %v1877 = vunpack.c.0.s8 %v1876
      %v1878 = vlaneseq
      %v1879 = vshrl.u32 %v1878, 7
      %v1880 = vsub.s32 %v1877, %v1879
      %v1881 = vrot.slane %v1867, %v1880
      %v1882 = vcombine.high %v1874, 0
      %v1883 = vcombine.high %v1881, 0
      %v1884 = vcombine.low %v1746, %v1810
      %v1886 = vunpack.c.l.s4 1983009808
      %v1887 = vunpack.c.0.s8 %v1886
      %v1888 = vlaneseq
      %v1889 = vshrl.u32 %v1888, 7
      %v1890 = vsub.s32 %v1887, %v1889
      %v1891 = vrot.slane %v1884, %v1890
      %v1892 = vcombine.low %v1778, %v1842
      %v1894 = vunpack.c.l.s4 1983009808
      %v1895 = vunpack.c.0.s8 %v1894
      %v1896 = vlaneseq
      %v1897 = vshrl.u32 %v1896, 7
      %v1898 = vsub.s32 %v1895, %v1897
      %v1899 = vrot.slane %v1892, %v1898
      %v1900 = vcombine.low %v1891, %v1899
      %v1901 = vcombine.high %v1891, %v1899
      %v1903 = vunpack.c.l.s4 1934713408
      %v1904 = vunpack.c.0.s8 %v1903
      %v1905 = vlaneseq
      %v1906 = vshrl.u32 %v1905, 7
      %v1907 = vsub.s32 %v1904, %v1906
      %v1908 = vrot.slane %v1900, %v1907
      %v1910 = vunpack.c.l.s4 1934713408
      %v1911 = vunpack.c.0.s8 %v1910
      %v1912 = vlaneseq
      %v1913 = vshrl.u32 %v1912, 7
      %v1914 = vsub.s32 %v1911, %v1913
      %v1915 = vrot.slane %v1901, %v1914
      %v1916 = vcombine.high %v1908, 0
      %v1917 = vcombine.high %v1915, 0
      %v1920 = vpack.i.b16 %v1908, %v1874
      %v1922 = vshrl.u32 %v1874, 16
      %v1923 = vshrl.u32 %v1908, 16
      %v1924 = vpack.i.b16 %v1923, %v1922
      %v1928 = vpack.i.b16 %v1916, %v1882
      %v1930 = vshrl.u32 %v1882, 16
      %v1931 = vshrl.u32 %v1916, 16
      %v1932 = vpack.i.b16 %v1931, %v1930
      %v1936 = vpack.i.b16 %v1915, %v1881
      %v1938 = vshrl.u32 %v1881, 16
      %v1939 = vshrl.u32 %v1915, 16
      %v1940 = vpack.i.b16 %v1939, %v1938
      %v1944 = vpack.i.b16 %v1917, %v1883
      %v1946 = vshrl.u32 %v1883, 16
      %v1947 = vshrl.u32 %v1917, 16
      %v1948 = vpack.i.b16 %v1947, %v1946
      %1950 = vxpose.xlu0.c.b16.start [1/8] %v1920, 128
      %1951 = vxpose.xlu0.c.b16.cont [2/8] 0, 128
      %1952 = vxpose.xlu0.c.b16.cont [3/8] 0, 128
      %1953 = vxpose.xlu0.c.b16.cont [4/8] 0, 128
      %1954 = vxpose.xlu0.c.b16.cont [5/8] 0, 128
      %1955 = vxpose.xlu0.c.b16.cont [6/8] 0, 128
      %1956 = vxpose.xlu0.c.b16.cont [7/8] 0, 128
      %1957 = vxpose.xlu0.c.b16.end [8/8] 0, 128
      %v1958 = vpop.trf.xlu0
      %v1959 = vpop.trf.xlu0
      %v1960 = vpop.trf.xlu0
      %v1961 = vpop.trf.xlu0
      %v1962 = vpop.trf.xlu0
      %v1963 = vpop.trf.xlu0
      %v1964 = vpop.trf.xlu0
      %v1965 = vpop.trf.xlu0
      %1966 = vxpose.xlu0.c.b16.start [1/8] %v1924, 128
      %1967 = vxpose.xlu0.c.b16.cont [2/8] 0, 128
      %1968 = vxpose.xlu0.c.b16.cont [3/8] 0, 128
      %1969 = vxpose.xlu0.c.b16.cont [4/8] 0, 128
      %1970 = vxpose.xlu0.c.b16.cont [5/8] 0, 128
      %1971 = vxpose.xlu0.c.b16.cont [6/8] 0, 128
      %1972 = vxpose.xlu0.c.b16.cont [7/8] 0, 128
      %1973 = vxpose.xlu0.c.b16.end [8/8] 0, 128
      %v1974 = vpop.trf.xlu0
      %v1975 = vpop.trf.xlu0
      %v1976 = vpop.trf.xlu0
      %v1977 = vpop.trf.xlu0
      %v1978 = vpop.trf.xlu0
      %v1979 = vpop.trf.xlu0
      %v1980 = vpop.trf.xlu0
      %v1981 = vpop.trf.xlu0
      %1982 = vxpose.xlu0.c.b16.start [1/8] %v1928, 128
      %1983 = vxpose.xlu0.c.b16.cont [2/8] 0, 128
      %1984 = vxpose.xlu0.c.b16.cont [3/8] 0, 128
      %1985 = vxpose.xlu0.c.b16.cont [4/8] 0, 128
      %1986 = vxpose.xlu0.c.b16.cont [5/8] 0, 128
      %1987 = vxpose.xlu0.c.b16.cont [6/8] 0, 128
      %1988 = vxpose.xlu0.c.b16.cont [7/8] 0, 128
      %1989 = vxpose.xlu0.c.b16.end [8/8] 0, 128
      %v1990 = vpop.trf.xlu0
      %v1991 = vpop.trf.xlu0
      %v1992 = vpop.trf.xlu0
      %v1993 = vpop.trf.xlu0
      %v1994 = vpop.trf.xlu0
      %v1995 = vpop.trf.xlu0
      %v1996 = vpop.trf.xlu0
      %v1997 = vpop.trf.xlu0
      %1998 = vxpose.xlu0.c.b16.start [1/8] %v1932, 128
      %1999 = vxpose.xlu0.c.b16.cont [2/8] 0, 128
      %2000 = vxpose.xlu0.c.b16.cont [3/8] 0, 128
      %2001 = vxpose.xlu0.c.b16.cont [4/8] 0, 128
      %2002 = vxpose.xlu0.c.b16.cont [5/8] 0, 128
      %2003 = vxpose.xlu0.c.b16.cont [6/8] 0, 128
      %2004 = vxpose.xlu0.c.b16.cont [7/8] 0, 128
      %2005 = vxpose.xlu0.c.b16.end [8/8] 0, 128
      %v2006 = vpop.trf.xlu0
      %v2007 = vpop.trf.xlu0
      %v2008 = vpop.trf.xlu0
      %v2009 = vpop.trf.xlu0
      %v2010 = vpop.trf.xlu0
      %v2011 = vpop.trf.xlu0
      %v2012 = vpop.trf.xlu0
      %v2013 = vpop.trf.xlu0
      %2014 = vxpose.xlu0.c.b16.start [1/8] %v1936, 128
      %2015 = vxpose.xlu0.c.b16.cont [2/8] 0, 128
      %2016 = vxpose.xlu0.c.b16.cont [3/8] 0, 128
      %2017 = vxpose.xlu0.c.b16.cont [4/8] 0, 128
      %2018 = vxpose.xlu0.c.b16.cont [5/8] 0, 128
      %2019 = vxpose.xlu0.c.b16.cont [6/8] 0, 128
      %2020 = vxpose.xlu0.c.b16.cont [7/8] 0, 128
      %2021 = vxpose.xlu0.c.b16.end [8/8] 0, 128
      %v2022 = vpop.trf.xlu0
      %v2023 = vpop.trf.xlu0
      %v2024 = vpop.trf.xlu0
      %v2025 = vpop.trf.xlu0
      %v2026 = vpop.trf.xlu0
      %v2027 = vpop.trf.xlu0
      %v2028 = vpop.trf.xlu0
      %v2029 = vpop.trf.xlu0
      %2030 = vxpose.xlu0.c.b16.start [1/8] %v1940, 128
      %2031 = vxpose.xlu0.c.b16.cont [2/8] 0, 128
      %2032 = vxpose.xlu0.c.b16.cont [3/8] 0, 128
      %2033 = vxpose.xlu0.c.b16.cont [4/8] 0, 128
      %2034 = vxpose.xlu0.c.b16.cont [5/8] 0, 128
      %2035 = vxpose.xlu0.c.b16.cont [6/8] 0, 128
      %2036 = vxpose.xlu0.c.b16.cont [7/8] 0, 128
      %2037 = vxpose.xlu0.c.b16.end [8/8] 0, 128
      %v2038 = vpop.trf.xlu0
      %v2039 = vpop.trf.xlu0
      %v2040 = vpop.trf.xlu0
      %v2041 = vpop.trf.xlu0
      %v2042 = vpop.trf.xlu0
      %v2043 = vpop.trf.xlu0
      %v2044 = vpop.trf.xlu0
      %v2045 = vpop.trf.xlu0
      %2046 = vxpose.xlu0.c.b16.start [1/8] %v1944, 128
      %2047 = vxpose.xlu0.c.b16.cont [2/8] 0, 128
      %2048 = vxpose.xlu0.c.b16.cont [3/8] 0, 128
      %2049 = vxpose.xlu0.c.b16.cont [4/8] 0, 128
      %2050 = vxpose.xlu0.c.b16.cont [5/8] 0, 128
      %2051 = vxpose.xlu0.c.b16.cont [6/8] 0, 128
      %2052 = vxpose.xlu0.c.b16.cont [7/8] 0, 128
      %2053 = vxpose.xlu0.c.b16.end [8/8] 0, 128
      %v2054 = vpop.trf.xlu0
      %v2055 = vpop.trf.xlu0
      %v2056 = vpop.trf.xlu0
      %v2057 = vpop.trf.xlu0
      %v2058 = vpop.trf.xlu0
      %v2059 = vpop.trf.xlu0
      %v2060 = vpop.trf.xlu0
      %v2061 = vpop.trf.xlu0
      %2062 = vxpose.xlu0.c.b16.start [1/8] %v1948, 128
      %2063 = vxpose.xlu0.c.b16.cont [2/8] 0, 128
      %2064 = vxpose.xlu0.c.b16.cont [3/8] 0, 128
      %2065 = vxpose.xlu0.c.b16.cont [4/8] 0, 128
      %2066 = vxpose.xlu0.c.b16.cont [5/8] 0, 128
      %2067 = vxpose.xlu0.c.b16.cont [6/8] 0, 128
      %2068 = vxpose.xlu0.c.b16.cont [7/8] 0, 128
      %2069 = vxpose.xlu0.c.b16.end [8/8] 0, 128
      %v2070 = vpop.trf.xlu0
      %v2071 = vpop.trf.xlu0
      %v2072 = vpop.trf.xlu0
      %v2073 = vpop.trf.xlu0
      %v2074 = vpop.trf.xlu0
      %v2075 = vpop.trf.xlu0
      %v2076 = vpop.trf.xlu0
      %v2077 = vpop.trf.xlu0
      %v2078 = vcombine.low %v1958, %v2022
      %v2080 = vunpack.c.l.s4 1983009808
      %v2081 = vunpack.c.0.s8 %v2080
      %v2082 = vlaneseq
      %v2083 = vshrl.u32 %v2082, 7
      %v2084 = vsub.s32 %v2081, %v2083
      %v2085 = vrot.slane %v2078, %v2084
      %v2086 = vcombine.low %v1990, %v2054
      %v2088 = vunpack.c.l.s4 1983009808
      %v2089 = vunpack.c.0.s8 %v2088
      %v2090 = vlaneseq
      %v2091 = vshrl.u32 %v2090, 7
      %v2092 = vsub.s32 %v2089, %v2091
      %v2093 = vrot.slane %v2086, %v2092
      %v2094 = vcombine.low %v2085, %v2093
      %v2096 = vunpack.c.l.s4 1934713408
      %v2097 = vunpack.c.0.s8 %v2096
      %v2098 = vlaneseq
      %v2099 = vshrl.u32 %v2098, 7
      %v2100 = vsub.s32 %v2097, %v2099
      %v2101 = vrot.slane %v2094, %v2100
      %v2102 = vcombine.high %v2101, 0
      %v2103 = vcombine.low %v1974, %v2038
      %v2105 = vunpack.c.l.s4 1983009808
      %v2106 = vunpack.c.0.s8 %v2105
      %v2107 = vlaneseq
      %v2108 = vshrl.u32 %v2107, 7
      %v2109 = vsub.s32 %v2106, %v2108
      %v2110 = vrot.slane %v2103, %v2109
      %v2111 = vcombine.low %v2006, %v2070
      %v2113 = vunpack.c.l.s4 1983009808
      %v2114 = vunpack.c.0.s8 %v2113
      %v2115 = vlaneseq
      %v2116 = vshrl.u32 %v2115, 7
      %v2117 = vsub.s32 %v2114, %v2116
      %v2118 = vrot.slane %v2111, %v2117
      %v2119 = vcombine.low %v2110, %v2118
      %v2121 = vunpack.c.l.s4 1934713408
      %v2122 = vunpack.c.0.s8 %v2121
      %v2123 = vlaneseq
      %v2124 = vshrl.u32 %v2123, 7
      %v2125 = vsub.s32 %v2122, %v2124
      %v2126 = vrot.slane %v2119, %v2125
      %v2127 = vcombine.high %v2126, 0
      %v2130 = vpack.i.b16 %v2126, %v2101
      %v2131 = vshrl.u32 %v2101, 16
      %v2132 = vshrl.u32 %v2126, 16
      %v2133 = vpack.i.b16 %v2132, %v2131
      %v2136 = vpack.i.b16 %v2127, %v2102
      %v2137 = vshrl.u32 %v2102, 16
      %v2138 = vshrl.u32 %v2127, 16
      %v2139 = vpack.i.b16 %v2138, %v2137
      %v2141 = vsel %vm1480, %v2130, 0
      %v2144 = vsel %vm1480, %v1710, 0
      %2146 = vmatprep.subr.bf16.mxu0 0
      %2147 = vmatpush1.bf16.xpose.msra.mxu0 0
      %2148 = vmatprep.subr.bf16.mxu0 0
      %2149 = vmatpush1.bf16.xpose.msra.mxu0 0
      %2150 = vmatprep.subr.bf16.mxu0 0
      %2151 = vmatpush1.bf16.xpose.msra.mxu0 0
      %2152 = vmatprep.subr.bf16.mxu0 0
      %2153 = vmatpush1.bf16.xpose.msra.mxu0 0
      %2154 = vmatprep.subr.bf16.mxu0 0
      %2155 = vmatpush1.bf16.xpose.msra.mxu0 0
      %2156 = vmatprep.subr.bf16.mxu0 0
      %2157 = vmatpush1.bf16.xpose.msra.mxu0 0
      %2158 = vmatprep.subr.bf16.mxu0 0
      %2159 = vmatpush1.bf16.xpose.msra.mxu0 0
      %2160 = vmatprep.subr.bf16.mxu0 0
      %2161 = vmatpush1.bf16.xpose.msra.mxu0 %v2144
      %2162 = vmatprep.subr.bf16.mxu0 0
      %2163 = vmatpush2.bf16.xpose.msra.mxu0 0
      %2164 = vmatprep.subr.bf16.mxu0 0
      %2165 = vmatpush2.bf16.xpose.msra.mxu0 0
      %2166 = vmatprep.subr.bf16.mxu0 0
      %2167 = vmatpush2.bf16.xpose.msra.mxu0 0
      %2168 = vmatprep.subr.bf16.mxu0 0
      %2169 = vmatpush2.bf16.xpose.msra.mxu0 0
      %2170 = vmatprep.subr.bf16.mxu0 0
      %2171 = vmatpush2.bf16.xpose.msra.mxu0 0
      %2172 = vmatprep.subr.bf16.mxu0 0
      %2173 = vmatpush2.bf16.xpose.msra.mxu0 0
      %2174 = vmatprep.subr.bf16.mxu0 0
      %2175 = vmatpush2.bf16.xpose.msra.mxu0 0
      %2176 = vmatprep.subr.bf16.mxu0 0
      %2177 = vmatpush2.bf16.xpose.msra.mxu0 0
      %2178 = vmatprep.mubr.bf16.mxu0 0
      %2179 = vmatmul.mubr.bf16.gmra.mxu0 %v2141
      %v2180 = vpop.f32.mrf.mxu0
      %v2181 = vadd.f32 0.0, %v2180
      %v2182 = vpop.f32.mrf.mxu0
      %v2183 = vpop.f32.mrf.mxu0
      %v2184 = vpop.f32.mrf.mxu0
      %2185 = vdwg.mxu0
      %v2187 = vsel %vm1480, %v2133, 0
      %v2190 = vsel %vm1480, %v1711, 0
      %2192 = vmatprep.subr.bf16.mxu0 0
      %2193 = vmatpush1.bf16.xpose.msra.mxu0 0
      %2194 = vmatprep.subr.bf16.mxu0 0
      %2195 = vmatpush1.bf16.xpose.msra.mxu0 0
      %2196 = vmatprep.subr.bf16.mxu0 0
      %2197 = vmatpush1.bf16.xpose.msra.mxu0 0
      %2198 = vmatprep.subr.bf16.mxu0 0
      %2199 = vmatpush1.bf16.xpose.msra.mxu0 0
      %2200 = vmatprep.subr.bf16.mxu0 0
      %2201 = vmatpush1.bf16.xpose.msra.mxu0 0
      %2202 = vmatprep.subr.bf16.mxu0 0
      %2203 = vmatpush1.bf16.xpose.msra.mxu0 0
      %2204 = vmatprep.subr.bf16.mxu0 0
      %2205 = vmatpush1.bf16.xpose.msra.mxu0 0
      %2206 = vmatprep.subr.bf16.mxu0 0
      %2207 = vmatpush1.bf16.xpose.msra.mxu0 %v2190
      %2208 = vmatprep.subr.bf16.mxu0 0
      %2209 = vmatpush2.bf16.xpose.msra.mxu0 0
      %2210 = vmatprep.subr.bf16.mxu0 0
      %2211 = vmatpush2.bf16.xpose.msra.mxu0 0
      %2212 = vmatprep.subr.bf16.mxu0 0
      %2213 = vmatpush2.bf16.xpose.msra.mxu0 0
      %2214 = vmatprep.subr.bf16.mxu0 0
      %2215 = vmatpush2.bf16.xpose.msra.mxu0 0
      %2216 = vmatprep.subr.bf16.mxu0 0
      %2217 = vmatpush2.bf16.xpose.msra.mxu0 0
      %2218 = vmatprep.subr.bf16.mxu0 0
      %2219 = vmatpush2.bf16.xpose.msra.mxu0 0
      %2220 = vmatprep.subr.bf16.mxu0 0
      %2221 = vmatpush2.bf16.xpose.msra.mxu0 0
      %2222 = vmatprep.subr.bf16.mxu0 0
      %2223 = vmatpush2.bf16.xpose.msra.mxu0 0
      %2224 = vmatprep.mubr.bf16.mxu0 0
      %2225 = vmatmul.mubr.bf16.gmra.mxu0 %v2187
      %v2226 = vpop.f32.mrf.mxu0
      %v2227 = vadd.f32 0.0, %v2226
      %v2228 = vpop.f32.mrf.mxu0
      %v2229 = vpop.f32.mrf.mxu0
      %v2230 = vpop.f32.mrf.mxu0
      %2231 = vdwg.mxu0
      %v2233 = vsel %vm1480, %v2136, 0
      %v2236 = vsel %vm1480, %v1712, 0
      %2238 = vmatprep.subr.bf16.mxu0 0
      %2239 = vmatpush1.bf16.xpose.msra.mxu0 0
      %2240 = vmatprep.subr.bf16.mxu0 0
      %2241 = vmatpush1.bf16.xpose.msra.mxu0 0
      %2242 = vmatprep.subr.bf16.mxu0 0
      %2243 = vmatpush1.bf16.xpose.msra.mxu0 0
      %2244 = vmatprep.subr.bf16.mxu0 0
      %2245 = vmatpush1.bf16.xpose.msra.mxu0 0
      %2246 = vmatprep.subr.bf16.mxu0 0
      %2247 = vmatpush1.bf16.xpose.msra.mxu0 0
      %2248 = vmatprep.subr.bf16.mxu0 0
      %2249 = vmatpush1.bf16.xpose.msra.mxu0 0
      %2250 = vmatprep.subr.bf16.mxu0 0
      %2251 = vmatpush1.bf16.xpose.msra.mxu0 0
      %2252 = vmatprep.subr.bf16.mxu0 0
      %2253 = vmatpush1.bf16.xpose.msra.mxu0 %v2236
      %2254 = vmatprep.subr.bf16.mxu0 0
      %2255 = vmatpush2.bf16.xpose.msra.mxu0 0
      %2256 = vmatprep.subr.bf16.mxu0 0
      %2257 = vmatpush2.bf16.xpose.msra.mxu0 0
      %2258 = vmatprep.subr.bf16.mxu0 0
      %2259 = vmatpush2.bf16.xpose.msra.mxu0 0
      %2260 = vmatprep.subr.bf16.mxu0 0
      %2261 = vmatpush2.bf16.xpose.msra.mxu0 0
      %2262 = vmatprep.subr.bf16.mxu0 0
      %2263 = vmatpush2.bf16.xpose.msra.mxu0 0
      %2264 = vmatprep.subr.bf16.mxu0 0
      %2265 = vmatpush2.bf16.xpose.msra.mxu0 0
      %2266 = vmatprep.subr.bf16.mxu0 0
      %2267 = vmatpush2.bf16.xpose.msra.mxu0 0
      %2268 = vmatprep.subr.bf16.mxu0 0
      %2269 = vmatpush2.bf16.xpose.msra.mxu0 0
      %2270 = vmatprep.mubr.bf16.mxu0 0
      %2271 = vmatmul.mubr.bf16.gmra.mxu0 %v2233
      %v2272 = vpop.f32.mrf.mxu0
      %v2273 = vadd.f32 0.0, %v2272
      %v2274 = vpop.f32.mrf.mxu0
      %v2275 = vpop.f32.mrf.mxu0
      %v2276 = vpop.f32.mrf.mxu0
      %2277 = vdwg.mxu0
      %v2279 = vsel %vm1480, %v2139, 0
      %v2282 = vsel %vm1480, %v1713, 0
      %2284 = vmatprep.subr.bf16.mxu0 0
      %2285 = vmatpush1.bf16.xpose.msra.mxu0 0
      %2286 = vmatprep.subr.bf16.mxu0 0
      %2287 = vmatpush1.bf16.xpose.msra.mxu0 0
      %2288 = vmatprep.subr.bf16.mxu0 0
      %2289 = vmatpush1.bf16.xpose.msra.mxu0 0
      %2290 = vmatprep.subr.bf16.mxu0 0
      %2291 = vmatpush1.bf16.xpose.msra.mxu0 0
      %2292 = vmatprep.subr.bf16.mxu0 0
      %2293 = vmatpush1.bf16.xpose.msra.mxu0 0
      %2294 = vmatprep.subr.bf16.mxu0 0
      %2295 = vmatpush1.bf16.xpose.msra.mxu0 0
      %2296 = vmatprep.subr.bf16.mxu0 0
      %2297 = vmatpush1.bf16.xpose.msra.mxu0 0
      %2298 = vmatprep.subr.bf16.mxu0 0
      %2299 = vmatpush1.bf16.xpose.msra.mxu0 %v2282
      %2300 = vmatprep.subr.bf16.mxu0 0
      %2301 = vmatpush2.bf16.xpose.msra.mxu0 0
      %2302 = vmatprep.subr.bf16.mxu0 0
      %2303 = vmatpush2.bf16.xpose.msra.mxu0 0
      %2304 = vmatprep.subr.bf16.mxu0 0
      %2305 = vmatpush2.bf16.xpose.msra.mxu0 0
      %2306 = vmatprep.subr.bf16.mxu0 0
      %2307 = vmatpush2.bf16.xpose.msra.mxu0 0
      %2308 = vmatprep.subr.bf16.mxu0 0
      %2309 = vmatpush2.bf16.xpose.msra.mxu0 0
      %2310 = vmatprep.subr.bf16.mxu0 0
      %2311 = vmatpush2.bf16.xpose.msra.mxu0 0
      %2312 = vmatprep.subr.bf16.mxu0 0
      %2313 = vmatpush2.bf16.xpose.msra.mxu0 0
      %2314 = vmatprep.subr.bf16.mxu0 0
      %2315 = vmatpush2.bf16.xpose.msra.mxu0 0
      %2316 = vmatprep.mubr.bf16.mxu0 0
      %2317 = vmatmul.mubr.bf16.gmra.mxu0 %v2279
      %v2318 = vpop.f32.mrf.mxu0
      %v2319 = vadd.f32 0.0, %v2318
      %v2320 = vpop.f32.mrf.mxu0
      %v2321 = vpop.f32.mrf.mxu0
      %v2322 = vpop.f32.mrf.mxu0
      %2323 = vdwg.mxu0
      %2324 = vxpose.xlu0.b32.start [1/16] %v2181, 128
      %2325 = vxpose.xlu0.b32.cont [2/16] 0.0, 128
      %2326 = vxpose.xlu0.b32.cont [3/16] 0.0, 128
      %2327 = vxpose.xlu0.b32.cont [4/16] 0.0, 128
      %2328 = vxpose.xlu0.b32.cont [5/16] 0.0, 128
      %2329 = vxpose.xlu0.b32.cont [6/16] 0.0, 128
      %2330 = vxpose.xlu0.b32.cont [7/16] 0.0, 128
      %2331 = vxpose.xlu0.b32.cont [8/16] 0.0, 128
      %2332 = vxpose.xlu0.b32.cont [9/16] 0.0, 128
      %2333 = vxpose.xlu0.b32.cont [10/16] 0.0, 128
      %2334 = vxpose.xlu0.b32.cont [11/16] 0.0, 128
      %2335 = vxpose.xlu0.b32.cont [12/16] 0.0, 128
      %2336 = vxpose.xlu0.b32.cont [13/16] 0.0, 128
      %2337 = vxpose.xlu0.b32.cont [14/16] 0.0, 128
      %2338 = vxpose.xlu0.b32.cont [15/16] 0.0, 128
      %2339 = vxpose.xlu0.b32.end [16/16] 0.0, 128
      %v2340 = vpop.trf.xlu0
      %v2341 = vpop.trf.xlu0
      %v2342 = vpop.trf.xlu0
      %v2343 = vpop.trf.xlu0
      %v2344 = vpop.trf.xlu0
      %v2345 = vpop.trf.xlu0
      %v2346 = vpop.trf.xlu0
      %v2347 = vpop.trf.xlu0
      %v2348 = vpop.trf.xlu0
      %v2349 = vpop.trf.xlu0
      %v2350 = vpop.trf.xlu0
      %v2351 = vpop.trf.xlu0
      %v2352 = vpop.trf.xlu0
      %v2353 = vpop.trf.xlu0
      %v2354 = vpop.trf.xlu0
      %v2355 = vpop.trf.xlu0
      %2356 = vxpose.xlu0.b32.start [1/16] %v2227, 128
      %2357 = vxpose.xlu0.b32.cont [2/16] 0.0, 128
      %2358 = vxpose.xlu0.b32.cont [3/16] 0.0, 128
      %2359 = vxpose.xlu0.b32.cont [4/16] 0.0, 128
      %2360 = vxpose.xlu0.b32.cont [5/16] 0.0, 128
      %2361 = vxpose.xlu0.b32.cont [6/16] 0.0, 128
      %2362 = vxpose.xlu0.b32.cont [7/16] 0.0, 128
      %2363 = vxpose.xlu0.b32.cont [8/16] 0.0, 128
      %2364 = vxpose.xlu0.b32.cont [9/16] 0.0, 128
      %2365 = vxpose.xlu0.b32.cont [10/16] 0.0, 128
      %2366 = vxpose.xlu0.b32.cont [11/16] 0.0, 128
      %2367 = vxpose.xlu0.b32.cont [12/16] 0.0, 128
      %2368 = vxpose.xlu0.b32.cont [13/16] 0.0, 128
      %2369 = vxpose.xlu0.b32.cont [14/16] 0.0, 128
      %2370 = vxpose.xlu0.b32.cont [15/16] 0.0, 128
      %2371 = vxpose.xlu0.b32.end [16/16] 0.0, 128
      %v2372 = vpop.trf.xlu0
      %v2373 = vpop.trf.xlu0
      %v2374 = vpop.trf.xlu0
      %v2375 = vpop.trf.xlu0
      %v2376 = vpop.trf.xlu0
      %v2377 = vpop.trf.xlu0
      %v2378 = vpop.trf.xlu0
      %v2379 = vpop.trf.xlu0
      %v2380 = vpop.trf.xlu0
      %v2381 = vpop.trf.xlu0
      %v2382 = vpop.trf.xlu0
      %v2383 = vpop.trf.xlu0
      %v2384 = vpop.trf.xlu0
      %v2385 = vpop.trf.xlu0
      %v2386 = vpop.trf.xlu0
      %v2387 = vpop.trf.xlu0
      %2388 = vxpose.xlu0.b32.start [1/16] %v2273, 128
      %2389 = vxpose.xlu0.b32.cont [2/16] 0.0, 128
      %2390 = vxpose.xlu0.b32.cont [3/16] 0.0, 128
      %2391 = vxpose.xlu0.b32.cont [4/16] 0.0, 128
      %2392 = vxpose.xlu0.b32.cont [5/16] 0.0, 128
      %2393 = vxpose.xlu0.b32.cont [6/16] 0.0, 128
      %2394 = vxpose.xlu0.b32.cont [7/16] 0.0, 128
      %2395 = vxpose.xlu0.b32.cont [8/16] 0.0, 128
      %2396 = vxpose.xlu0.b32.cont [9/16] 0.0, 128
      %2397 = vxpose.xlu0.b32.cont [10/16] 0.0, 128
      %2398 = vxpose.xlu0.b32.cont [11/16] 0.0, 128
      %2399 = vxpose.xlu0.b32.cont [12/16] 0.0, 128
      %2400 = vxpose.xlu0.b32.cont [13/16] 0.0, 128
      %2401 = vxpose.xlu0.b32.cont [14/16] 0.0, 128
      %2402 = vxpose.xlu0.b32.cont [15/16] 0.0, 128
      %2403 = vxpose.xlu0.b32.end [16/16] 0.0, 128
      %v2404 = vpop.trf.xlu0
      %v2405 = vpop.trf.xlu0
      %v2406 = vpop.trf.xlu0
      %v2407 = vpop.trf.xlu0
      %v2408 = vpop.trf.xlu0
      %v2409 = vpop.trf.xlu0
      %v2410 = vpop.trf.xlu0
      %v2411 = vpop.trf.xlu0
      %v2412 = vpop.trf.xlu0
      %v2413 = vpop.trf.xlu0
      %v2414 = vpop.trf.xlu0
      %v2415 = vpop.trf.xlu0
      %v2416 = vpop.trf.xlu0
      %v2417 = vpop.trf.xlu0
      %v2418 = vpop.trf.xlu0
      %v2419 = vpop.trf.xlu0
      %2420 = vxpose.xlu0.b32.start [1/16] %v2319, 128
      %2421 = vxpose.xlu0.b32.cont [2/16] 0.0, 128
      %2422 = vxpose.xlu0.b32.cont [3/16] 0.0, 128
      %2423 = vxpose.xlu0.b32.cont [4/16] 0.0, 128
      %2424 = vxpose.xlu0.b32.cont [5/16] 0.0, 128
      %2425 = vxpose.xlu0.b32.cont [6/16] 0.0, 128
      %2426 = vxpose.xlu0.b32.cont [7/16] 0.0, 128
      %2427 = vxpose.xlu0.b32.cont [8/16] 0.0, 128
      %2428 = vxpose.xlu0.b32.cont [9/16] 0.0, 128
      %2429 = vxpose.xlu0.b32.cont [10/16] 0.0, 128
      %2430 = vxpose.xlu0.b32.cont [11/16] 0.0, 128
      %2431 = vxpose.xlu0.b32.cont [12/16] 0.0, 128
      %2432 = vxpose.xlu0.b32.cont [13/16] 0.0, 128
      %2433 = vxpose.xlu0.b32.cont [14/16] 0.0, 128
      %2434 = vxpose.xlu0.b32.cont [15/16] 0.0, 128
      %2435 = vxpose.xlu0.b32.end [16/16] 0.0, 128
      %v2436 = vpop.trf.xlu0
      %v2437 = vpop.trf.xlu0
      %v2438 = vpop.trf.xlu0
      %v2439 = vpop.trf.xlu0
      %v2440 = vpop.trf.xlu0
      %v2441 = vpop.trf.xlu0
      %v2442 = vpop.trf.xlu0
      %v2443 = vpop.trf.xlu0
      %v2444 = vpop.trf.xlu0
      %v2445 = vpop.trf.xlu0
      %v2446 = vpop.trf.xlu0
      %v2447 = vpop.trf.xlu0
      %v2448 = vpop.trf.xlu0
      %v2449 = vpop.trf.xlu0
      %v2450 = vpop.trf.xlu0
      %v2451 = vpop.trf.xlu0
      %v2452 = vcombine.low %v2340, %v2404
      %v2453 = vcombine.high %v2340, %v2404
      %v2455 = vunpack.c.l.s4 1983009808
      %v2456 = vunpack.c.0.s8 %v2455
      %v2457 = vlaneseq
      %v2458 = vshrl.u32 %v2457, 7
      %v2459 = vsub.s32 %v2456, %v2458
      %v2460 = vrot.slane %v2452, %v2459
      %v2462 = vunpack.c.l.s4 1983009808
      %v2463 = vunpack.c.0.s8 %v2462
      %v2464 = vlaneseq
      %v2465 = vshrl.u32 %v2464, 7
      %v2466 = vsub.s32 %v2463, %v2465
      %v2467 = vrot.slane %v2453, %v2466
      %v2468 = vcombine.low %v2372, %v2436
      %v2469 = vcombine.high %v2372, %v2436
      %v2471 = vunpack.c.l.s4 1983009808
      %v2472 = vunpack.c.0.s8 %v2471
      %v2473 = vlaneseq
      %v2474 = vshrl.u32 %v2473, 7
      %v2475 = vsub.s32 %v2472, %v2474
      %v2476 = vrot.slane %v2468, %v2475
      %v2478 = vunpack.c.l.s4 1983009808
      %v2479 = vunpack.c.0.s8 %v2478
      %v2480 = vlaneseq
      %v2481 = vshrl.u32 %v2480, 7
      %v2482 = vsub.s32 %v2479, %v2481
      %v2483 = vrot.slane %v2469, %v2482
      %v2484 = vcombine.low %v2460, %v2476
      %v2485 = vcombine.high %v2460, %v2476
      %v2487 = vunpack.c.l.s4 1934713408
      %v2488 = vunpack.c.0.s8 %v2487
      %v2489 = vlaneseq
      %v2490 = vshrl.u32 %v2489, 7
      %v2491 = vsub.s32 %v2488, %v2490
      %v2492 = vrot.slane %v2484, %v2491
      %v2494 = vunpack.c.l.s4 1934713408
      %v2495 = vunpack.c.0.s8 %v2494
      %v2496 = vlaneseq
      %v2497 = vshrl.u32 %v2496, 7
      %v2498 = vsub.s32 %v2495, %v2497
      %v2499 = vrot.slane %v2485, %v2498
      %v2500 = vcombine.low %v2467, %v2483
      %v2501 = vcombine.high %v2467, %v2483
      %v2503 = vunpack.c.l.s4 1934713408
      %v2504 = vunpack.c.0.s8 %v2503
      %v2505 = vlaneseq
      %v2506 = vshrl.u32 %v2505, 7
      %v2507 = vsub.s32 %v2504, %v2506
      %v2508 = vrot.slane %v2500, %v2507
      %v2510 = vunpack.c.l.s4 1934713408
      %v2511 = vunpack.c.0.s8 %v2510
      %v2512 = vlaneseq
      %v2513 = vshrl.u32 %v2512, 7
      %v2514 = vsub.s32 %v2511, %v2513
      %v2515 = vrot.slane %v2501, %v2514
      %v2516 = vcombine.high %v2492, 0.0
      %v2517 = vcombine.high %v2499, 0.0
      %v2518 = vcombine.high %v2508, 0.0
      %v2519 = vcombine.high %v2515, 0.0
      %v2520 = vcombine.low %v2492, %v2499
      %v2522 = vunpack.c.l.s4 1983009808
      %v2523 = vunpack.c.0.s8 %v2522
      %v2524 = vlaneseq
      %v2525 = vshrl.u32 %v2524, 7
      %v2526 = vsub.s32 %v2523, %v2525
      %v2527 = vrot.slane %v2520, %v2526
      %v2528 = vcombine.low %v2516, %v2517
      %v2530 = vunpack.c.l.s4 1983009808
      %v2531 = vunpack.c.0.s8 %v2530
      %v2532 = vlaneseq
      %v2533 = vshrl.u32 %v2532, 7
      %v2534 = vsub.s32 %v2531, %v2533
      %v2535 = vrot.slane %v2528, %v2534
      %v2536 = vcombine.low %v2508, %v2515
      %v2538 = vunpack.c.l.s4 1983009808
      %v2539 = vunpack.c.0.s8 %v2538
      %v2540 = vlaneseq
      %v2541 = vshrl.u32 %v2540, 7
      %v2542 = vsub.s32 %v2539, %v2541
      %v2543 = vrot.slane %v2536, %v2542
      %v2544 = vcombine.low %v2518, %v2519
      %v2546 = vunpack.c.l.s4 1983009808
      %v2547 = vunpack.c.0.s8 %v2546
      %v2548 = vlaneseq
      %v2549 = vshrl.u32 %v2548, 7
      %v2550 = vsub.s32 %v2547, %v2549
      %v2551 = vrot.slane %v2544, %v2550
      %v2552 = vcombine.low %v2527, %v2535
      %v2553 = vcombine.high %v2527, %v2535
      %v2555 = vunpack.c.l.s4 1934713408
      %v2556 = vunpack.c.0.s8 %v2555
      %v2557 = vlaneseq
      %v2558 = vshrl.u32 %v2557, 7
      %v2559 = vsub.s32 %v2556, %v2558
      %v2560 = vrot.slane %v2552, %v2559
      %v2562 = vunpack.c.l.s4 1934713408
      %v2563 = vunpack.c.0.s8 %v2562
      %v2564 = vlaneseq
      %v2565 = vshrl.u32 %v2564, 7
      %v2566 = vsub.s32 %v2563, %v2565
      %v2567 = vrot.slane %v2553, %v2566
      %v2568 = vcombine.low %v2543, %v2551
      %v2569 = vcombine.high %v2543, %v2551
      %v2571 = vunpack.c.l.s4 1934713408
      %v2572 = vunpack.c.0.s8 %v2571
      %v2573 = vlaneseq
      %v2574 = vshrl.u32 %v2573, 7
      %v2575 = vsub.s32 %v2572, %v2574
      %v2576 = vrot.slane %v2568, %v2575
      %v2578 = vunpack.c.l.s4 1934713408
      %v2579 = vunpack.c.0.s8 %v2578
      %v2580 = vlaneseq
      %v2581 = vshrl.u32 %v2580, 7
      %v2582 = vsub.s32 %v2579, %v2581
      %v2583 = vrot.slane %v2569, %v2582
      %v2584 = vcombine.low %v2560, %v2576
      %v2585 = vcombine.high %v2560, %v2576
      %v2586 = vcombine.low %v2567, %v2583
      %v2587 = vcombine.high %v2567, %v2583
      %2589 = vrot.lane.b32.xlu0 %v2585, 8
      %v2590 = vpop.permute.xlu0 %2589
      %2593 = vrot.lane.b32.xlu0 %v2586, 16
      %v2594 = vpop.permute.xlu0 %2593
      %2597 = vrot.lane.b32.xlu0 %v2587, 24
      %v2598 = vpop.permute.xlu0 %2597
      %v2600 = vsel %vm1480, %v2584, %v2590
      %vm2601 = vcmask 130048
      %v2602 = vsel %vm2601, %v2600, %v2594
      %vm2603 = vcmask 195584
      %v2604 = vsel %vm2603, %v2602, %v2598
      %v2605 = vpack.c.bf16 %v2604, %v2604
      %v2606 = vld [vmem:[%s6] sm:$0xf]
      %v2607 = vld [vmem:[%s6 + $0x4] sm:$0xf]
      %v2608 = vld [vmem:[%s6 + $0x8] sm:$0xf]
      %v2609 = vld [vmem:[%s6 + $0xc] sm:$0xf]
      %v2610 = vld [vmem:[%s7] sm:$0x1]
      %v2612 = vlaneseq
      %v2613 = vshrl.u32 %v2612, 7
      %v2614 = vsub.s32 0, %v2613
      %v2615 = vrot.slane %v2610, %v2614
      %v2621 = vunpack.c.l.b16 %v2606
      %v2622 = vunpack.c.l.b16 %v2607
      %v2623 = vunpack.c.l.b16 %v2608
      %v2624 = vunpack.c.l.b16 %v2609
      %v2625 = vpack.c.b16 %v2622, %v2621
      %v2626 = vpack.c.b16 %v2624, %v2623
      %v2630 = vsel %vm643, %v2605, 0
      %2632 = vmatprep.subr.bf16.mxu0 0
      %2633 = vmatpush1.bf16.msra.mxu0 0
      %2634 = vmatprep.subr.bf16.mxu0 0
      %2635 = vmatpush1.bf16.msra.mxu0 0
      %2636 = vmatprep.subr.bf16.mxu0 0
      %2637 = vmatpush1.bf16.msra.mxu0 0
      %2638 = vmatprep.subr.bf16.mxu0 0
      %2639 = vmatpush1.bf16.msra.mxu0 0
      %2640 = vmatprep.subr.bf16.mxu0 0
      %2641 = vmatpush1.bf16.msra.mxu0 0
      %2642 = vmatprep.subr.bf16.mxu0 0
      %2643 = vmatpush1.bf16.msra.mxu0 0
      %2644 = vmatprep.subr.bf16.mxu0 0
      %2645 = vmatpush1.bf16.msra.mxu0 %v2626
      %2646 = vmatprep.subr.bf16.mxu0 0
      %2647 = vmatpush1.bf16.msra.mxu0 %v2625
      %2648 = vmatprep.subr.bf16.mxu0 0
      %2649 = vmatpush2.bf16.msra.mxu0 0
      %2650 = vmatprep.subr.bf16.mxu0 0
      %2651 = vmatpush2.bf16.msra.mxu0 0
      %2652 = vmatprep.subr.bf16.mxu0 0
      %2653 = vmatpush2.bf16.msra.mxu0 0
      %2654 = vmatprep.subr.bf16.mxu0 0
      %2655 = vmatpush2.bf16.msra.mxu0 0
      %2656 = vmatprep.subr.bf16.mxu0 0
      %2657 = vmatpush2.bf16.msra.mxu0 0
      %2658 = vmatprep.subr.bf16.mxu0 0
      %2659 = vmatpush2.bf16.msra.mxu0 0
      %2660 = vmatprep.subr.bf16.mxu0 0
      %2661 = vmatpush2.bf16.msra.mxu0 0
      %2662 = vmatprep.subr.bf16.mxu0 0
      %2663 = vmatpush2.bf16.msra.mxu0 0
      %2664 = vmatprep.mubr.bf16.mxu0 0
      %2665 = vmatmul.mubr.bf16.gmra.mxu0 %v2630
      %v2666 = vpop.f32.mrf.mxu0
      %v2667 = vadd.f32 %v2615, %v2666
      %v2668 = vpop.f32.mrf.mxu0
      %v2669 = vpop.f32.mrf.mxu0
      %v2670 = vpop.f32.mrf.mxu0
      %2671 = vdwg.mxu0
      %v2672 = vadd.f32 %v2667, %v671
      %v2673 = vld [vmem:[%s8] sm:$0x1]
      %v2674 = vld [vmem:[%s9] sm:$0x1]
      %v2675 = vsel %vm643, %v2672, 0.0
      %2676 = vadd.xlane.f32.xlu0 %v2675
      %v2677 = vpop.xlane.xlu0 %2676
      %v2678 = vmul.f32 %v2677, %v647
      %v2679 = vsub.f32 %v2672, %v2678
      %v2680 = vmul.f32 %v2679, %v2679
      %v2681 = vsel %vm643, %v2680, 0.0
      %2682 = vadd.xlane.f32.xlu0 %v2681
      %v2683 = vpop.xlane.xlu0 %2682
      %v2684 = vmul.f32 %v2683, %v647
      %v2685 = vadd.f32 %v2684, 1e-12
      %v2686 = vrsqrt.pop %v2685
      %v2687 = vmul.f32 %v2679, %v2686
      %v2689 = vlaneseq
      %v2690 = vshrl.u32 %v2689, 7
      %v2691 = vsub.s32 0, %v2690
      %v2692 = vrot.slane %v2673, %v2691
      %v2694 = vmul.f32 %v2687, %v2692
      %v2696 = vlaneseq
      %v2697 = vshrl.u32 %v2696, 7
      %v2698 = vsub.s32 0, %v2697
      %v2699 = vrot.slane %v2674, %v2698
      %v2701 = vadd.f32 %v2694, %v2699
      %v2702 = vpack.c.bf16 %v2701, %v2701
      %v2703 = vld [vmem:[%s10] sm:$0xf]
      %v2704 = vld [vmem:[%s10 + $0x4] sm:$0xf]
      %v2705 = vld [vmem:[%s10 + $0x8] sm:$0xf]
      %v2706 = vld [vmem:[%s10 + $0xc] sm:$0xf]
      %v2707 = vld [vmem:[%s11] sm:$0x1]
      %v2709 = vlaneseq
      %v2710 = vshrl.u32 %v2709, 7
      %v2711 = vsub.s32 0, %v2710
      %v2712 = vrot.slane %v2707, %v2711
      %v2718 = vunpack.c.l.b16 %v2703
      %v2719 = vunpack.c.l.b16 %v2704
      %v2720 = vunpack.c.l.b16 %v2705
      %v2721 = vunpack.c.l.b16 %v2706
      %v2722 = vpack.c.b16 %v2719, %v2718
      %v2723 = vpack.c.b16 %v2721, %v2720
      %v2727 = vsel %vm643, %v2702, 0
      %2729 = vmatprep.subr.bf16.mxu0 0
      %2730 = vmatpush1.bf16.msra.mxu0 0
      %2731 = vmatprep.subr.bf16.mxu0 0
      %2732 = vmatpush1.bf16.msra.mxu0 0
      %2733 = vmatprep.subr.bf16.mxu0 0
      %2734 = vmatpush1.bf16.msra.mxu0 0
      %2735 = vmatprep.subr.bf16.mxu0 0
      %2736 = vmatpush1.bf16.msra.mxu0 0
      %2737 = vmatprep.subr.bf16.mxu0 0
      %2738 = vmatpush1.bf16.msra.mxu0 0
      %2739 = vmatprep.subr.bf16.mxu0 0
      %2740 = vmatpush1.bf16.msra.mxu0 0
      %2741 = vmatprep.subr.bf16.mxu0 0
      %2742 = vmatpush1.bf16.msra.mxu0 %v2723
      %2743 = vmatprep.subr.bf16.mxu0 0
      %2744 = vmatpush1.bf16.msra.mxu0 %v2722
      %2745 = vmatprep.subr.bf16.mxu0 0
      %2746 = vmatpush2.bf16.msra.mxu0 0
      %2747 = vmatprep.subr.bf16.mxu0 0
      %2748 = vmatpush2.bf16.msra.mxu0 0
      %2749 = vmatprep.subr.bf16.mxu0 0
      %2750 = vmatpush2.bf16.msra.mxu0 0
      %2751 = vmatprep.subr.bf16.mxu0 0
      %2752 = vmatpush2.bf16.msra.mxu0 0
      %2753 = vmatprep.subr.bf16.mxu0 0
      %2754 = vmatpush2.bf16.msra.mxu0 0
      %2755 = vmatprep.subr.bf16.mxu0 0
      %2756 = vmatpush2.bf16.msra.mxu0 0
      %2757 = vmatprep.subr.bf16.mxu0 0
      %2758 = vmatpush2.bf16.msra.mxu0 0
      %2759 = vmatprep.subr.bf16.mxu0 0
      %2760 = vmatpush2.bf16.msra.mxu0 0
      %2761 = vmatprep.mubr.bf16.mxu0 0
      %2762 = vmatmul.mubr.bf16.gmra.mxu0 %v2727
      %v2763 = vpop.f32.mrf.mxu0
      %v2764 = vadd.f32 %v2712, %v2763
      %v2765 = vpop.f32.mrf.mxu0
      %v2766 = vpop.f32.mrf.mxu0
      %v2767 = vpop.f32.mrf.mxu0
      %2768 = vdwg.mxu0
      %v2769 = vmul.f32 %v2764, %v2764
      %v2770 = vmul.f32 %v2764, %v2769
      %v2771 = vmul.f32 %v2770, 0.044715
      %v2772 = vadd.f32 %v2764, %v2771
      %v2773 = vmul.f32 %v2772, 0.7978846
      %v2774 = vtanh.pop %v2773
      %v2775 = vadd.f32 %v2774, 1.0
      %v2776 = vmul.f32 %v2775, 0.5
      %v2777 = vmul.f32 %v2764, %v2776
      %v2778 = vpack.c.bf16 %v2777, %v2777
      %v2779 = vld [vmem:[%s12] sm:$0xf]
      %v2780 = vld [vmem:[%s12 + $0x4] sm:$0xf]
      %v2781 = vld [vmem:[%s12 + $0x8] sm:$0xf]
      %v2782 = vld [vmem:[%s12 + $0xc] sm:$0xf]
      %v2783 = vld [vmem:[%s12 + $0x10] sm:$0xf]
      %v2784 = vld [vmem:[%s12 + $0x14] sm:$0xf]
      %v2785 = vld [vmem:[%s12 + $0x18] sm:$0xf]
      %v2786 = vld [vmem:[%s12 + $0x1c] sm:$0xf]
      %v2787 = vld [vmem:[%s13] sm:$0x1]
      %v2789 = vlaneseq
      %v2790 = vshrl.u32 %v2789, 7
      %v2791 = vsub.s32 0, %v2790
      %v2792 = vrot.slane %v2787, %v2791
      %v2802 = vunpack.c.l.b16 %v2779
      %v2803 = vunpack.c.l.b16 %v2780
      %v2804 = vunpack.c.l.b16 %v2781
      %v2805 = vunpack.c.l.b16 %v2782
      %v2806 = vunpack.c.l.b16 %v2783
      %v2807 = vunpack.c.l.b16 %v2784
      %v2808 = vunpack.c.l.b16 %v2785
      %v2809 = vunpack.c.l.b16 %v2786
      %v2810 = vpack.c.b16 %v2803, %v2802
      %v2811 = vpack.c.b16 %v2805, %v2804
      %v2812 = vpack.c.b16 %v2807, %v2806
      %v2813 = vpack.c.b16 %v2809, %v2808
      %vm2818 = vcmask 523264
      %v2820 = vsel %vm2818, %v2778, 0
      %2822 = vmatprep.subr.bf16.mxu0 0
      %2823 = vmatpush1.bf16.msra.mxu0 0
      %2824 = vmatprep.subr.bf16.mxu0 0
      %2825 = vmatpush1.bf16.msra.mxu0 0
      %2826 = vmatprep.subr.bf16.mxu0 0
      %2827 = vmatpush1.bf16.msra.mxu0 0
      %2828 = vmatprep.subr.bf16.mxu0 0
      %2829 = vmatpush1.bf16.msra.mxu0 0
      %2830 = vmatprep.subr.bf16.mxu0 0
      %2831 = vmatpush1.bf16.msra.mxu0 %v2813
      %2832 = vmatprep.subr.bf16.mxu0 0
      %2833 = vmatpush1.bf16.msra.mxu0 %v2812
      %2834 = vmatprep.subr.bf16.mxu0 0
      %2835 = vmatpush1.bf16.msra.mxu0 %v2811
      %2836 = vmatprep.subr.bf16.mxu0 0
      %2837 = vmatpush1.bf16.msra.mxu0 %v2810
      %2838 = vmatprep.subr.bf16.mxu0 0
      %2839 = vmatpush2.bf16.msra.mxu0 0
      %2840 = vmatprep.subr.bf16.mxu0 0
      %2841 = vmatpush2.bf16.msra.mxu0 0
      %2842 = vmatprep.subr.bf16.mxu0 0
      %2843 = vmatpush2.bf16.msra.mxu0 0
      %2844 = vmatprep.subr.bf16.mxu0 0
      %2845 = vmatpush2.bf16.msra.mxu0 0
      %2846 = vmatprep.subr.bf16.mxu0 0
      %2847 = vmatpush2.bf16.msra.mxu0 0
      %2848 = vmatprep.subr.bf16.mxu0 0
      %2849 = vmatpush2.bf16.msra.mxu0 0
      %2850 = vmatprep.subr.bf16.mxu0 0
      %2851 = vmatpush2.bf16.msra.mxu0 0
      %2852 = vmatprep.subr.bf16.mxu0 0
      %2853 = vmatpush2.bf16.msra.mxu0 0
      %2854 = vmatprep.mubr.bf16.mxu0 0
      %2855 = vmatmul.mubr.bf16.gmra.mxu0 %v2820
      %v2856 = vpop.f32.mrf.mxu0
      %v2857 = vadd.f32 %v2792, %v2856
      %v2858 = vpop.f32.mrf.mxu0
      %v2859 = vpop.f32.mrf.mxu0
      %v2860 = vpop.f32.mrf.mxu0
      %2861 = vdwg.mxu0
      %v2862 = vadd.f32 %v2857, %v2701
      %v2863 = vld [vmem:[%s14] sm:$0x1]
      %v2864 = vld [vmem:[%s15] sm:$0x1]
      %v2865 = vsel %vm643, %v2862, 0.0
      %2866 = vadd.xlane.f32.xlu0 %v2865
      %v2867 = vpop.xlane.xlu0 %2866
      %v2868 = vmul.f32 %v2867, %v647
      %v2869 = vsub.f32 %v2862, %v2868
      %v2870 = vmul.f32 %v2869, %v2869
      %v2871 = vsel %vm643, %v2870, 0.0
      %2872 = vadd.xlane.f32.xlu0 %v2871
      %v2873 = vpop.xlane.xlu0 %2872
      %v2874 = vmul.f32 %v2873, %v647
      %v2875 = vadd.f32 %v2874, 1e-12
      %v2876 = vrsqrt.pop %v2875
      %v2877 = vmul.f32 %v2869, %v2876
      %v2879 = vlaneseq
      %v2880 = vshrl.u32 %v2879, 7
      %v2881 = vsub.s32 0, %v2880
      %v2882 = vrot.slane %v2863, %v2881
      %v2884 = vmul.f32 %v2877, %v2882
      %v2886 = vlaneseq
      %v2887 = vshrl.u32 %v2886, 7
      %v2888 = vsub.s32 0, %v2887
      %v2889 = vrot.slane %v2864, %v2888
      %v2891 = vadd.f32 %v2884, %v2889
      %v2892 = vpack.c.bf16 %v2891, %v2891
      %s2893 = scalar_lea.vmem %s4, 16
      %v2894 = vld [vmem:[%s2893] sm:$0xf]
      %v2895 = vld [vmem:[%s2893 + $0x4] sm:$0xf]
      %v2896 = vld [vmem:[%s2893 + $0x8] sm:$0xf]
      %v2897 = vld [vmem:[%s2893 + $0xc] sm:$0xf]
      %s2898 = scalar_lea.vmem %s5, 1
      %v2899 = vld [vmem:[%s2898] sm:$0x1]
      %v2901 = vlaneseq
      %v2902 = vshrl.u32 %v2901, 7
      %v2903 = vsub.s32 0, %v2902
      %v2904 = vrot.slane %v2899, %v2903
      %v2910 = vunpack.c.l.b16 %v2894
      %v2911 = vunpack.c.l.b16 %v2895
      %v2912 = vunpack.c.l.b16 %v2896
      %v2913 = vunpack.c.l.b16 %v2897
      %v2914 = vpack.c.b16 %v2911, %v2910
      %v2915 = vpack.c.b16 %v2913, %v2912
      %v2919 = vsel %vm643, %v2892, 0
      %2921 = vmatprep.subr.bf16.mxu0 0
      %2922 = vmatpush1.bf16.msra.mxu0 0
      %2923 = vmatprep.subr.bf16.mxu0 0
      %2924 = vmatpush1.bf16.msra.mxu0 0
      %2925 = vmatprep.subr.bf16.mxu0 0
      %2926 = vmatpush1.bf16.msra.mxu0 0
      %2927 = vmatprep.subr.bf16.mxu0 0
      %2928 = vmatpush1.bf16.msra.mxu0 0
      %2929 = vmatprep.subr.bf16.mxu0 0
      %2930 = vmatpush1.bf16.msra.mxu0 0
      %2931 = vmatprep.subr.bf16.mxu0 0
      %2932 = vmatpush1.bf16.msra.mxu0 0
      %2933 = vmatprep.subr.bf16.mxu0 0
      %2934 = vmatpush1.bf16.msra.mxu0 %v2915
      %2935 = vmatprep.subr.bf16.mxu0 0
      %2936 = vmatpush1.bf16.msra.mxu0 %v2914
      %2937 = vmatprep.subr.bf16.mxu0 0
      %2938 = vmatpush2.bf16.msra.mxu0 0
      %2939 = vmatprep.subr.bf16.mxu0 0
      %2940 = vmatpush2.bf16.msra.mxu0 0
      %2941 = vmatprep.subr.bf16.mxu0 0
      %2942 = vmatpush2.bf16.msra.mxu0 0
      %2943 = vmatprep.subr.bf16.mxu0 0
      %2944 = vmatpush2.bf16.msra.mxu0 0
      %2945 = vmatprep.subr.bf16.mxu0 0
      %2946 = vmatpush2.bf16.msra.mxu0 0
      %2947 = vmatprep.subr.bf16.mxu0 0
      %2948 = vmatpush2.bf16.msra.mxu0 0
      %2949 = vmatprep.subr.bf16.mxu0 0
      %2950 = vmatpush2.bf16.msra.mxu0 0
      %2951 = vmatprep.subr.bf16.mxu0 0
      %2952 = vmatpush2.bf16.msra.mxu0 0
      %2953 = vmatprep.mubr.bf16.mxu0 0
      %2954 = vmatmul.mubr.bf16.gmra.mxu0 %v2919
      %v2955 = vpop.f32.mrf.mxu0
      %v2956 = vadd.f32 %v2904, %v2955
      %v2957 = vpop.f32.mrf.mxu0
      %v2958 = vpop.f32.mrf.mxu0
      %v2959 = vpop.f32.mrf.mxu0
      %2960 = vdwg.mxu0
      %2962 = vrot.lane.b32.xlu0 %v2956, 120
      %v2963 = vpop.permute.xlu0 %2962
      %2965 = vrot.lane.b32.xlu0 %v2956, 112
      %v2966 = vpop.permute.xlu0 %2965
      %2968 = vrot.lane.b32.xlu0 %v2956, 104
      %v2969 = vpop.permute.xlu0 %2968
      %v2971 = vcombine.low %v2956, %v2966
      %v2972 = vcombine.high %v2956, %v2966
      %v2974 = vunpack.c.l.s4 1983009808
      %v2975 = vunpack.c.0.s8 %v2974
      %v2976 = vlaneseq
      %v2977 = vshrl.u32 %v2976, 7
      %v2978 = vsub.s32 %v2975, %v2977
      %v2979 = vrot.slane %v2971, %v2978
      %v2981 = vunpack.c.l.s4 1983009808
      %v2982 = vunpack.c.0.s8 %v2981
      %v2983 = vlaneseq
      %v2984 = vshrl.u32 %v2983, 7
      %v2985 = vsub.s32 %v2982, %v2984
      %v2986 = vrot.slane %v2972, %v2985
      %v2987 = vcombine.low %v2963, %v2969
      %v2988 = vcombine.high %v2963, %v2969
      %v2990 = vunpack.c.l.s4 1983009808
      %v2991 = vunpack.c.0.s8 %v2990
      %v2992 = vlaneseq
      %v2993 = vshrl.u32 %v2992, 7
      %v2994 = vsub.s32 %v2991, %v2993
      %v2995 = vrot.slane %v2987, %v2994
      %v2997 = vunpack.c.l.s4 1983009808
      %v2998 = vunpack.c.0.s8 %v2997
      %v2999 = vlaneseq
      %v3000 = vshrl.u32 %v2999, 7
      %v3001 = vsub.s32 %v2998, %v3000
      %v3002 = vrot.slane %v2988, %v3001
      %v3003 = vcombine.low %v2979, %v2995
      %v3004 = vcombine.high %v2979, %v2995
      %v3006 = vunpack.c.l.s4 1934713408
      %v3007 = vunpack.c.0.s8 %v3006
      %v3008 = vlaneseq
      %v3009 = vshrl.u32 %v3008, 7
      %v3010 = vsub.s32 %v3007, %v3009
      %v3011 = vrot.slane %v3003, %v3010
      %v3013 = vunpack.c.l.s4 1934713408
      %v3014 = vunpack.c.0.s8 %v3013
      %v3015 = vlaneseq
      %v3016 = vshrl.u32 %v3015, 7
      %v3017 = vsub.s32 %v3014, %v3016
      %v3018 = vrot.slane %v3004, %v3017
      %v3019 = vcombine.low %v2986, %v3002
      %v3020 = vcombine.high %v2986, %v3002
      %v3022 = vunpack.c.l.s4 1934713408
      %v3023 = vunpack.c.0.s8 %v3022
      %v3024 = vlaneseq
      %v3025 = vshrl.u32 %v3024, 7
      %v3026 = vsub.s32 %v3023, %v3025
      %v3027 = vrot.slane %v3019, %v3026
      %v3029 = vunpack.c.l.s4 1934713408
      %v3030 = vunpack.c.0.s8 %v3029
      %v3031 = vlaneseq
      %v3032 = vshrl.u32 %v3031, 7
      %v3033 = vsub.s32 %v3030, %v3032
      %v3034 = vrot.slane %v3020, %v3033
      %v3035 = vcombine.high %v3011, 0.0
      %v3036 = vcombine.high %v3018, 0.0
      %v3037 = vcombine.high %v3027, 0.0
      %v3038 = vcombine.high %v3034, 0.0
      %3039 = vrot.lane.b32.xlu0 %v2956, 96
      %v3040 = vpop.permute.xlu0 %3039
      %3041 = vrot.lane.b32.xlu0 %v2963, 96
      %v3042 = vpop.permute.xlu0 %3041
      %3043 = vrot.lane.b32.xlu0 %v2966, 96
      %v3044 = vpop.permute.xlu0 %3043
      %3045 = vrot.lane.b32.xlu0 %v2969, 96
      %v3046 = vpop.permute.xlu0 %3045
      %v3051 = vcombine.low %v3040, %v3044
      %v3052 = vcombine.high %v3040, %v3044
      %v3054 = vunpack.c.l.s4 1983009808
      %v3055 = vunpack.c.0.s8 %v3054
      %v3056 = vlaneseq
      %v3057 = vshrl.u32 %v3056, 7
      %v3058 = vsub.s32 %v3055, %v3057
      %v3059 = vrot.slane %v3051, %v3058
      %v3061 = vunpack.c.l.s4 1983009808
      %v3062 = vunpack.c.0.s8 %v3061
      %v3063 = vlaneseq
      %v3064 = vshrl.u32 %v3063, 7
      %v3065 = vsub.s32 %v3062, %v3064
      %v3066 = vrot.slane %v3052, %v3065
      %v3067 = vcombine.low %v3042, %v3046
      %v3068 = vcombine.high %v3042, %v3046
      %v3070 = vunpack.c.l.s4 1983009808
      %v3071 = vunpack.c.0.s8 %v3070
      %v3072 = vlaneseq
      %v3073 = vshrl.u32 %v3072, 7
      %v3074 = vsub.s32 %v3071, %v3073
      %v3075 = vrot.slane %v3067, %v3074
      %v3077 = vunpack.c.l.s4 1983009808
      %v3078 = vunpack.c.0.s8 %v3077
      %v3079 = vlaneseq
      %v3080 = vshrl.u32 %v3079, 7
      %v3081 = vsub.s32 %v3078, %v3080
      %v3082 = vrot.slane %v3068, %v3081
      %v3083 = vcombine.low %v3059, %v3075
      %v3084 = vcombine.high %v3059, %v3075
      %v3086 = vunpack.c.l.s4 1934713408
      %v3087 = vunpack.c.0.s8 %v3086
      %v3088 = vlaneseq
      %v3089 = vshrl.u32 %v3088, 7
      %v3090 = vsub.s32 %v3087, %v3089
      %v3091 = vrot.slane %v3083, %v3090
      %v3093 = vunpack.c.l.s4 1934713408
      %v3094 = vunpack.c.0.s8 %v3093
      %v3095 = vlaneseq
      %v3096 = vshrl.u32 %v3095, 7
      %v3097 = vsub.s32 %v3094, %v3096
      %v3098 = vrot.slane %v3084, %v3097
      %v3099 = vcombine.low %v3066, %v3082
      %v3100 = vcombine.high %v3066, %v3082
      %v3102 = vunpack.c.l.s4 1934713408
      %v3103 = vunpack.c.0.s8 %v3102
      %v3104 = vlaneseq
      %v3105 = vshrl.u32 %v3104, 7
      %v3106 = vsub.s32 %v3103, %v3105
      %v3107 = vrot.slane %v3099, %v3106
      %v3109 = vunpack.c.l.s4 1934713408
      %v3110 = vunpack.c.0.s8 %v3109
      %v3111 = vlaneseq
      %v3112 = vshrl.u32 %v3111, 7
      %v3113 = vsub.s32 %v3110, %v3112
      %v3114 = vrot.slane %v3100, %v3113
      %v3115 = vcombine.high %v3091, 0.0
      %v3116 = vcombine.high %v3098, 0.0
      %v3117 = vcombine.high %v3107, 0.0
      %v3118 = vcombine.high %v3114, 0.0
      %3119 = vrot.lane.b32.xlu0 %v2956, 64
      %v3120 = vpop.permute.xlu0 %3119
      %3121 = vrot.lane.b32.xlu0 %v2963, 64
      %v3122 = vpop.permute.xlu0 %3121
      %3123 = vrot.lane.b32.xlu0 %v2966, 64
      %v3124 = vpop.permute.xlu0 %3123
      %3125 = vrot.lane.b32.xlu0 %v2969, 64
      %v3126 = vpop.permute.xlu0 %3125
      %v3131 = vcombine.low %v3120, %v3124
      %v3132 = vcombine.high %v3120, %v3124
      %v3134 = vunpack.c.l.s4 1983009808
      %v3135 = vunpack.c.0.s8 %v3134
      %v3136 = vlaneseq
      %v3137 = vshrl.u32 %v3136, 7
      %v3138 = vsub.s32 %v3135, %v3137
      %v3139 = vrot.slane %v3131, %v3138
      %v3141 = vunpack.c.l.s4 1983009808
      %v3142 = vunpack.c.0.s8 %v3141
      %v3143 = vlaneseq
      %v3144 = vshrl.u32 %v3143, 7
      %v3145 = vsub.s32 %v3142, %v3144
      %v3146 = vrot.slane %v3132, %v3145
      %v3147 = vcombine.low %v3122, %v3126
      %v3148 = vcombine.high %v3122, %v3126
      %v3150 = vunpack.c.l.s4 1983009808
      %v3151 = vunpack.c.0.s8 %v3150
      %v3152 = vlaneseq
      %v3153 = vshrl.u32 %v3152, 7
      %v3154 = vsub.s32 %v3151, %v3153
      %v3155 = vrot.slane %v3147, %v3154
      %v3157 = vunpack.c.l.s4 1983009808
      %v3158 = vunpack.c.0.s8 %v3157
      %v3159 = vlaneseq
      %v3160 = vshrl.u32 %v3159, 7
      %v3161 = vsub.s32 %v3158, %v3160
      %v3162 = vrot.slane %v3148, %v3161
      %v3163 = vcombine.low %v3139, %v3155
      %v3164 = vcombine.high %v3139, %v3155
      %v3166 = vunpack.c.l.s4 1934713408
      %v3167 = vunpack.c.0.s8 %v3166
      %v3168 = vlaneseq
      %v3169 = vshrl.u32 %v3168, 7
      %v3170 = vsub.s32 %v3167, %v3169
      %v3171 = vrot.slane %v3163, %v3170
      %v3173 = vunpack.c.l.s4 1934713408
      %v3174 = vunpack.c.0.s8 %v3173
      %v3175 = vlaneseq
      %v3176 = vshrl.u32 %v3175, 7
      %v3177 = vsub.s32 %v3174, %v3176
      %v3178 = vrot.slane %v3164, %v3177
      %v3179 = vcombine.low %v3146, %v3162
      %v3180 = vcombine.high %v3146, %v3162
      %v3182 = vunpack.c.l.s4 1934713408
      %v3183 = vunpack.c.0.s8 %v3182
      %v3184 = vlaneseq
      %v3185 = vshrl.u32 %v3184, 7
      %v3186 = vsub.s32 %v3183, %v3185
      %v3187 = vrot.slane %v3179, %v3186
      %v3189 = vunpack.c.l.s4 1934713408
      %v3190 = vunpack.c.0.s8 %v3189
      %v3191 = vlaneseq
      %v3192 = vshrl.u32 %v3191, 7
      %v3193 = vsub.s32 %v3190, %v3192
      %v3194 = vrot.slane %v3180, %v3193
      %v3195 = vcombine.high %v3171, 0.0
      %v3196 = vcombine.high %v3178, 0.0
      %v3197 = vcombine.high %v3187, 0.0
      %v3198 = vcombine.high %v3194, 0.0
      %v3199 = vpack.c.bf16 %v3011, %v3011
      %v3200 = vpack.c.bf16 %v3035, %v3035
      %v3201 = vpack.c.bf16 %v3018, %v3018
      %v3202 = vpack.c.bf16 %v3036, %v3036
      %v3203 = vpack.c.bf16 %v3027, %v3027
      %v3204 = vpack.c.bf16 %v3037, %v3037
      %v3205 = vpack.c.bf16 %v3034, %v3034
      %v3206 = vpack.c.bf16 %v3038, %v3038
      %v3207 = vpack.c.bf16 %v3091, %v3091
      %v3208 = vpack.c.bf16 %v3115, %v3115
      %v3209 = vpack.c.bf16 %v3098, %v3098
      %v3210 = vpack.c.bf16 %v3116, %v3116
      %v3211 = vpack.c.bf16 %v3107, %v3107
      %v3212 = vpack.c.bf16 %v3117, %v3117
      %v3213 = vpack.c.bf16 %v3114, %v3114
      %v3214 = vpack.c.bf16 %v3118, %v3118
      %v3215 = vcombine.low %v3199, %v3203
      %v3217 = vunpack.c.l.s4 1983009808
      %v3218 = vunpack.c.0.s8 %v3217
      %v3219 = vlaneseq
      %v3220 = vshrl.u32 %v3219, 7
      %v3221 = vsub.s32 %v3218, %v3220
      %v3222 = vrot.slane %v3215, %v3221
      %v3223 = vcombine.low %v3201, %v3205
      %v3225 = vunpack.c.l.s4 1983009808
      %v3226 = vunpack.c.0.s8 %v3225
      %v3227 = vlaneseq
      %v3228 = vshrl.u32 %v3227, 7
      %v3229 = vsub.s32 %v3226, %v3228
      %v3230 = vrot.slane %v3223, %v3229
      %v3231 = vcombine.low %v3222, %v3230
      %v3233 = vunpack.c.l.s4 1934713408
      %v3234 = vunpack.c.0.s8 %v3233
      %v3235 = vlaneseq
      %v3236 = vshrl.u32 %v3235, 7
      %v3237 = vsub.s32 %v3234, %v3236
      %v3238 = vrot.slane %v3231, %v3237
      %v3239 = vcombine.high %v3238, 0
      %v3240 = vcombine.low %v3200, %v3204
      %v3242 = vunpack.c.l.s4 1983009808
      %v3243 = vunpack.c.0.s8 %v3242
      %v3244 = vlaneseq
      %v3245 = vshrl.u32 %v3244, 7
      %v3246 = vsub.s32 %v3243, %v3245
      %v3247 = vrot.slane %v3240, %v3246
      %v3248 = vcombine.low %v3202, %v3206
      %v3250 = vunpack.c.l.s4 1983009808
      %v3251 = vunpack.c.0.s8 %v3250
      %v3252 = vlaneseq
      %v3253 = vshrl.u32 %v3252, 7
      %v3254 = vsub.s32 %v3251, %v3253
      %v3255 = vrot.slane %v3248, %v3254
      %v3256 = vcombine.low %v3247, %v3255
      %v3258 = vunpack.c.l.s4 1934713408
      %v3259 = vunpack.c.0.s8 %v3258
      %v3260 = vlaneseq
      %v3261 = vshrl.u32 %v3260, 7
      %v3262 = vsub.s32 %v3259, %v3261
      %v3263 = vrot.slane %v3256, %v3262
      %v3264 = vcombine.high %v3263, 0
      %v3267 = vpack.i.b16 %v3263, %v3238
      %v3268 = vshrl.u32 %v3238, 16
      %v3269 = vshrl.u32 %v3263, 16
      %v3270 = vpack.i.b16 %v3269, %v3268
      %v3273 = vpack.i.b16 %v3264, %v3239
      %v3274 = vshrl.u32 %v3239, 16
      %v3275 = vshrl.u32 %v3264, 16
      %v3276 = vpack.i.b16 %v3275, %v3274
      %3277 = vxpose.xlu0.c.b16.start [1/8] %v3207, 128
      %3278 = vxpose.xlu0.c.b16.cont [2/8] 0, 128
      %3279 = vxpose.xlu0.c.b16.cont [3/8] 0, 128
      %3280 = vxpose.xlu0.c.b16.cont [4/8] 0, 128
      %3281 = vxpose.xlu0.c.b16.cont [5/8] 0, 128
      %3282 = vxpose.xlu0.c.b16.cont [6/8] 0, 128
      %3283 = vxpose.xlu0.c.b16.cont [7/8] 0, 128
      %3284 = vxpose.xlu0.c.b16.end [8/8] 0, 128
      %v3285 = vpop.trf.xlu0
      %v3286 = vpop.trf.xlu0
      %v3287 = vpop.trf.xlu0
      %v3288 = vpop.trf.xlu0
      %v3289 = vpop.trf.xlu0
      %v3290 = vpop.trf.xlu0
      %v3291 = vpop.trf.xlu0
      %v3292 = vpop.trf.xlu0
      %3293 = vxpose.xlu0.c.b16.start [1/8] %v3208, 128
      %3294 = vxpose.xlu0.c.b16.cont [2/8] 0, 128
      %3295 = vxpose.xlu0.c.b16.cont [3/8] 0, 128
      %3296 = vxpose.xlu0.c.b16.cont [4/8] 0, 128
      %3297 = vxpose.xlu0.c.b16.cont [5/8] 0, 128
      %3298 = vxpose.xlu0.c.b16.cont [6/8] 0, 128
      %3299 = vxpose.xlu0.c.b16.cont [7/8] 0, 128
      %3300 = vxpose.xlu0.c.b16.end [8/8] 0, 128
      %v3301 = vpop.trf.xlu0
      %v3302 = vpop.trf.xlu0
      %v3303 = vpop.trf.xlu0
      %v3304 = vpop.trf.xlu0
      %v3305 = vpop.trf.xlu0
      %v3306 = vpop.trf.xlu0
      %v3307 = vpop.trf.xlu0
      %v3308 = vpop.trf.xlu0
      %3309 = vxpose.xlu0.c.b16.start [1/8] %v3209, 128
      %3310 = vxpose.xlu0.c.b16.cont [2/8] 0, 128
      %3311 = vxpose.xlu0.c.b16.cont [3/8] 0, 128
      %3312 = vxpose.xlu0.c.b16.cont [4/8] 0, 128
      %3313 = vxpose.xlu0.c.b16.cont [5/8] 0, 128
      %3314 = vxpose.xlu0.c.b16.cont [6/8] 0, 128
      %3315 = vxpose.xlu0.c.b16.cont [7/8] 0, 128
      %3316 = vxpose.xlu0.c.b16.end [8/8] 0, 128
      %v3317 = vpop.trf.xlu0
      %v3318 = vpop.trf.xlu0
      %v3319 = vpop.trf.xlu0
      %v3320 = vpop.trf.xlu0
      %v3321 = vpop.trf.xlu0
      %v3322 = vpop.trf.xlu0
      %v3323 = vpop.trf.xlu0
      %v3324 = vpop.trf.xlu0
      %3325 = vxpose.xlu0.c.b16.start [1/8] %v3210, 128
      %3326 = vxpose.xlu0.c.b16.cont [2/8] 0, 128
      %3327 = vxpose.xlu0.c.b16.cont [3/8] 0, 128
      %3328 = vxpose.xlu0.c.b16.cont [4/8] 0, 128
      %3329 = vxpose.xlu0.c.b16.cont [5/8] 0, 128
      %3330 = vxpose.xlu0.c.b16.cont [6/8] 0, 128
      %3331 = vxpose.xlu0.c.b16.cont [7/8] 0, 128
      %3332 = vxpose.xlu0.c.b16.end [8/8] 0, 128
      %v3333 = vpop.trf.xlu0
      %v3334 = vpop.trf.xlu0
      %v3335 = vpop.trf.xlu0
      %v3336 = vpop.trf.xlu0
      %v3337 = vpop.trf.xlu0
      %v3338 = vpop.trf.xlu0
      %v3339 = vpop.trf.xlu0
      %v3340 = vpop.trf.xlu0
      %3341 = vxpose.xlu0.c.b16.start [1/8] %v3211, 128
      %3342 = vxpose.xlu0.c.b16.cont [2/8] 0, 128
      %3343 = vxpose.xlu0.c.b16.cont [3/8] 0, 128
      %3344 = vxpose.xlu0.c.b16.cont [4/8] 0, 128
      %3345 = vxpose.xlu0.c.b16.cont [5/8] 0, 128
      %3346 = vxpose.xlu0.c.b16.cont [6/8] 0, 128
      %3347 = vxpose.xlu0.c.b16.cont [7/8] 0, 128
      %3348 = vxpose.xlu0.c.b16.end [8/8] 0, 128
      %v3349 = vpop.trf.xlu0
      %v3350 = vpop.trf.xlu0
      %v3351 = vpop.trf.xlu0
      %v3352 = vpop.trf.xlu0
      %v3353 = vpop.trf.xlu0
      %v3354 = vpop.trf.xlu0
      %v3355 = vpop.trf.xlu0
      %v3356 = vpop.trf.xlu0
      %3357 = vxpose.xlu0.c.b16.start [1/8] %v3212, 128
      %3358 = vxpose.xlu0.c.b16.cont [2/8] 0, 128
      %3359 = vxpose.xlu0.c.b16.cont [3/8] 0, 128
      %3360 = vxpose.xlu0.c.b16.cont [4/8] 0, 128
      %3361 = vxpose.xlu0.c.b16.cont [5/8] 0, 128
      %3362 = vxpose.xlu0.c.b16.cont [6/8] 0, 128
      %3363 = vxpose.xlu0.c.b16.cont [7/8] 0, 128
      %3364 = vxpose.xlu0.c.b16.end [8/8] 0, 128
      %v3365 = vpop.trf.xlu0
      %v3366 = vpop.trf.xlu0
      %v3367 = vpop.trf.xlu0
      %v3368 = vpop.trf.xlu0
      %v3369 = vpop.trf.xlu0
      %v3370 = vpop.trf.xlu0
      %v3371 = vpop.trf.xlu0
      %v3372 = vpop.trf.xlu0
      %3373 = vxpose.xlu0.c.b16.start [1/8] %v3213, 128
      %3374 = vxpose.xlu0.c.b16.cont [2/8] 0, 128
      %3375 = vxpose.xlu0.c.b16.cont [3/8] 0, 128
      %3376 = vxpose.xlu0.c.b16.cont [4/8] 0, 128
      %3377 = vxpose.xlu0.c.b16.cont [5/8] 0, 128
      %3378 = vxpose.xlu0.c.b16.cont [6/8] 0, 128
      %3379 = vxpose.xlu0.c.b16.cont [7/8] 0, 128
      %3380 = vxpose.xlu0.c.b16.end [8/8] 0, 128
      %v3381 = vpop.trf.xlu0
      %v3382 = vpop.trf.xlu0
      %v3383 = vpop.trf.xlu0
      %v3384 = vpop.trf.xlu0
      %v3385 = vpop.trf.xlu0
      %v3386 = vpop.trf.xlu0
      %v3387 = vpop.trf.xlu0
      %v3388 = vpop.trf.xlu0
      %3389 = vxpose.xlu0.c.b16.start [1/8] %v3214, 128
      %3390 = vxpose.xlu0.c.b16.cont [2/8] 0, 128
      %3391 = vxpose.xlu0.c.b16.cont [3/8] 0, 128
      %3392 = vxpose.xlu0.c.b16.cont [4/8] 0, 128
      %3393 = vxpose.xlu0.c.b16.cont [5/8] 0, 128
      %3394 = vxpose.xlu0.c.b16.cont [6/8] 0, 128
      %3395 = vxpose.xlu0.c.b16.cont [7/8] 0, 128
      %3396 = vxpose.xlu0.c.b16.end [8/8] 0, 128
      %v3397 = vpop.trf.xlu0
      %v3398 = vpop.trf.xlu0
      %v3399 = vpop.trf.xlu0
      %v3400 = vpop.trf.xlu0
      %v3401 = vpop.trf.xlu0
      %v3402 = vpop.trf.xlu0
      %v3403 = vpop.trf.xlu0
      %v3404 = vpop.trf.xlu0
      %v3405 = vcombine.low %v3285, %v3349
      %v3407 = vunpack.c.l.s4 1983009808
      %v3408 = vunpack.c.0.s8 %v3407
      %v3409 = vlaneseq
      %v3410 = vshrl.u32 %v3409, 7
      %v3411 = vsub.s32 %v3408, %v3410
      %v3412 = vrot.slane %v3405, %v3411
      %v3413 = vcombine.low %v3317, %v3381
      %v3415 = vunpack.c.l.s4 1983009808
      %v3416 = vunpack.c.0.s8 %v3415
      %v3417 = vlaneseq
      %v3418 = vshrl.u32 %v3417, 7
      %v3419 = vsub.s32 %v3416, %v3418
      %v3420 = vrot.slane %v3413, %v3419
      %v3421 = vcombine.low %v3412, %v3420
      %v3422 = vcombine.high %v3412, %v3420
      %v3424 = vunpack.c.l.s4 1934713408
      %v3425 = vunpack.c.0.s8 %v3424
      %v3426 = vlaneseq
      %v3427 = vshrl.u32 %v3426, 7
      %v3428 = vsub.s32 %v3425, %v3427
      %v3429 = vrot.slane %v3421, %v3428
      %v3431 = vunpack.c.l.s4 1934713408
      %v3432 = vunpack.c.0.s8 %v3431
      %v3433 = vlaneseq
      %v3434 = vshrl.u32 %v3433, 7
      %v3435 = vsub.s32 %v3432, %v3434
      %v3436 = vrot.slane %v3422, %v3435
      %v3437 = vcombine.high %v3429, 0
      %v3438 = vcombine.high %v3436, 0
      %v3439 = vcombine.low %v3301, %v3365
      %v3441 = vunpack.c.l.s4 1983009808
      %v3442 = vunpack.c.0.s8 %v3441
      %v3443 = vlaneseq
      %v3444 = vshrl.u32 %v3443, 7
      %v3445 = vsub.s32 %v3442, %v3444
      %v3446 = vrot.slane %v3439, %v3445
      %v3447 = vcombine.low %v3333, %v3397
      %v3449 = vunpack.c.l.s4 1983009808
      %v3450 = vunpack.c.0.s8 %v3449
      %v3451 = vlaneseq
      %v3452 = vshrl.u32 %v3451, 7
      %v3453 = vsub.s32 %v3450, %v3452
      %v3454 = vrot.slane %v3447, %v3453
      %v3455 = vcombine.low %v3446, %v3454
      %v3456 = vcombine.high %v3446, %v3454
      %v3458 = vunpack.c.l.s4 1934713408
      %v3459 = vunpack.c.0.s8 %v3458
      %v3460 = vlaneseq
      %v3461 = vshrl.u32 %v3460, 7
      %v3462 = vsub.s32 %v3459, %v3461
      %v3463 = vrot.slane %v3455, %v3462
      %v3465 = vunpack.c.l.s4 1934713408
      %v3466 = vunpack.c.0.s8 %v3465
      %v3467 = vlaneseq
      %v3468 = vshrl.u32 %v3467, 7
      %v3469 = vsub.s32 %v3466, %v3468
      %v3470 = vrot.slane %v3456, %v3469
      %v3471 = vcombine.high %v3463, 0
      %v3472 = vcombine.high %v3470, 0
      %v3475 = vpack.i.b16 %v3463, %v3429
      %v3477 = vshrl.u32 %v3429, 16
      %v3478 = vshrl.u32 %v3463, 16
      %v3479 = vpack.i.b16 %v3478, %v3477
      %v3483 = vpack.i.b16 %v3471, %v3437
      %v3485 = vshrl.u32 %v3437, 16
      %v3486 = vshrl.u32 %v3471, 16
      %v3487 = vpack.i.b16 %v3486, %v3485
      %v3491 = vpack.i.b16 %v3470, %v3436
      %v3493 = vshrl.u32 %v3436, 16
      %v3494 = vshrl.u32 %v3470, 16
      %v3495 = vpack.i.b16 %v3494, %v3493
      %v3499 = vpack.i.b16 %v3472, %v3438
      %v3501 = vshrl.u32 %v3438, 16
      %v3502 = vshrl.u32 %v3472, 16
      %v3503 = vpack.i.b16 %v3502, %v3501
      %3505 = vxpose.xlu0.c.b16.start [1/8] %v3475, 128
      %3506 = vxpose.xlu0.c.b16.cont [2/8] 0, 128
      %3507 = vxpose.xlu0.c.b16.cont [3/8] 0, 128
      %3508 = vxpose.xlu0.c.b16.cont [4/8] 0, 128
      %3509 = vxpose.xlu0.c.b16.cont [5/8] 0, 128
      %3510 = vxpose.xlu0.c.b16.cont [6/8] 0, 128
      %3511 = vxpose.xlu0.c.b16.cont [7/8] 0, 128
      %3512 = vxpose.xlu0.c.b16.end [8/8] 0, 128
      %v3513 = vpop.trf.xlu0
      %v3514 = vpop.trf.xlu0
      %v3515 = vpop.trf.xlu0
      %v3516 = vpop.trf.xlu0
      %v3517 = vpop.trf.xlu0
      %v3518 = vpop.trf.xlu0
      %v3519 = vpop.trf.xlu0
      %v3520 = vpop.trf.xlu0
      %3521 = vxpose.xlu0.c.b16.start [1/8] %v3479, 128
      %3522 = vxpose.xlu0.c.b16.cont [2/8] 0, 128
      %3523 = vxpose.xlu0.c.b16.cont [3/8] 0, 128
      %3524 = vxpose.xlu0.c.b16.cont [4/8] 0, 128
      %3525 = vxpose.xlu0.c.b16.cont [5/8] 0, 128
      %3526 = vxpose.xlu0.c.b16.cont [6/8] 0, 128
      %3527 = vxpose.xlu0.c.b16.cont [7/8] 0, 128
      %3528 = vxpose.xlu0.c.b16.end [8/8] 0, 128
      %v3529 = vpop.trf.xlu0
      %v3530 = vpop.trf.xlu0
      %v3531 = vpop.trf.xlu0
      %v3532 = vpop.trf.xlu0
      %v3533 = vpop.trf.xlu0
      %v3534 = vpop.trf.xlu0
      %v3535 = vpop.trf.xlu0
      %v3536 = vpop.trf.xlu0
      %3537 = vxpose.xlu0.c.b16.start [1/8] %v3483, 128
      %3538 = vxpose.xlu0.c.b16.cont [2/8] 0, 128
      %3539 = vxpose.xlu0.c.b16.cont [3/8] 0, 128
      %3540 = vxpose.xlu0.c.b16.cont [4/8] 0, 128
      %3541 = vxpose.xlu0.c.b16.cont [5/8] 0, 128
      %3542 = vxpose.xlu0.c.b16.cont [6/8] 0, 128
      %3543 = vxpose.xlu0.c.b16.cont [7/8] 0, 128
      %3544 = vxpose.xlu0.c.b16.end [8/8] 0, 128
      %v3545 = vpop.trf.xlu0
      %v3546 = vpop.trf.xlu0
      %v3547 = vpop.trf.xlu0
      %v3548 = vpop.trf.xlu0
      %v3549 = vpop.trf.xlu0
      %v3550 = vpop.trf.xlu0
      %v3551 = vpop.trf.xlu0
      %v3552 = vpop.trf.xlu0
      %3553 = vxpose.xlu0.c.b16.start [1/8] %v3487, 128
      %3554 = vxpose.xlu0.c.b16.cont [2/8] 0, 128
      %3555 = vxpose.xlu0.c.b16.cont [3/8] 0, 128
      %3556 = vxpose.xlu0.c.b16.cont [4/8] 0, 128
      %3557 = vxpose.xlu0.c.b16.cont [5/8] 0, 128
      %3558 = vxpose.xlu0.c.b16.cont [6/8] 0, 128
      %3559 = vxpose.xlu0.c.b16.cont [7/8] 0, 128
      %3560 = vxpose.xlu0.c.b16.end [8/8] 0, 128
      %v3561 = vpop.trf.xlu0
      %v3562 = vpop.trf.xlu0
      %v3563 = vpop.trf.xlu0
      %v3564 = vpop.trf.xlu0
      %v3565 = vpop.trf.xlu0
      %v3566 = vpop.trf.xlu0
      %v3567 = vpop.trf.xlu0
      %v3568 = vpop.trf.xlu0
      %3569 = vxpose.xlu0.c.b16.start [1/8] %v3491, 128
      %3570 = vxpose.xlu0.c.b16.cont [2/8] 0, 128
      %3571 = vxpose.xlu0.c.b16.cont [3/8] 0, 128
      %3572 = vxpose.xlu0.c.b16.cont [4/8] 0, 128
      %3573 = vxpose.xlu0.c.b16.cont [5/8] 0, 128
      %3574 = vxpose.xlu0.c.b16.cont [6/8] 0, 128
      %3575 = vxpose.xlu0.c.b16.cont [7/8] 0, 128
      %3576 = vxpose.xlu0.c.b16.end [8/8] 0, 128
      %v3577 = vpop.trf.xlu0
      %v3578 = vpop.trf.xlu0
      %v3579 = vpop.trf.xlu0
      %v3580 = vpop.trf.xlu0
      %v3581 = vpop.trf.xlu0
      %v3582 = vpop.trf.xlu0
      %v3583 = vpop.trf.xlu0
      %v3584 = vpop.trf.xlu0
      %3585 = vxpose.xlu0.c.b16.start [1/8] %v3495, 128
      %3586 = vxpose.xlu0.c.b16.cont [2/8] 0, 128
      %3587 = vxpose.xlu0.c.b16.cont [3/8] 0, 128
      %3588 = vxpose.xlu0.c.b16.cont [4/8] 0, 128
      %3589 = vxpose.xlu0.c.b16.cont [5/8] 0, 128
      %3590 = vxpose.xlu0.c.b16.cont [6/8] 0, 128
      %3591 = vxpose.xlu0.c.b16.cont [7/8] 0, 128
      %3592 = vxpose.xlu0.c.b16.end [8/8] 0, 128
      %v3593 = vpop.trf.xlu0
      %v3594 = vpop.trf.xlu0
      %v3595 = vpop.trf.xlu0
      %v3596 = vpop.trf.xlu0
      %v3597 = vpop.trf.xlu0
      %v3598 = vpop.trf.xlu0
      %v3599 = vpop.trf.xlu0
      %v3600 = vpop.trf.xlu0
      %3601 = vxpose.xlu0.c.b16.start [1/8] %v3499, 128
      %3602 = vxpose.xlu0.c.b16.cont [2/8] 0, 128
      %3603 = vxpose.xlu0.c.b16.cont [3/8] 0, 128
      %3604 = vxpose.xlu0.c.b16.cont [4/8] 0, 128
      %3605 = vxpose.xlu0.c.b16.cont [5/8] 0, 128
      %3606 = vxpose.xlu0.c.b16.cont [6/8] 0, 128
      %3607 = vxpose.xlu0.c.b16.cont [7/8] 0, 128
      %3608 = vxpose.xlu0.c.b16.end [8/8] 0, 128
      %v3609 = vpop.trf.xlu0
      %v3610 = vpop.trf.xlu0
      %v3611 = vpop.trf.xlu0
      %v3612 = vpop.trf.xlu0
      %v3613 = vpop.trf.xlu0
      %v3614 = vpop.trf.xlu0
      %v3615 = vpop.trf.xlu0
      %v3616 = vpop.trf.xlu0
      %3617 = vxpose.xlu0.c.b16.start [1/8] %v3503, 128
      %3618 = vxpose.xlu0.c.b16.cont [2/8] 0, 128
      %3619 = vxpose.xlu0.c.b16.cont [3/8] 0, 128
      %3620 = vxpose.xlu0.c.b16.cont [4/8] 0, 128
      %3621 = vxpose.xlu0.c.b16.cont [5/8] 0, 128
      %3622 = vxpose.xlu0.c.b16.cont [6/8] 0, 128
      %3623 = vxpose.xlu0.c.b16.cont [7/8] 0, 128
      %3624 = vxpose.xlu0.c.b16.end [8/8] 0, 128
      %v3625 = vpop.trf.xlu0
      %v3626 = vpop.trf.xlu0
      %v3627 = vpop.trf.xlu0
      %v3628 = vpop.trf.xlu0
      %v3629 = vpop.trf.xlu0
      %v3630 = vpop.trf.xlu0
      %v3631 = vpop.trf.xlu0
      %v3632 = vpop.trf.xlu0
      %v3633 = vcombine.low %v3513, %v3577
      %v3635 = vunpack.c.l.s4 1983009808
      %v3636 = vunpack.c.0.s8 %v3635
      %v3637 = vlaneseq
      %v3638 = vshrl.u32 %v3637, 7
      %v3639 = vsub.s32 %v3636, %v3638
      %v3640 = vrot.slane %v3633, %v3639
      %v3641 = vcombine.low %v3545, %v3609
      %v3643 = vunpack.c.l.s4 1983009808
      %v3644 = vunpack.c.0.s8 %v3643
      %v3645 = vlaneseq
      %v3646 = vshrl.u32 %v3645, 7
      %v3647 = vsub.s32 %v3644, %v3646
      %v3648 = vrot.slane %v3641, %v3647
      %v3649 = vcombine.low %v3640, %v3648
      %v3651 = vunpack.c.l.s4 1934713408
      %v3652 = vunpack.c.0.s8 %v3651
      %v3653 = vlaneseq
      %v3654 = vshrl.u32 %v3653, 7
      %v3655 = vsub.s32 %v3652, %v3654
      %v3656 = vrot.slane %v3649, %v3655
      %v3657 = vcombine.high %v3656, 0
      %v3658 = vcombine.low %v3529, %v3593
      %v3660 = vunpack.c.l.s4 1983009808
      %v3661 = vunpack.c.0.s8 %v3660
      %v3662 = vlaneseq
      %v3663 = vshrl.u32 %v3662, 7
      %v3664 = vsub.s32 %v3661, %v3663
      %v3665 = vrot.slane %v3658, %v3664
      %v3666 = vcombine.low %v3561, %v3625
      %v3668 = vunpack.c.l.s4 1983009808
      %v3669 = vunpack.c.0.s8 %v3668
      %v3670 = vlaneseq
      %v3671 = vshrl.u32 %v3670, 7
      %v3672 = vsub.s32 %v3669, %v3671
      %v3673 = vrot.slane %v3666, %v3672
      %v3674 = vcombine.low %v3665, %v3673
      %v3676 = vunpack.c.l.s4 1934713408
      %v3677 = vunpack.c.0.s8 %v3676
      %v3678 = vlaneseq
      %v3679 = vshrl.u32 %v3678, 7
      %v3680 = vsub.s32 %v3677, %v3679
      %v3681 = vrot.slane %v3674, %v3680
      %v3682 = vcombine.high %v3681, 0
      %v3685 = vpack.i.b16 %v3681, %v3656
      %v3686 = vshrl.u32 %v3656, 16
      %v3687 = vshrl.u32 %v3681, 16
      %v3688 = vpack.i.b16 %v3687, %v3686
      %v3691 = vpack.i.b16 %v3682, %v3657
      %v3692 = vshrl.u32 %v3657, 16
      %v3693 = vshrl.u32 %v3682, 16
      %v3694 = vpack.i.b16 %v3693, %v3692
      %v3696 = vsel %vm1480, %v3267, 0
      %v3699 = vsel %vm1484, %v3685, 0
      %3701 = vmatprep.subr.bf16.mxu0 0
      %3702 = vmatpush1.bf16.msra.mxu0 0
      %3703 = vmatprep.subr.bf16.mxu0 0
      %3704 = vmatpush1.bf16.msra.mxu0 0
      %3705 = vmatprep.subr.bf16.mxu0 0
      %3706 = vmatpush1.bf16.msra.mxu0 0
      %3707 = vmatprep.subr.bf16.mxu0 0
      %3708 = vmatpush1.bf16.msra.mxu0 0
      %3709 = vmatprep.subr.bf16.mxu0 0
      %3710 = vmatpush1.bf16.msra.mxu0 0
      %3711 = vmatprep.subr.bf16.mxu0 0
      %3712 = vmatpush1.bf16.msra.mxu0 0
      %3713 = vmatprep.subr.bf16.mxu0 0
      %3714 = vmatpush1.bf16.msra.mxu0 0
      %3715 = vmatprep.subr.bf16.mxu0 0
      %3716 = vmatpush1.bf16.msra.mxu0 %v3699
      %3717 = vmatprep.subr.bf16.mxu0 0
      %3718 = vmatpush2.bf16.msra.mxu0 0
      %3719 = vmatprep.subr.bf16.mxu0 0
      %3720 = vmatpush2.bf16.msra.mxu0 0
      %3721 = vmatprep.subr.bf16.mxu0 0
      %3722 = vmatpush2.bf16.msra.mxu0 0
      %3723 = vmatprep.subr.bf16.mxu0 0
      %3724 = vmatpush2.bf16.msra.mxu0 0
      %3725 = vmatprep.subr.bf16.mxu0 0
      %3726 = vmatpush2.bf16.msra.mxu0 0
      %3727 = vmatprep.subr.bf16.mxu0 0
      %3728 = vmatpush2.bf16.msra.mxu0 0
      %3729 = vmatprep.subr.bf16.mxu0 0
      %3730 = vmatpush2.bf16.msra.mxu0 0
      %3731 = vmatprep.subr.bf16.mxu0 0
      %3732 = vmatpush2.bf16.msra.mxu0 0
      %3733 = vmatprep.mubr.bf16.mxu0 0
      %3734 = vmatmul.mubr.bf16.gmra.mxu0 %v3696
      %v3735 = vpop.f32.mrf.mxu0
      %v3736 = vadd.f32 %v998, %v3735
      %v3737 = vpop.f32.mrf.mxu0
      %v3738 = vpop.f32.mrf.mxu0
      %v3739 = vpop.f32.mrf.mxu0
      %3740 = vdwg.mxu0
      %v3742 = vsel %vm1480, %v3270, 0
      %v3745 = vsel %vm1484, %v3688, 0
      %3747 = vmatprep.subr.bf16.mxu0 0
      %3748 = vmatpush1.bf16.msra.mxu0 0
      %3749 = vmatprep.subr.bf16.mxu0 0
      %3750 = vmatpush1.bf16.msra.mxu0 0
      %3751 = vmatprep.subr.bf16.mxu0 0
      %3752 = vmatpush1.bf16.msra.mxu0 0
      %3753 = vmatprep.subr.bf16.mxu0 0
      %3754 = vmatpush1.bf16.msra.mxu0 0
      %3755 = vmatprep.subr.bf16.mxu0 0
      %3756 = vmatpush1.bf16.msra.mxu0 0
      %3757 = vmatprep.subr.bf16.mxu0 0
      %3758 = vmatpush1.bf16.msra.mxu0 0
      %3759 = vmatprep.subr.bf16.mxu0 0
      %3760 = vmatpush1.bf16.msra.mxu0 0
      %3761 = vmatprep.subr.bf16.mxu0 0
      %3762 = vmatpush1.bf16.msra.mxu0 %v3745
      %3763 = vmatprep.subr.bf16.mxu0 0
      %3764 = vmatpush2.bf16.msra.mxu0 0
      %3765 = vmatprep.subr.bf16.mxu0 0
      %3766 = vmatpush2.bf16.msra.mxu0 0
      %3767 = vmatprep.subr.bf16.mxu0 0
      %3768 = vmatpush2.bf16.msra.mxu0 0
      %3769 = vmatprep.subr.bf16.mxu0 0
      %3770 = vmatpush2.bf16.msra.mxu0 0
      %3771 = vmatprep.subr.bf16.mxu0 0
      %3772 = vmatpush2.bf16.msra.mxu0 0
      %3773 = vmatprep.subr.bf16.mxu0 0
      %3774 = vmatpush2.bf16.msra.mxu0 0
      %3775 = vmatprep.subr.bf16.mxu0 0
      %3776 = vmatpush2.bf16.msra.mxu0 0
      %3777 = vmatprep.subr.bf16.mxu0 0
      %3778 = vmatpush2.bf16.msra.mxu0 0
      %3779 = vmatprep.mubr.bf16.mxu0 0
      %3780 = vmatmul.mubr.bf16.gmra.mxu0 %v3742
      %v3781 = vpop.f32.mrf.mxu0
      %v3782 = vadd.f32 %v998, %v3781
      %v3783 = vpop.f32.mrf.mxu0
      %v3784 = vpop.f32.mrf.mxu0
      %v3785 = vpop.f32.mrf.mxu0
      %3786 = vdwg.mxu0
      %v3788 = vsel %vm1480, %v3273, 0
      %v3791 = vsel %vm1484, %v3691, 0
      %3793 = vmatprep.subr.bf16.mxu0 0
      %3794 = vmatpush1.bf16.msra.mxu0 0
      %3795 = vmatprep.subr.bf16.mxu0 0
      %3796 = vmatpush1.bf16.msra.mxu0 0
      %3797 = vmatprep.subr.bf16.mxu0 0
      %3798 = vmatpush1.bf16.msra.mxu0 0
      %3799 = vmatprep.subr.bf16.mxu0 0
      %3800 = vmatpush1.bf16.msra.mxu0 0
      %3801 = vmatprep.subr.bf16.mxu0 0
      %3802 = vmatpush1.bf16.msra.mxu0 0
      %3803 = vmatprep.subr.bf16.mxu0 0
      %3804 = vmatpush1.bf16.msra.mxu0 0
      %3805 = vmatprep.subr.bf16.mxu0 0
      %3806 = vmatpush1.bf16.msra.mxu0 0
      %3807 = vmatprep.subr.bf16.mxu0 0
      %3808 = vmatpush1.bf16.msra.mxu0 %v3791
      %3809 = vmatprep.subr.bf16.mxu0 0
      %3810 = vmatpush2.bf16.msra.mxu0 0
      %3811 = vmatprep.subr.bf16.mxu0 0
      %3812 = vmatpush2.bf16.msra.mxu0 0
      %3813 = vmatprep.subr.bf16.mxu0 0
      %3814 = vmatpush2.bf16.msra.mxu0 0
      %3815 = vmatprep.subr.bf16.mxu0 0
      %3816 = vmatpush2.bf16.msra.mxu0 0
      %3817 = vmatprep.subr.bf16.mxu0 0
      %3818 = vmatpush2.bf16.msra.mxu0 0
      %3819 = vmatprep.subr.bf16.mxu0 0
      %3820 = vmatpush2.bf16.msra.mxu0 0
      %3821 = vmatprep.subr.bf16.mxu0 0
      %3822 = vmatpush2.bf16.msra.mxu0 0
      %3823 = vmatprep.subr.bf16.mxu0 0
      %3824 = vmatpush2.bf16.msra.mxu0 0
      %3825 = vmatprep.mubr.bf16.mxu0 0
      %3826 = vmatmul.mubr.bf16.gmra.mxu0 %v3788
      %v3827 = vpop.f32.mrf.mxu0
      %v3828 = vadd.f32 %v998, %v3827
      %v3829 = vpop.f32.mrf.mxu0
      %v3830 = vpop.f32.mrf.mxu0
      %v3831 = vpop.f32.mrf.mxu0
      %3832 = vdwg.mxu0
      %v3834 = vsel %vm1480, %v3276, 0
      %v3837 = vsel %vm1484, %v3694, 0
      %3839 = vmatprep.subr.bf16.mxu0 0
      %3840 = vmatpush1.bf16.msra.mxu0 0
      %3841 = vmatprep.subr.bf16.mxu0 0
      %3842 = vmatpush1.bf16.msra.mxu0 0
      %3843 = vmatprep.subr.bf16.mxu0 0
      %3844 = vmatpush1.bf16.msra.mxu0 0
      %3845 = vmatprep.subr.bf16.mxu0 0
      %3846 = vmatpush1.bf16.msra.mxu0 0
      %3847 = vmatprep.subr.bf16.mxu0 0
      %3848 = vmatpush1.bf16.msra.mxu0 0
      %3849 = vmatprep.subr.bf16.mxu0 0
      %3850 = vmatpush1.bf16.msra.mxu0 0
      %3851 = vmatprep.subr.bf16.mxu0 0
      %3852 = vmatpush1.bf16.msra.mxu0 0
      %3853 = vmatprep.subr.bf16.mxu0 0
      %3854 = vmatpush1.bf16.msra.mxu0 %v3837
      %3855 = vmatprep.subr.bf16.mxu0 0
      %3856 = vmatpush2.bf16.msra.mxu0 0
      %3857 = vmatprep.subr.bf16.mxu0 0
      %3858 = vmatpush2.bf16.msra.mxu0 0
      %3859 = vmatprep.subr.bf16.mxu0 0
      %3860 = vmatpush2.bf16.msra.mxu0 0
      %3861 = vmatprep.subr.bf16.mxu0 0
      %3862 = vmatpush2.bf16.msra.mxu0 0
      %3863 = vmatprep.subr.bf16.mxu0 0
      %3864 = vmatpush2.bf16.msra.mxu0 0
      %3865 = vmatprep.subr.bf16.mxu0 0
      %3866 = vmatpush2.bf16.msra.mxu0 0
      %3867 = vmatprep.subr.bf16.mxu0 0
      %3868 = vmatpush2.bf16.msra.mxu0 0
      %3869 = vmatprep.subr.bf16.mxu0 0
      %3870 = vmatpush2.bf16.msra.mxu0 0
      %3871 = vmatprep.mubr.bf16.mxu0 0
      %3872 = vmatmul.mubr.bf16.gmra.mxu0 %v3834
      %v3873 = vpop.f32.mrf.mxu0
      %v3874 = vadd.f32 %v998, %v3873
      %v3875 = vpop.f32.mrf.mxu0
      %v3876 = vpop.f32.mrf.mxu0
      %v3877 = vpop.f32.mrf.mxu0
      %3878 = vdwg.mxu0
      %v3879 = vsel %vm1480, %v3736, -inf
      %3880 = vmax.xlane.f32.xlu0 %v3879
      %v3881 = vpop.xlane.xlu0 %3880
      %v3882 = vsel %vm1480, %v3782, -inf
      %3883 = vmax.xlane.f32.xlu0 %v3882
      %v3884 = vpop.xlane.xlu0 %3883
      %v3885 = vsel %vm1480, %v3828, -inf
      %3886 = vmax.xlane.f32.xlu0 %v3885
      %v3887 = vpop.xlane.xlu0 %3886
      %v3888 = vsel %vm1480, %v3874, -inf
      %3889 = vmax.xlane.f32.xlu0 %v3888
      %v3890 = vpop.xlane.xlu0 %3889
      %v3891 = vsub.f32 %v3736, %v3881
      %v3892 = vsub.f32 %v3782, %v3884
      %v3893 = vsub.f32 %v3828, %v3887
      %v3894 = vsub.f32 %v3874, %v3890
      %v3895 = vmul.f32 %v3891, 1.442695
      %v3896 = vpow.pop %v3895
      %v3897 = vmul.f32 %v3892, 1.442695
      %v3898 = vpow.pop %v3897
      %v3899 = vmul.f32 %v3893, 1.442695
      %v3900 = vpow.pop %v3899
      %v3901 = vmul.f32 %v3894, 1.442695
      %v3902 = vpow.pop %v3901
      %v3903 = vsel %vm1480, %v3896, 0.0
      %3904 = vadd.xlane.f32.xlu0 %v3903
      %v3905 = vpop.xlane.xlu0 %3904
      %v3906 = vsel %vm1480, %v3898, 0.0
      %3907 = vadd.xlane.f32.xlu0 %v3906
      %v3908 = vpop.xlane.xlu0 %3907
      %v3909 = vsel %vm1480, %v3900, 0.0
      %3910 = vadd.xlane.f32.xlu0 %v3909
      %v3911 = vpop.xlane.xlu0 %3910
      %v3912 = vsel %vm1480, %v3902, 0.0
      %3913 = vadd.xlane.f32.xlu0 %v3912
      %v3914 = vpop.xlane.xlu0 %3913
      %v3915 = vrcp.pop %v3905
      %v3916 = vrcp.pop %v3908
      %v3917 = vrcp.pop %v3911
      %v3918 = vrcp.pop %v3914
      %v3919 = vmul.f32 %v3896, %v3915
      %v3920 = vmul.f32 %v3898, %v3916
      %v3921 = vmul.f32 %v3900, %v3917
      %v3922 = vmul.f32 %v3902, %v3918
      %v3923 = vpack.c.bf16 %v3919, %v3919
      %v3924 = vpack.c.bf16 %v3920, %v3920
      %v3925 = vpack.c.bf16 %v3921, %v3921
      %v3926 = vpack.c.bf16 %v3922, %v3922
      %v3927 = vpack.c.bf16 %v3171, %v3171
      %v3928 = vpack.c.bf16 %v3195, %v3195
      %v3929 = vpack.c.bf16 %v3178, %v3178
      %v3930 = vpack.c.bf16 %v3196, %v3196
      %v3931 = vpack.c.bf16 %v3187, %v3187
      %v3932 = vpack.c.bf16 %v3197, %v3197
      %v3933 = vpack.c.bf16 %v3194, %v3194
      %v3934 = vpack.c.bf16 %v3198, %v3198
      %3935 = vxpose.xlu0.c.b16.start [1/8] %v3927, 128
      %3936 = vxpose.xlu0.c.b16.cont [2/8] 0, 128
      %3937 = vxpose.xlu0.c.b16.cont [3/8] 0, 128
      %3938 = vxpose.xlu0.c.b16.cont [4/8] 0, 128
      %3939 = vxpose.xlu0.c.b16.cont [5/8] 0, 128
      %3940 = vxpose.xlu0.c.b16.cont [6/8] 0, 128
      %3941 = vxpose.xlu0.c.b16.cont [7/8] 0, 128
      %3942 = vxpose.xlu0.c.b16.end [8/8] 0, 128
      %v3943 = vpop.trf.xlu0
      %v3944 = vpop.trf.xlu0
      %v3945 = vpop.trf.xlu0
      %v3946 = vpop.trf.xlu0
      %v3947 = vpop.trf.xlu0
      %v3948 = vpop.trf.xlu0
      %v3949 = vpop.trf.xlu0
      %v3950 = vpop.trf.xlu0
      %3951 = vxpose.xlu0.c.b16.start [1/8] %v3928, 128
      %3952 = vxpose.xlu0.c.b16.cont [2/8] 0, 128
      %3953 = vxpose.xlu0.c.b16.cont [3/8] 0, 128
      %3954 = vxpose.xlu0.c.b16.cont [4/8] 0, 128
      %3955 = vxpose.xlu0.c.b16.cont [5/8] 0, 128
      %3956 = vxpose.xlu0.c.b16.cont [6/8] 0, 128
      %3957 = vxpose.xlu0.c.b16.cont [7/8] 0, 128
      %3958 = vxpose.xlu0.c.b16.end [8/8] 0, 128
      %v3959 = vpop.trf.xlu0
      %v3960 = vpop.trf.xlu0
      %v3961 = vpop.trf.xlu0
      %v3962 = vpop.trf.xlu0
      %v3963 = vpop.trf.xlu0
      %v3964 = vpop.trf.xlu0
      %v3965 = vpop.trf.xlu0
      %v3966 = vpop.trf.xlu0
      %3967 = vxpose.xlu0.c.b16.start [1/8] %v3929, 128
      %3968 = vxpose.xlu0.c.b16.cont [2/8] 0, 128
      %3969 = vxpose.xlu0.c.b16.cont [3/8] 0, 128
      %3970 = vxpose.xlu0.c.b16.cont [4/8] 0, 128
      %3971 = vxpose.xlu0.c.b16.cont [5/8] 0, 128
      %3972 = vxpose.xlu0.c.b16.cont [6/8] 0, 128
      %3973 = vxpose.xlu0.c.b16.cont [7/8] 0, 128
      %3974 = vxpose.xlu0.c.b16.end [8/8] 0, 128
      %v3975 = vpop.trf.xlu0
      %v3976 = vpop.trf.xlu0
      %v3977 = vpop.trf.xlu0
      %v3978 = vpop.trf.xlu0
      %v3979 = vpop.trf.xlu0
      %v3980 = vpop.trf.xlu0
      %v3981 = vpop.trf.xlu0
      %v3982 = vpop.trf.xlu0
      %3983 = vxpose.xlu0.c.b16.start [1/8] %v3930, 128
      %3984 = vxpose.xlu0.c.b16.cont [2/8] 0, 128
      %3985 = vxpose.xlu0.c.b16.cont [3/8] 0, 128
      %3986 = vxpose.xlu0.c.b16.cont [4/8] 0, 128
      %3987 = vxpose.xlu0.c.b16.cont [5/8] 0, 128
      %3988 = vxpose.xlu0.c.b16.cont [6/8] 0, 128
      %3989 = vxpose.xlu0.c.b16.cont [7/8] 0, 128
      %3990 = vxpose.xlu0.c.b16.end [8/8] 0, 128
      %v3991 = vpop.trf.xlu0
      %v3992 = vpop.trf.xlu0
      %v3993 = vpop.trf.xlu0
      %v3994 = vpop.trf.xlu0
      %v3995 = vpop.trf.xlu0
      %v3996 = vpop.trf.xlu0
      %v3997 = vpop.trf.xlu0
      %v3998 = vpop.trf.xlu0
      %3999 = vxpose.xlu0.c.b16.start [1/8] %v3931, 128
      %4000 = vxpose.xlu0.c.b16.cont [2/8] 0, 128
      %4001 = vxpose.xlu0.c.b16.cont [3/8] 0, 128
      %4002 = vxpose.xlu0.c.b16.cont [4/8] 0, 128
      %4003 = vxpose.xlu0.c.b16.cont [5/8] 0, 128
      %4004 = vxpose.xlu0.c.b16.cont [6/8] 0, 128
      %4005 = vxpose.xlu0.c.b16.cont [7/8] 0, 128
      %4006 = vxpose.xlu0.c.b16.end [8/8] 0, 128
      %v4007 = vpop.trf.xlu0
      %v4008 = vpop.trf.xlu0
      %v4009 = vpop.trf.xlu0
      %v4010 = vpop.trf.xlu0
      %v4011 = vpop.trf.xlu0
      %v4012 = vpop.trf.xlu0
      %v4013 = vpop.trf.xlu0
      %v4014 = vpop.trf.xlu0
      %4015 = vxpose.xlu0.c.b16.start [1/8] %v3932, 128
      %4016 = vxpose.xlu0.c.b16.cont [2/8] 0, 128
      %4017 = vxpose.xlu0.c.b16.cont [3/8] 0, 128
      %4018 = vxpose.xlu0.c.b16.cont [4/8] 0, 128
      %4019 = vxpose.xlu0.c.b16.cont [5/8] 0, 128
      %4020 = vxpose.xlu0.c.b16.cont [6/8] 0, 128
      %4021 = vxpose.xlu0.c.b16.cont [7/8] 0, 128
      %4022 = vxpose.xlu0.c.b16.end [8/8] 0, 128
      %v4023 = vpop.trf.xlu0
      %v4024 = vpop.trf.xlu0
      %v4025 = vpop.trf.xlu0
      %v4026 = vpop.trf.xlu0
      %v4027 = vpop.trf.xlu0
      %v4028 = vpop.trf.xlu0
      %v4029 = vpop.trf.xlu0
      %v4030 = vpop.trf.xlu0
      %4031 = vxpose.xlu0.c.b16.start [1/8] %v3933, 128
      %4032 = vxpose.xlu0.c.b16.cont [2/8] 0, 128
      %4033 = vxpose.xlu0.c.b16.cont [3/8] 0, 128
      %4034 = vxpose.xlu0.c.b16.cont [4/8] 0, 128
      %4035 = vxpose.xlu0.c.b16.cont [5/8] 0, 128
      %4036 = vxpose.xlu0.c.b16.cont [6/8] 0, 128
      %4037 = vxpose.xlu0.c.b16.cont [7/8] 0, 128
      %4038 = vxpose.xlu0.c.b16.end [8/8] 0, 128
      %v4039 = vpop.trf.xlu0
      %v4040 = vpop.trf.xlu0
      %v4041 = vpop.trf.xlu0
      %v4042 = vpop.trf.xlu0
      %v4043 = vpop.trf.xlu0
      %v4044 = vpop.trf.xlu0
      %v4045 = vpop.trf.xlu0
      %v4046 = vpop.trf.xlu0
      %4047 = vxpose.xlu0.c.b16.start [1/8] %v3934, 128
      %4048 = vxpose.xlu0.c.b16.cont [2/8] 0, 128
      %4049 = vxpose.xlu0.c.b16.cont [3/8] 0, 128
      %4050 = vxpose.xlu0.c.b16.cont [4/8] 0, 128
      %4051 = vxpose.xlu0.c.b16.cont [5/8] 0, 128
      %4052 = vxpose.xlu0.c.b16.cont [6/8] 0, 128
      %4053 = vxpose.xlu0.c.b16.cont [7/8] 0, 128
      %4054 = vxpose.xlu0.c.b16.end [8/8] 0, 128
      %v4055 = vpop.trf.xlu0
      %v4056 = vpop.trf.xlu0
      %v4057 = vpop.trf.xlu0
      %v4058 = vpop.trf.xlu0
      %v4059 = vpop.trf.xlu0
      %v4060 = vpop.trf.xlu0
      %v4061 = vpop.trf.xlu0
      %v4062 = vpop.trf.xlu0
      %v4063 = vcombine.low %v3943, %v4007
      %v4065 = vunpack.c.l.s4 1983009808
      %v4066 = vunpack.c.0.s8 %v4065
      %v4067 = vlaneseq
      %v4068 = vshrl.u32 %v4067, 7
      %v4069 = vsub.s32 %v4066, %v4068
      %v4070 = vrot.slane %v4063, %v4069
      %v4071 = vcombine.low %v3975, %v4039
      %v4073 = vunpack.c.l.s4 1983009808
      %v4074 = vunpack.c.0.s8 %v4073
      %v4075 = vlaneseq
      %v4076 = vshrl.u32 %v4075, 7
      %v4077 = vsub.s32 %v4074, %v4076
      %v4078 = vrot.slane %v4071, %v4077
      %v4079 = vcombine.low %v4070, %v4078
      %v4080 = vcombine.high %v4070, %v4078
      %v4082 = vunpack.c.l.s4 1934713408
      %v4083 = vunpack.c.0.s8 %v4082
      %v4084 = vlaneseq
      %v4085 = vshrl.u32 %v4084, 7
      %v4086 = vsub.s32 %v4083, %v4085
      %v4087 = vrot.slane %v4079, %v4086
      %v4089 = vunpack.c.l.s4 1934713408
      %v4090 = vunpack.c.0.s8 %v4089
      %v4091 = vlaneseq
      %v4092 = vshrl.u32 %v4091, 7
      %v4093 = vsub.s32 %v4090, %v4092
      %v4094 = vrot.slane %v4080, %v4093
      %v4095 = vcombine.high %v4087, 0
      %v4096 = vcombine.high %v4094, 0
      %v4097 = vcombine.low %v3959, %v4023
      %v4099 = vunpack.c.l.s4 1983009808
      %v4100 = vunpack.c.0.s8 %v4099
      %v4101 = vlaneseq
      %v4102 = vshrl.u32 %v4101, 7
      %v4103 = vsub.s32 %v4100, %v4102
      %v4104 = vrot.slane %v4097, %v4103
      %v4105 = vcombine.low %v3991, %v4055
      %v4107 = vunpack.c.l.s4 1983009808
      %v4108 = vunpack.c.0.s8 %v4107
      %v4109 = vlaneseq
      %v4110 = vshrl.u32 %v4109, 7
      %v4111 = vsub.s32 %v4108, %v4110
      %v4112 = vrot.slane %v4105, %v4111
      %v4113 = vcombine.low %v4104, %v4112
      %v4114 = vcombine.high %v4104, %v4112
      %v4116 = vunpack.c.l.s4 1934713408
      %v4117 = vunpack.c.0.s8 %v4116
      %v4118 = vlaneseq
      %v4119 = vshrl.u32 %v4118, 7
      %v4120 = vsub.s32 %v4117, %v4119
      %v4121 = vrot.slane %v4113, %v4120
      %v4123 = vunpack.c.l.s4 1934713408
      %v4124 = vunpack.c.0.s8 %v4123
      %v4125 = vlaneseq
      %v4126 = vshrl.u32 %v4125, 7
      %v4127 = vsub.s32 %v4124, %v4126
      %v4128 = vrot.slane %v4114, %v4127
      %v4129 = vcombine.high %v4121, 0
      %v4130 = vcombine.high %v4128, 0
      %v4133 = vpack.i.b16 %v4121, %v4087
      %v4135 = vshrl.u32 %v4087, 16
      %v4136 = vshrl.u32 %v4121, 16
      %v4137 = vpack.i.b16 %v4136, %v4135
      %v4141 = vpack.i.b16 %v4129, %v4095
      %v4143 = vshrl.u32 %v4095, 16
      %v4144 = vshrl.u32 %v4129, 16
      %v4145 = vpack.i.b16 %v4144, %v4143
      %v4149 = vpack.i.b16 %v4128, %v4094
      %v4151 = vshrl.u32 %v4094, 16
      %v4152 = vshrl.u32 %v4128, 16
      %v4153 = vpack.i.b16 %v4152, %v4151
      %v4157 = vpack.i.b16 %v4130, %v4096
      %v4159 = vshrl.u32 %v4096, 16
      %v4160 = vshrl.u32 %v4130, 16
      %v4161 = vpack.i.b16 %v4160, %v4159
      %4163 = vxpose.xlu0.c.b16.start [1/8] %v4133, 128
      %4164 = vxpose.xlu0.c.b16.cont [2/8] 0, 128
      %4165 = vxpose.xlu0.c.b16.cont [3/8] 0, 128
      %4166 = vxpose.xlu0.c.b16.cont [4/8] 0, 128
      %4167 = vxpose.xlu0.c.b16.cont [5/8] 0, 128
      %4168 = vxpose.xlu0.c.b16.cont [6/8] 0, 128
      %4169 = vxpose.xlu0.c.b16.cont [7/8] 0, 128
      %4170 = vxpose.xlu0.c.b16.end [8/8] 0, 128
      %v4171 = vpop.trf.xlu0
      %v4172 = vpop.trf.xlu0
      %v4173 = vpop.trf.xlu0
      %v4174 = vpop.trf.xlu0
      %v4175 = vpop.trf.xlu0
      %v4176 = vpop.trf.xlu0
      %v4177 = vpop.trf.xlu0
      %v4178 = vpop.trf.xlu0
      %4179 = vxpose.xlu0.c.b16.start [1/8] %v4137, 128
      %4180 = vxpose.xlu0.c.b16.cont [2/8] 0, 128
      %4181 = vxpose.xlu0.c.b16.cont [3/8] 0, 128
      %4182 = vxpose.xlu0.c.b16.cont [4/8] 0, 128
      %4183 = vxpose.xlu0.c.b16.cont [5/8] 0, 128
      %4184 = vxpose.xlu0.c.b16.cont [6/8] 0, 128
      %4185 = vxpose.xlu0.c.b16.cont [7/8] 0, 128
      %4186 = vxpose.xlu0.c.b16.end [8/8] 0, 128
      %v4187 = vpop.trf.xlu0
      %v4188 = vpop.trf.xlu0
      %v4189 = vpop.trf.xlu0
      %v4190 = vpop.trf.xlu0
      %v4191 = vpop.trf.xlu0
      %v4192 = vpop.trf.xlu0
      %v4193 = vpop.trf.xlu0
      %v4194 = vpop.trf.xlu0
      %4195 = vxpose.xlu0.c.b16.start [1/8] %v4141, 128
      %4196 = vxpose.xlu0.c.b16.cont [2/8] 0, 128
      %4197 = vxpose.xlu0.c.b16.cont [3/8] 0, 128
      %4198 = vxpose.xlu0.c.b16.cont [4/8] 0, 128
      %4199 = vxpose.xlu0.c.b16.cont [5/8] 0, 128
      %4200 = vxpose.xlu0.c.b16.cont [6/8] 0, 128
      %4201 = vxpose.xlu0.c.b16.cont [7/8] 0, 128
      %4202 = vxpose.xlu0.c.b16.end [8/8] 0, 128
      %v4203 = vpop.trf.xlu0
      %v4204 = vpop.trf.xlu0
      %v4205 = vpop.trf.xlu0
      %v4206 = vpop.trf.xlu0
      %v4207 = vpop.trf.xlu0
      %v4208 = vpop.trf.xlu0
      %v4209 = vpop.trf.xlu0
      %v4210 = vpop.trf.xlu0
      %4211 = vxpose.xlu0.c.b16.start [1/8] %v4145, 128
      %4212 = vxpose.xlu0.c.b16.cont [2/8] 0, 128
      %4213 = vxpose.xlu0.c.b16.cont [3/8] 0, 128
      %4214 = vxpose.xlu0.c.b16.cont [4/8] 0, 128
      %4215 = vxpose.xlu0.c.b16.cont [5/8] 0, 128
      %4216 = vxpose.xlu0.c.b16.cont [6/8] 0, 128
      %4217 = vxpose.xlu0.c.b16.cont [7/8] 0, 128
      %4218 = vxpose.xlu0.c.b16.end [8/8] 0, 128
      %v4219 = vpop.trf.xlu0
      %v4220 = vpop.trf.xlu0
      %v4221 = vpop.trf.xlu0
      %v4222 = vpop.trf.xlu0
      %v4223 = vpop.trf.xlu0
      %v4224 = vpop.trf.xlu0
      %v4225 = vpop.trf.xlu0
      %v4226 = vpop.trf.xlu0
      %4227 = vxpose.xlu0.c.b16.start [1/8] %v4149, 128
      %4228 = vxpose.xlu0.c.b16.cont [2/8] 0, 128
      %4229 = vxpose.xlu0.c.b16.cont [3/8] 0, 128
      %4230 = vxpose.xlu0.c.b16.cont [4/8] 0, 128
      %4231 = vxpose.xlu0.c.b16.cont [5/8] 0, 128
      %4232 = vxpose.xlu0.c.b16.cont [6/8] 0, 128
      %4233 = vxpose.xlu0.c.b16.cont [7/8] 0, 128
      %4234 = vxpose.xlu0.c.b16.end [8/8] 0, 128
      %v4235 = vpop.trf.xlu0
      %v4236 = vpop.trf.xlu0
      %v4237 = vpop.trf.xlu0
      %v4238 = vpop.trf.xlu0
      %v4239 = vpop.trf.xlu0
      %v4240 = vpop.trf.xlu0
      %v4241 = vpop.trf.xlu0
      %v4242 = vpop.trf.xlu0
      %4243 = vxpose.xlu0.c.b16.start [1/8] %v4153, 128
      %4244 = vxpose.xlu0.c.b16.cont [2/8] 0, 128
      %4245 = vxpose.xlu0.c.b16.cont [3/8] 0, 128
      %4246 = vxpose.xlu0.c.b16.cont [4/8] 0, 128
      %4247 = vxpose.xlu0.c.b16.cont [5/8] 0, 128
      %4248 = vxpose.xlu0.c.b16.cont [6/8] 0, 128
      %4249 = vxpose.xlu0.c.b16.cont [7/8] 0, 128
      %4250 = vxpose.xlu0.c.b16.end [8/8] 0, 128
      %v4251 = vpop.trf.xlu0
      %v4252 = vpop.trf.xlu0
      %v4253 = vpop.trf.xlu0
      %v4254 = vpop.trf.xlu0
      %v4255 = vpop.trf.xlu0
      %v4256 = vpop.trf.xlu0
      %v4257 = vpop.trf.xlu0
      %v4258 = vpop.trf.xlu0
      %4259 = vxpose.xlu0.c.b16.start [1/8] %v4157, 128
      %4260 = vxpose.xlu0.c.b16.cont [2/8] 0, 128
      %4261 = vxpose.xlu0.c.b16.cont [3/8] 0, 128
      %4262 = vxpose.xlu0.c.b16.cont [4/8] 0, 128
      %4263 = vxpose.xlu0.c.b16.cont [5/8] 0, 128
      %4264 = vxpose.xlu0.c.b16.cont [6/8] 0, 128
      %4265 = vxpose.xlu0.c.b16.cont [7/8] 0, 128
      %4266 = vxpose.xlu0.c.b16.end [8/8] 0, 128
      %v4267 = vpop.trf.xlu0
      %v4268 = vpop.trf.xlu0
      %v4269 = vpop.trf.xlu0
      %v4270 = vpop.trf.xlu0
      %v4271 = vpop.trf.xlu0
      %v4272 = vpop.trf.xlu0
      %v4273 = vpop.trf.xlu0
      %v4274 = vpop.trf.xlu0
      %4275 = vxpose.xlu0.c.b16.start [1/8] %v4161, 128
      %4276 = vxpose.xlu0.c.b16.cont [2/8] 0, 128
      %4277 = vxpose.xlu0.c.b16.cont [3/8] 0, 128
      %4278 = vxpose.xlu0.c.b16.cont [4/8] 0, 128
      %4279 = vxpose.xlu0.c.b16.cont [5/8] 0, 128
      %4280 = vxpose.xlu0.c.b16.cont [6/8] 0, 128
      %4281 = vxpose.xlu0.c.b16.cont [7/8] 0, 128
      %4282 = vxpose.xlu0.c.b16.end [8/8] 0, 128
      %v4283 = vpop.trf.xlu0
      %v4284 = vpop.trf.xlu0
      %v4285 = vpop.trf.xlu0
      %v4286 = vpop.trf.xlu0
      %v4287 = vpop.trf.xlu0
      %v4288 = vpop.trf.xlu0
      %v4289 = vpop.trf.xlu0
      %v4290 = vpop.trf.xlu0
      %v4291 = vcombine.low %v4171, %v4235
      %v4293 = vunpack.c.l.s4 1983009808
      %v4294 = vunpack.c.0.s8 %v4293
      %v4295 = vlaneseq
      %v4296 = vshrl.u32 %v4295, 7
      %v4297 = vsub.s32 %v4294, %v4296
      %v4298 = vrot.slane %v4291, %v4297
      %v4299 = vcombine.low %v4203, %v4267
      %v4301 = vunpack.c.l.s4 1983009808
      %v4302 = vunpack.c.0.s8 %v4301
      %v4303 = vlaneseq
      %v4304 = vshrl.u32 %v4303, 7
      %v4305 = vsub.s32 %v4302, %v4304
      %v4306 = vrot.slane %v4299, %v4305
      %v4307 = vcombine.low %v4298, %v4306
      %v4309 = vunpack.c.l.s4 1934713408
      %v4310 = vunpack.c.0.s8 %v4309
      %v4311 = vlaneseq
      %v4312 = vshrl.u32 %v4311, 7
      %v4313 = vsub.s32 %v4310, %v4312
      %v4314 = vrot.slane %v4307, %v4313
      %v4315 = vcombine.high %v4314, 0
      %v4316 = vcombine.low %v4187, %v4251
      %v4318 = vunpack.c.l.s4 1983009808
      %v4319 = vunpack.c.0.s8 %v4318
      %v4320 = vlaneseq
      %v4321 = vshrl.u32 %v4320, 7
      %v4322 = vsub.s32 %v4319, %v4321
      %v4323 = vrot.slane %v4316, %v4322
      %v4324 = vcombine.low %v4219, %v4283
      %v4326 = vunpack.c.l.s4 1983009808
      %v4327 = vunpack.c.0.s8 %v4326
      %v4328 = vlaneseq
      %v4329 = vshrl.u32 %v4328, 7
      %v4330 = vsub.s32 %v4327, %v4329
      %v4331 = vrot.slane %v4324, %v4330
      %v4332 = vcombine.low %v4323, %v4331
      %v4334 = vunpack.c.l.s4 1934713408
      %v4335 = vunpack.c.0.s8 %v4334
      %v4336 = vlaneseq
      %v4337 = vshrl.u32 %v4336, 7
      %v4338 = vsub.s32 %v4335, %v4337
      %v4339 = vrot.slane %v4332, %v4338
      %v4340 = vcombine.high %v4339, 0
      %v4343 = vpack.i.b16 %v4339, %v4314
      %v4344 = vshrl.u32 %v4314, 16
      %v4345 = vshrl.u32 %v4339, 16
      %v4346 = vpack.i.b16 %v4345, %v4344
      %v4349 = vpack.i.b16 %v4340, %v4315
      %v4350 = vshrl.u32 %v4315, 16
      %v4351 = vshrl.u32 %v4340, 16
      %v4352 = vpack.i.b16 %v4351, %v4350
      %v4354 = vsel %vm1480, %v4343, 0
      %v4357 = vsel %vm1480, %v3923, 0
      %4359 = vmatprep.subr.bf16.mxu0 0
      %4360 = vmatpush1.bf16.xpose.msra.mxu0 0
      %4361 = vmatprep.subr.bf16.mxu0 0
      %4362 = vmatpush1.bf16.xpose.msra.mxu0 0
      %4363 = vmatprep.subr.bf16.mxu0 0
      %4364 = vmatpush1.bf16.xpose.msra.mxu0 0
      %4365 = vmatprep.subr.bf16.mxu0 0
      %4366 = vmatpush1.bf16.xpose.msra.mxu0 0
      %4367 = vmatprep.subr.bf16.mxu0 0
      %4368 = vmatpush1.bf16.xpose.msra.mxu0 0
      %4369 = vmatprep.subr.bf16.mxu0 0
      %4370 = vmatpush1.bf16.xpose.msra.mxu0 0
      %4371 = vmatprep.subr.bf16.mxu0 0
      %4372 = vmatpush1.bf16.xpose.msra.mxu0 0
      %4373 = vmatprep.subr.bf16.mxu0 0
      %4374 = vmatpush1.bf16.xpose.msra.mxu0 %v4357
      %4375 = vmatprep.subr.bf16.mxu0 0
      %4376 = vmatpush2.bf16.xpose.msra.mxu0 0
      %4377 = vmatprep.subr.bf16.mxu0 0
      %4378 = vmatpush2.bf16.xpose.msra.mxu0 0
      %4379 = vmatprep.subr.bf16.mxu0 0
      %4380 = vmatpush2.bf16.xpose.msra.mxu0 0
      %4381 = vmatprep.subr.bf16.mxu0 0
      %4382 = vmatpush2.bf16.xpose.msra.mxu0 0
      %4383 = vmatprep.subr.bf16.mxu0 0
      %4384 = vmatpush2.bf16.xpose.msra.mxu0 0
      %4385 = vmatprep.subr.bf16.mxu0 0
      %4386 = vmatpush2.bf16.xpose.msra.mxu0 0
      %4387 = vmatprep.subr.bf16.mxu0 0
      %4388 = vmatpush2.bf16.xpose.msra.mxu0 0
      %4389 = vmatprep.subr.bf16.mxu0 0
      %4390 = vmatpush2.bf16.xpose.msra.mxu0 0
      %4391 = vmatprep.mubr.bf16.mxu0 0
      %4392 = vmatmul.mubr.bf16.gmra.mxu0 %v4354
      %v4393 = vpop.f32.mrf.mxu0
      %v4394 = vadd.f32 0.0, %v4393
      %v4395 = vpop.f32.mrf.mxu0
      %v4396 = vpop.f32.mrf.mxu0
      %v4397 = vpop.f32.mrf.mxu0
      %4398 = vdwg.mxu0
      %v4400 = vsel %vm1480, %v4346, 0
      %v4403 = vsel %vm1480, %v3924, 0
      %4405 = vmatprep.subr.bf16.mxu0 0
      %4406 = vmatpush1.bf16.xpose.msra.mxu0 0
      %4407 = vmatprep.subr.bf16.mxu0 0
      %4408 = vmatpush1.bf16.xpose.msra.mxu0 0
      %4409 = vmatprep.subr.bf16.mxu0 0
      %4410 = vmatpush1.bf16.xpose.msra.mxu0 0
      %4411 = vmatprep.subr.bf16.mxu0 0
      %4412 = vmatpush1.bf16.xpose.msra.mxu0 0
      %4413 = vmatprep.subr.bf16.mxu0 0
      %4414 = vmatpush1.bf16.xpose.msra.mxu0 0
      %4415 = vmatprep.subr.bf16.mxu0 0
      %4416 = vmatpush1.bf16.xpose.msra.mxu0 0
      %4417 = vmatprep.subr.bf16.mxu0 0
      %4418 = vmatpush1.bf16.xpose.msra.mxu0 0
      %4419 = vmatprep.subr.bf16.mxu0 0
      %4420 = vmatpush1.bf16.xpose.msra.mxu0 %v4403
      %4421 = vmatprep.subr.bf16.mxu0 0
      %4422 = vmatpush2.bf16.xpose.msra.mxu0 0
      %4423 = vmatprep.subr.bf16.mxu0 0
      %4424 = vmatpush2.bf16.xpose.msra.mxu0 0
      %4425 = vmatprep.subr.bf16.mxu0 0
      %4426 = vmatpush2.bf16.xpose.msra.mxu0 0
      %4427 = vmatprep.subr.bf16.mxu0 0
      %4428 = vmatpush2.bf16.xpose.msra.mxu0 0
      %4429 = vmatprep.subr.bf16.mxu0 0
      %4430 = vmatpush2.bf16.xpose.msra.mxu0 0
      %4431 = vmatprep.subr.bf16.mxu0 0
      %4432 = vmatpush2.bf16.xpose.msra.mxu0 0
      %4433 = vmatprep.subr.bf16.mxu0 0
      %4434 = vmatpush2.bf16.xpose.msra.mxu0 0
      %4435 = vmatprep.subr.bf16.mxu0 0
      %4436 = vmatpush2.bf16.xpose.msra.mxu0 0
      %4437 = vmatprep.mubr.bf16.mxu0 0
      %4438 = vmatmul.mubr.bf16.gmra.mxu0 %v4400
      %v4439 = vpop.f32.mrf.mxu0
      %v4440 = vadd.f32 0.0, %v4439
      %v4441 = vpop.f32.mrf.mxu0
      %v4442 = vpop.f32.mrf.mxu0
      %v4443 = vpop.f32.mrf.mxu0
      %4444 = vdwg.mxu0
      %v4446 = vsel %vm1480, %v4349, 0
      %v4449 = vsel %vm1480, %v3925, 0
      %4451 = vmatprep.subr.bf16.mxu0 0
      %4452 = vmatpush1.bf16.xpose.msra.mxu0 0
      %4453 = vmatprep.subr.bf16.mxu0 0
      %4454 = vmatpush1.bf16.xpose.msra.mxu0 0
      %4455 = vmatprep.subr.bf16.mxu0 0
      %4456 = vmatpush1.bf16.xpose.msra.mxu0 0
      %4457 = vmatprep.subr.bf16.mxu0 0
      %4458 = vmatpush1.bf16.xpose.msra.mxu0 0
      %4459 = vmatprep.subr.bf16.mxu0 0
      %4460 = vmatpush1.bf16.xpose.msra.mxu0 0
      %4461 = vmatprep.subr.bf16.mxu0 0
      %4462 = vmatpush1.bf16.xpose.msra.mxu0 0
      %4463 = vmatprep.subr.bf16.mxu0 0
      %4464 = vmatpush1.bf16.xpose.msra.mxu0 0
      %4465 = vmatprep.subr.bf16.mxu0 0
      %4466 = vmatpush1.bf16.xpose.msra.mxu0 %v4449
      %4467 = vmatprep.subr.bf16.mxu0 0
      %4468 = vmatpush2.bf16.xpose.msra.mxu0 0
      %4469 = vmatprep.subr.bf16.mxu0 0
      %4470 = vmatpush2.bf16.xpose.msra.mxu0 0
      %4471 = vmatprep.subr.bf16.mxu0 0
      %4472 = vmatpush2.bf16.xpose.msra.mxu0 0
      %4473 = vmatprep.subr.bf16.mxu0 0
      %4474 = vmatpush2.bf16.xpose.msra.mxu0 0
      %4475 = vmatprep.subr.bf16.mxu0 0
      %4476 = vmatpush2.bf16.xpose.msra.mxu0 0
      %4477 = vmatprep.subr.bf16.mxu0 0
      %4478 = vmatpush2.bf16.xpose.msra.mxu0 0
      %4479 = vmatprep.subr.bf16.mxu0 0
      %4480 = vmatpush2.bf16.xpose.msra.mxu0 0
      %4481 = vmatprep.subr.bf16.mxu0 0
      %4482 = vmatpush2.bf16.xpose.msra.mxu0 0
      %4483 = vmatprep.mubr.bf16.mxu0 0
      %4484 = vmatmul.mubr.bf16.gmra.mxu0 %v4446
      %v4485 = vpop.f32.mrf.mxu0
      %v4486 = vadd.f32 0.0, %v4485
      %v4487 = vpop.f32.mrf.mxu0
      %v4488 = vpop.f32.mrf.mxu0
      %v4489 = vpop.f32.mrf.mxu0
      %4490 = vdwg.mxu0
      %v4492 = vsel %vm1480, %v4352, 0
      %v4495 = vsel %vm1480, %v3926, 0
      %4497 = vmatprep.subr.bf16.mxu0 0
      %4498 = vmatpush1.bf16.xpose.msra.mxu0 0
      %4499 = vmatprep.subr.bf16.mxu0 0
      %4500 = vmatpush1.bf16.xpose.msra.mxu0 0
      %4501 = vmatprep.subr.bf16.mxu0 0
      %4502 = vmatpush1.bf16.xpose.msra.mxu0 0
      %4503 = vmatprep.subr.bf16.mxu0 0
      %4504 = vmatpush1.bf16.xpose.msra.mxu0 0
      %4505 = vmatprep.subr.bf16.mxu0 0
      %4506 = vmatpush1.bf16.xpose.msra.mxu0 0
      %4507 = vmatprep.subr.bf16.mxu0 0
      %4508 = vmatpush1.bf16.xpose.msra.mxu0 0
      %4509 = vmatprep.subr.bf16.mxu0 0
      %4510 = vmatpush1.bf16.xpose.msra.mxu0 0
      %4511 = vmatprep.subr.bf16.mxu0 0
      %4512 = vmatpush1.bf16.xpose.msra.mxu0 %v4495
      %4513 = vmatprep.subr.bf16.mxu0 0
      %4514 = vmatpush2.bf16.xpose.msra.mxu0 0
      %4515 = vmatprep.subr.bf16.mxu0 0
      %4516 = vmatpush2.bf16.xpose.msra.mxu0 0
      %4517 = vmatprep.subr.bf16.mxu0 0
      %4518 = vmatpush2.bf16.xpose.msra.mxu0 0
      %4519 = vmatprep.subr.bf16.mxu0 0
      %4520 = vmatpush2.bf16.xpose.msra.mxu0 0
      %4521 = vmatprep.subr.bf16.mxu0 0
      %4522 = vmatpush2.bf16.xpose.msra.mxu0 0
      %4523 = vmatprep.subr.bf16.mxu0 0
      %4524 = vmatpush2.bf16.xpose.msra.mxu0 0
      %4525 = vmatprep.subr.bf16.mxu0 0
      %4526 = vmatpush2.bf16.xpose.msra.mxu0 0
      %4527 = vmatprep.subr.bf16.mxu0 0
      %4528 = vmatpush2.bf16.xpose.msra.mxu0 0
      %4529 = vmatprep.mubr.bf16.mxu0 0
      %4530 = vmatmul.mubr.bf16.gmra.mxu0 %v4492
      %v4531 = vpop.f32.mrf.mxu0
      %v4532 = vadd.f32 0.0, %v4531
      %v4533 = vpop.f32.mrf.mxu0
      %v4534 = vpop.f32.mrf.mxu0
      %v4535 = vpop.f32.mrf.mxu0
      %4536 = vdwg.mxu0
      %4537 = vxpose.xlu0.b32.start [1/16] %v4394, 128
      %4538 = vxpose.xlu0.b32.cont [2/16] 0.0, 128
      %4539 = vxpose.xlu0.b32.cont [3/16] 0.0, 128
      %4540 = vxpose.xlu0.b32.cont [4/16] 0.0, 128
      %4541 = vxpose.xlu0.b32.cont [5/16] 0.0, 128
      %4542 = vxpose.xlu0.b32.cont [6/16] 0.0, 128
      %4543 = vxpose.xlu0.b32.cont [7/16] 0.0, 128
      %4544 = vxpose.xlu0.b32.cont [8/16] 0.0, 128
      %4545 = vxpose.xlu0.b32.cont [9/16] 0.0, 128
      %4546 = vxpose.xlu0.b32.cont [10/16] 0.0, 128
      %4547 = vxpose.xlu0.b32.cont [11/16] 0.0, 128
      %4548 = vxpose.xlu0.b32.cont [12/16] 0.0, 128
      %4549 = vxpose.xlu0.b32.cont [13/16] 0.0, 128
      %4550 = vxpose.xlu0.b32.cont [14/16] 0.0, 128
      %4551 = vxpose.xlu0.b32.cont [15/16] 0.0, 128
      %4552 = vxpose.xlu0.b32.end [16/16] 0.0, 128
      %v4553 = vpop.trf.xlu0
      %v4554 = vpop.trf.xlu0
      %v4555 = vpop.trf.xlu0
      %v4556 = vpop.trf.xlu0
      %v4557 = vpop.trf.xlu0
      %v4558 = vpop.trf.xlu0
      %v4559 = vpop.trf.xlu0
      %v4560 = vpop.trf.xlu0
      %v4561 = vpop.trf.xlu0
      %v4562 = vpop.trf.xlu0
      %v4563 = vpop.trf.xlu0
      %v4564 = vpop.trf.xlu0
      %v4565 = vpop.trf.xlu0
      %v4566 = vpop.trf.xlu0
      %v4567 = vpop.trf.xlu0
      %v4568 = vpop.trf.xlu0
      %4569 = vxpose.xlu0.b32.start [1/16] %v4440, 128
      %4570 = vxpose.xlu0.b32.cont [2/16] 0.0, 128
      %4571 = vxpose.xlu0.b32.cont [3/16] 0.0, 128
      %4572 = vxpose.xlu0.b32.cont [4/16] 0.0, 128
      %4573 = vxpose.xlu0.b32.cont [5/16] 0.0, 128
      %4574 = vxpose.xlu0.b32.cont [6/16] 0.0, 128
      %4575 = vxpose.xlu0.b32.cont [7/16] 0.0, 128
      %4576 = vxpose.xlu0.b32.cont [8/16] 0.0, 128
      %4577 = vxpose.xlu0.b32.cont [9/16] 0.0, 128
      %4578 = vxpose.xlu0.b32.cont [10/16] 0.0, 128
      %4579 = vxpose.xlu0.b32.cont [11/16] 0.0, 128
      %4580 = vxpose.xlu0.b32.cont [12/16] 0.0, 128
      %4581 = vxpose.xlu0.b32.cont [13/16] 0.0, 128
      %4582 = vxpose.xlu0.b32.cont [14/16] 0.0, 128
      %4583 = vxpose.xlu0.b32.cont [15/16] 0.0, 128
      %4584 = vxpose.xlu0.b32.end [16/16] 0.0, 128
      %v4585 = vpop.trf.xlu0
      %v4586 = vpop.trf.xlu0
      %v4587 = vpop.trf.xlu0
      %v4588 = vpop.trf.xlu0
      %v4589 = vpop.trf.xlu0
      %v4590 = vpop.trf.xlu0
      %v4591 = vpop.trf.xlu0
      %v4592 = vpop.trf.xlu0
      %v4593 = vpop.trf.xlu0
      %v4594 = vpop.trf.xlu0
      %v4595 = vpop.trf.xlu0
      %v4596 = vpop.trf.xlu0
      %v4597 = vpop.trf.xlu0
      %v4598 = vpop.trf.xlu0
      %v4599 = vpop.trf.xlu0
      %v4600 = vpop.trf.xlu0
      %4601 = vxpose.xlu0.b32.start [1/16] %v4486, 128
      %4602 = vxpose.xlu0.b32.cont [2/16] 0.0, 128
      %4603 = vxpose.xlu0.b32.cont [3/16] 0.0, 128
      %4604 = vxpose.xlu0.b32.cont [4/16] 0.0, 128
      %4605 = vxpose.xlu0.b32.cont [5/16] 0.0, 128
      %4606 = vxpose.xlu0.b32.cont [6/16] 0.0, 128
      %4607 = vxpose.xlu0.b32.cont [7/16] 0.0, 128
      %4608 = vxpose.xlu0.b32.cont [8/16] 0.0, 128
      %4609 = vxpose.xlu0.b32.cont [9/16] 0.0, 128
      %4610 = vxpose.xlu0.b32.cont [10/16] 0.0, 128
      %4611 = vxpose.xlu0.b32.cont [11/16] 0.0, 128
      %4612 = vxpose.xlu0.b32.cont [12/16] 0.0, 128
      %4613 = vxpose.xlu0.b32.cont [13/16] 0.0, 128
      %4614 = vxpose.xlu0.b32.cont [14/16] 0.0, 128
      %4615 = vxpose.xlu0.b32.cont [15/16] 0.0, 128
      %4616 = vxpose.xlu0.b32.end [16/16] 0.0, 128
      %v4617 = vpop.trf.xlu0
      %v4618 = vpop.trf.xlu0
      %v4619 = vpop.trf.xlu0
      %v4620 = vpop.trf.xlu0
      %v4621 = vpop.trf.xlu0
      %v4622 = vpop.trf.xlu0
      %v4623 = vpop.trf.xlu0
      %v4624 = vpop.trf.xlu0
      %v4625 = vpop.trf.xlu0
      %v4626 = vpop.trf.xlu0
      %v4627 = vpop.trf.xlu0
      %v4628 = vpop.trf.xlu0
      %v4629 = vpop.trf.xlu0
      %v4630 = vpop.trf.xlu0
      %v4631 = vpop.trf.xlu0
      %v4632 = vpop.trf.xlu0
      %4633 = vxpose.xlu0.b32.start [1/16] %v4532, 128
      %4634 = vxpose.xlu0.b32.cont [2/16] 0.0, 128
      %4635 = vxpose.xlu0.b32.cont [3/16] 0.0, 128
      %4636 = vxpose.xlu0.b32.cont [4/16] 0.0, 128
      %4637 = vxpose.xlu0.b32.cont [5/16] 0.0, 128
      %4638 = vxpose.xlu0.b32.cont [6/16] 0.0, 128
      %4639 = vxpose.xlu0.b32.cont [7/16] 0.0, 128
      %4640 = vxpose.xlu0.b32.cont [8/16] 0.0, 128
      %4641 = vxpose.xlu0.b32.cont [9/16] 0.0, 128
      %4642 = vxpose.xlu0.b32.cont [10/16] 0.0, 128
      %4643 = vxpose.xlu0.b32.cont [11/16] 0.0, 128
      %4644 = vxpose.xlu0.b32.cont [12/16] 0.0, 128
      %4645 = vxpose.xlu0.b32.cont [13/16] 0.0, 128
      %4646 = vxpose.xlu0.b32.cont [14/16] 0.0, 128
      %4647 = vxpose.xlu0.b32.cont [15/16] 0.0, 128
      %4648 = vxpose.xlu0.b32.end [16/16] 0.0, 128
      %v4649 = vpop.trf.xlu0
      %v4650 = vpop.trf.xlu0
      %v4651 = vpop.trf.xlu0
      %v4652 = vpop.trf.xlu0
      %v4653 = vpop.trf.xlu0
      %v4654 = vpop.trf.xlu0
      %v4655 = vpop.trf.xlu0
      %v4656 = vpop.trf.xlu0
      %v4657 = vpop.trf.xlu0
      %v4658 = vpop.trf.xlu0
      %v4659 = vpop.trf.xlu0
      %v4660 = vpop.trf.xlu0
      %v4661 = vpop.trf.xlu0
      %v4662 = vpop.trf.xlu0
      %v4663 = vpop.trf.xlu0
      %v4664 = vpop.trf.xlu0
      %v4665 = vcombine.low %v4553, %v4617
      %v4666 = vcombine.high %v4553, %v4617
      %v4668 = vunpack.c.l.s4 1983009808
      %v4669 = vunpack.c.0.s8 %v4668
      %v4670 = vlaneseq
      %v4671 = vshrl.u32 %v4670, 7
      %v4672 = vsub.s32 %v4669, %v4671
      %v4673 = vrot.slane %v4665, %v4672
      %v4675 = vunpack.c.l.s4 1983009808
      %v4676 = vunpack.c.0.s8 %v4675
      %v4677 = vlaneseq
      %v4678 = vshrl.u32 %v4677, 7
      %v4679 = vsub.s32 %v4676, %v4678
      %v4680 = vrot.slane %v4666, %v4679
      %v4681 = vcombine.low %v4585, %v4649
      %v4682 = vcombine.high %v4585, %v4649
      %v4684 = vunpack.c.l.s4 1983009808
      %v4685 = vunpack.c.0.s8 %v4684
      %v4686 = vlaneseq
      %v4687 = vshrl.u32 %v4686, 7
      %v4688 = vsub.s32 %v4685, %v4687
      %v4689 = vrot.slane %v4681, %v4688
      %v4691 = vunpack.c.l.s4 1983009808
      %v4692 = vunpack.c.0.s8 %v4691
      %v4693 = vlaneseq
      %v4694 = vshrl.u32 %v4693, 7
      %v4695 = vsub.s32 %v4692, %v4694
      %v4696 = vrot.slane %v4682, %v4695
      %v4697 = vcombine.low %v4673, %v4689
      %v4698 = vcombine.high %v4673, %v4689
      %v4700 = vunpack.c.l.s4 1934713408
      %v4701 = vunpack.c.0.s8 %v4700
      %v4702 = vlaneseq
      %v4703 = vshrl.u32 %v4702, 7
      %v4704 = vsub.s32 %v4701, %v4703
      %v4705 = vrot.slane %v4697, %v4704
      %v4707 = vunpack.c.l.s4 1934713408
      %v4708 = vunpack.c.0.s8 %v4707
      %v4709 = vlaneseq
      %v4710 = vshrl.u32 %v4709, 7
      %v4711 = vsub.s32 %v4708, %v4710
      %v4712 = vrot.slane %v4698, %v4711
      %v4713 = vcombine.low %v4680, %v4696
      %v4714 = vcombine.high %v4680, %v4696
      %v4716 = vunpack.c.l.s4 1934713408
      %v4717 = vunpack.c.0.s8 %v4716
      %v4718 = vlaneseq
      %v4719 = vshrl.u32 %v4718, 7
      %v4720 = vsub.s32 %v4717, %v4719
      %v4721 = vrot.slane %v4713, %v4720
      %v4723 = vunpack.c.l.s4 1934713408
      %v4724 = vunpack.c.0.s8 %v4723
      %v4725 = vlaneseq
      %v4726 = vshrl.u32 %v4725, 7
      %v4727 = vsub.s32 %v4724, %v4726
      %v4728 = vrot.slane %v4714, %v4727
      %v4729 = vcombine.high %v4705, 0.0
      %v4730 = vcombine.high %v4712, 0.0
      %v4731 = vcombine.high %v4721, 0.0
      %v4732 = vcombine.high %v4728, 0.0
      %v4733 = vcombine.low %v4705, %v4712
      %v4735 = vunpack.c.l.s4 1983009808
      %v4736 = vunpack.c.0.s8 %v4735
      %v4737 = vlaneseq
      %v4738 = vshrl.u32 %v4737, 7
      %v4739 = vsub.s32 %v4736, %v4738
      %v4740 = vrot.slane %v4733, %v4739
      %v4741 = vcombine.low %v4729, %v4730
      %v4743 = vunpack.c.l.s4 1983009808
      %v4744 = vunpack.c.0.s8 %v4743
      %v4745 = vlaneseq
      %v4746 = vshrl.u32 %v4745, 7
      %v4747 = vsub.s32 %v4744, %v4746
      %v4748 = vrot.slane %v4741, %v4747
      %v4749 = vcombine.low %v4721, %v4728
      %v4751 = vunpack.c.l.s4 1983009808
      %v4752 = vunpack.c.0.s8 %v4751
      %v4753 = vlaneseq
      %v4754 = vshrl.u32 %v4753, 7
      %v4755 = vsub.s32 %v4752, %v4754
      %v4756 = vrot.slane %v4749, %v4755
      %v4757 = vcombine.low %v4731, %v4732
      %v4759 = vunpack.c.l.s4 1983009808
      %v4760 = vunpack.c.0.s8 %v4759
      %v4761 = vlaneseq
      %v4762 = vshrl.u32 %v4761, 7
      %v4763 = vsub.s32 %v4760, %v4762
      %v4764 = vrot.slane %v4757, %v4763
      %v4765 = vcombine.low %v4740, %v4748
      %v4766 = vcombine.high %v4740, %v4748
      %v4768 = vunpack.c.l.s4 1934713408
      %v4769 = vunpack.c.0.s8 %v4768
      %v4770 = vlaneseq
      %v4771 = vshrl.u32 %v4770, 7
      %v4772 = vsub.s32 %v4769, %v4771
      %v4773 = vrot.slane %v4765, %v4772
      %v4775 = vunpack.c.l.s4 1934713408
      %v4776 = vunpack.c.0.s8 %v4775
      %v4777 = vlaneseq
      %v4778 = vshrl.u32 %v4777, 7
      %v4779 = vsub.s32 %v4776, %v4778
      %v4780 = vrot.slane %v4766, %v4779
      %v4781 = vcombine.low %v4756, %v4764
      %v4782 = vcombine.high %v4756, %v4764
      %v4784 = vunpack.c.l.s4 1934713408
      %v4785 = vunpack.c.0.s8 %v4784
      %v4786 = vlaneseq
      %v4787 = vshrl.u32 %v4786, 7
      %v4788 = vsub.s32 %v4785, %v4787
      %v4789 = vrot.slane %v4781, %v4788
      %v4791 = vunpack.c.l.s4 1934713408
      %v4792 = vunpack.c.0.s8 %v4791
      %v4793 = vlaneseq
      %v4794 = vshrl.u32 %v4793, 7
      %v4795 = vsub.s32 %v4792, %v4794
      %v4796 = vrot.slane %v4782, %v4795
      %v4797 = vcombine.low %v4773, %v4789
      %v4798 = vcombine.high %v4773, %v4789
      %v4799 = vcombine.low %v4780, %v4796
      %v4800 = vcombine.high %v4780, %v4796
      %4802 = vrot.lane.b32.xlu0 %v4798, 8
      %v4803 = vpop.permute.xlu0 %4802
      %4806 = vrot.lane.b32.xlu0 %v4799, 16
      %v4807 = vpop.permute.xlu0 %4806
      %4810 = vrot.lane.b32.xlu0 %v4800, 24
      %v4811 = vpop.permute.xlu0 %4810
      %v4813 = vsel %vm1480, %v4797, %v4803
      %v4814 = vsel %vm2601, %v4813, %v4807
      %v4815 = vsel %vm2603, %v4814, %v4811
      %v4816 = vpack.c.bf16 %v4815, %v4815
      %s4817 = scalar_lea.vmem %s6, 16
      %v4818 = vld [vmem:[%s4817] sm:$0xf]
      %v4819 = vld [vmem:[%s4817 + $0x4] sm:$0xf]
      %v4820 = vld [vmem:[%s4817 + $0x8] sm:$0xf]
      %v4821 = vld [vmem:[%s4817 + $0xc] sm:$0xf]
      %s4822 = scalar_lea.vmem %s7, 1
      %v4823 = vld [vmem:[%s4822] sm:$0x1]
      %v4825 = vlaneseq
      %v4826 = vshrl.u32 %v4825, 7
      %v4827 = vsub.s32 0, %v4826
      %v4828 = vrot.slane %v4823, %v4827
      %v4834 = vunpack.c.l.b16 %v4818
      %v4835 = vunpack.c.l.b16 %v4819
      %v4836 = vunpack.c.l.b16 %v4820
      %v4837 = vunpack.c.l.b16 %v4821
      %v4838 = vpack.c.b16 %v4835, %v4834
      %v4839 = vpack.c.b16 %v4837, %v4836
      %v4843 = vsel %vm643, %v4816, 0
      %4845 = vmatprep.subr.bf16.mxu0 0
      %4846 = vmatpush1.bf16.msra.mxu0 0
      %4847 = vmatprep.subr.bf16.mxu0 0
      %4848 = vmatpush1.bf16.msra.mxu0 0
      %4849 = vmatprep.subr.bf16.mxu0 0
      %4850 = vmatpush1.bf16.msra.mxu0 0
      %4851 = vmatprep.subr.bf16.mxu0 0
      %4852 = vmatpush1.bf16.msra.mxu0 0
      %4853 = vmatprep.subr.bf16.mxu0 0
      %4854 = vmatpush1.bf16.msra.mxu0 0
      %4855 = vmatprep.subr.bf16.mxu0 0
      %4856 = vmatpush1.bf16.msra.mxu0 0
      %4857 = vmatprep.subr.bf16.mxu0 0
      %4858 = vmatpush1.bf16.msra.mxu0 %v4839
      %4859 = vmatprep.subr.bf16.mxu0 0
      %4860 = vmatpush1.bf16.msra.mxu0 %v4838
      %4861 = vmatprep.subr.bf16.mxu0 0
      %4862 = vmatpush2.bf16.msra.mxu0 0
      %4863 = vmatprep.subr.bf16.mxu0 0
      %4864 = vmatpush2.bf16.msra.mxu0 0
      %4865 = vmatprep.subr.bf16.mxu0 0
      %4866 = vmatpush2.bf16.msra.mxu0 0
      %4867 = vmatprep.subr.bf16.mxu0 0
      %4868 = vmatpush2.bf16.msra.mxu0 0
      %4869 = vmatprep.subr.bf16.mxu0 0
      %4870 = vmatpush2.bf16.msra.mxu0 0
      %4871 = vmatprep.subr.bf16.mxu0 0
      %4872 = vmatpush2.bf16.msra.mxu0 0
      %4873 = vmatprep.subr.bf16.mxu0 0
      %4874 = vmatpush2.bf16.msra.mxu0 0
      %4875 = vmatprep.subr.bf16.mxu0 0
      %4876 = vmatpush2.bf16.msra.mxu0 0
      %4877 = vmatprep.mubr.bf16.mxu0 0
      %4878 = vmatmul.mubr.bf16.gmra.mxu0 %v4843
      %v4879 = vpop.f32.mrf.mxu0
      %v4880 = vadd.f32 %v4828, %v4879
      %v4881 = vpop.f32.mrf.mxu0
      %v4882 = vpop.f32.mrf.mxu0
      %v4883 = vpop.f32.mrf.mxu0
      %4884 = vdwg.mxu0
      %v4885 = vadd.f32 %v4880, %v2891
      %s4886 = scalar_lea.vmem %s8, 1
      %v4887 = vld [vmem:[%s4886] sm:$0x1]
      %s4888 = scalar_lea.vmem %s9, 1
      %v4889 = vld [vmem:[%s4888] sm:$0x1]
      %v4890 = vsel %vm643, %v4885, 0.0
      %4891 = vadd.xlane.f32.xlu0 %v4890
      %v4892 = vpop.xlane.xlu0 %4891
      %v4893 = vmul.f32 %v4892, %v647
      %v4894 = vsub.f32 %v4885, %v4893
      %v4895 = vmul.f32 %v4894, %v4894
      %v4896 = vsel %vm643, %v4895, 0.0
      %4897 = vadd.xlane.f32.xlu0 %v4896
      %v4898 = vpop.xlane.xlu0 %4897
      %v4899 = vmul.f32 %v4898, %v647
      %v4900 = vadd.f32 %v4899, 1e-12
      %v4901 = vrsqrt.pop %v4900
      %v4902 = vmul.f32 %v4894, %v4901
      %v4904 = vlaneseq
      %v4905 = vshrl.u32 %v4904, 7
      %v4906 = vsub.s32 0, %v4905
      %v4907 = vrot.slane %v4887, %v4906
      %v4909 = vmul.f32 %v4902, %v4907
      %v4911 = vlaneseq
      %v4912 = vshrl.u32 %v4911, 7
      %v4913 = vsub.s32 0, %v4912
      %v4914 = vrot.slane %v4889, %v4913
      %v4916 = vadd.f32 %v4909, %v4914
      %v4917 = vpack.c.bf16 %v4916, %v4916
      %s4918 = scalar_lea.vmem %s10, 16
      %v4919 = vld [vmem:[%s4918] sm:$0xf]
      %v4920 = vld [vmem:[%s4918 + $0x4] sm:$0xf]
      %v4921 = vld [vmem:[%s4918 + $0x8] sm:$0xf]
      %v4922 = vld [vmem:[%s4918 + $0xc] sm:$0xf]
      %s4923 = scalar_lea.vmem %s11, 1
      %v4924 = vld [vmem:[%s4923] sm:$0x1]
      %v4926 = vlaneseq
      %v4927 = vshrl.u32 %v4926, 7
      %v4928 = vsub.s32 0, %v4927
      %v4929 = vrot.slane %v4924, %v4928
      %v4935 = vunpack.c.l.b16 %v4919
      %v4936 = vunpack.c.l.b16 %v4920
      %v4937 = vunpack.c.l.b16 %v4921
      %v4938 = vunpack.c.l.b16 %v4922
      %v4939 = vpack.c.b16 %v4936, %v4935
      %v4940 = vpack.c.b16 %v4938, %v4937
      %v4944 = vsel %vm643, %v4917, 0
      %4946 = vmatprep.subr.bf16.mxu0 0
      %4947 = vmatpush1.bf16.msra.mxu0 0
      %4948 = vmatprep.subr.bf16.mxu0 0
      %4949 = vmatpush1.bf16.msra.mxu0 0
      %4950 = vmatprep.subr.bf16.mxu0 0
      %4951 = vmatpush1.bf16.msra.mxu0 0
      %4952 = vmatprep.subr.bf16.mxu0 0
      %4953 = vmatpush1.bf16.msra.mxu0 0
      %4954 = vmatprep.subr.bf16.mxu0 0
      %4955 = vmatpush1.bf16.msra.mxu0 0
      %4956 = vmatprep.subr.bf16.mxu0 0
      %4957 = vmatpush1.bf16.msra.mxu0 0
      %4958 = vmatprep.subr.bf16.mxu0 0
      %4959 = vmatpush1.bf16.msra.mxu0 %v4940
      %4960 = vmatprep.subr.bf16.mxu0 0
      %4961 = vmatpush1.bf16.msra.mxu0 %v4939
      %4962 = vmatprep.subr.bf16.mxu0 0
      %4963 = vmatpush2.bf16.msra.mxu0 0
      %4964 = vmatprep.subr.bf16.mxu0 0
      %4965 = vmatpush2.bf16.msra.mxu0 0
      %4966 = vmatprep.subr.bf16.mxu0 0
      %4967 = vmatpush2.bf16.msra.mxu0 0
      %4968 = vmatprep.subr.bf16.mxu0 0
      %4969 = vmatpush2.bf16.msra.mxu0 0
      %4970 = vmatprep.subr.bf16.mxu0 0
      %4971 = vmatpush2.bf16.msra.mxu0 0
      %4972 = vmatprep.subr.bf16.mxu0 0
      %4973 = vmatpush2.bf16.msra.mxu0 0
      %4974 = vmatprep.subr.bf16.mxu0 0
      %4975 = vmatpush2.bf16.msra.mxu0 0
      %4976 = vmatprep.subr.bf16.mxu0 0
      %4977 = vmatpush2.bf16.msra.mxu0 0
      %4978 = vmatprep.mubr.bf16.mxu0 0
      %4979 = vmatmul.mubr.bf16.gmra.mxu0 %v4944
      %v4980 = vpop.f32.mrf.mxu0
      %v4981 = vadd.f32 %v4929, %v4980
      %v4982 = vpop.f32.mrf.mxu0
      %v4983 = vpop.f32.mrf.mxu0
      %v4984 = vpop.f32.mrf.mxu0
      %4985 = vdwg.mxu0
      %v4986 = vmul.f32 %v4981, %v4981
      %v4987 = vmul.f32 %v4981, %v4986
      %v4988 = vmul.f32 %v4987, 0.044715
      %v4989 = vadd.f32 %v4981, %v4988
      %v4990 = vmul.f32 %v4989, 0.7978846
      %v4991 = vtanh.pop %v4990
      %v4992 = vadd.f32 %v4991, 1.0
      %v4993 = vmul.f32 %v4992, 0.5
      %v4994 = vmul.f32 %v4981, %v4993
      %v4995 = vpack.c.bf16 %v4994, %v4994
      %s4996 = scalar_lea.vmem %s12, 32
      %v4997 = vld [vmem:[%s4996] sm:$0xf]
      %v4998 = vld [vmem:[%s4996 + $0x4] sm:$0xf]
      %v4999 = vld [vmem:[%s4996 + $0x8] sm:$0xf]
      %v5000 = vld [vmem:[%s4996 + $0xc] sm:$0xf]
      %v5001 = vld [vmem:[%s4996 + $0x10] sm:$0xf]
      %v5002 = vld [vmem:[%s4996 + $0x14] sm:$0xf]
      %v5003 = vld [vmem:[%s4996 + $0x18] sm:$0xf]
      %v5004 = vld [vmem:[%s4996 + $0x1c] sm:$0xf]
      %s5005 = scalar_lea.vmem %s13, 1
      %v5006 = vld [vmem:[%s5005] sm:$0x1]
      %v5008 = vlaneseq
      %v5009 = vshrl.u32 %v5008, 7
      %v5010 = vsub.s32 0, %v5009
      %v5011 = vrot.slane %v5006, %v5010
      %v5021 = vunpack.c.l.b16 %v4997
      %v5022 = vunpack.c.l.b16 %v4998
      %v5023 = vunpack.c.l.b16 %v4999
      %v5024 = vunpack.c.l.b16 %v5000
      %v5025 = vunpack.c.l.b16 %v5001
      %v5026 = vunpack.c.l.b16 %v5002
      %v5027 = vunpack.c.l.b16 %v5003
      %v5028 = vunpack.c.l.b16 %v5004
      %v5029 = vpack.c.b16 %v5022, %v5021
      %v5030 = vpack.c.b16 %v5024, %v5023
      %v5031 = vpack.c.b16 %v5026, %v5025
      %v5032 = vpack.c.b16 %v5028, %v5027
      %v5038 = vsel %vm2818, %v4995, 0
      %5040 = vmatprep.subr.bf16.mxu0 0
      %5041 = vmatpush1.bf16.msra.mxu0 0
      %5042 = vmatprep.subr.bf16.mxu0 0
      %5043 = vmatpush1.bf16.msra.mxu0 0
      %5044 = vmatprep.subr.bf16.mxu0 0
      %5045 = vmatpush1.bf16.msra.mxu0 0
      %5046 = vmatprep.subr.bf16.mxu0 0
      %5047 = vmatpush1.bf16.msra.mxu0 0
      %5048 = vmatprep.subr.bf16.mxu0 0
      %5049 = vmatpush1.bf16.msra.mxu0 %v5032
      %5050 = vmatprep.subr.bf16.mxu0 0
      %5051 = vmatpush1.bf16.msra.mxu0 %v5031
      %5052 = vmatprep.subr.bf16.mxu0 0
      %5053 = vmatpush1.bf16.msra.mxu0 %v5030
      %5054 = vmatprep.subr.bf16.mxu0 0
      %5055 = vmatpush1.bf16.msra.mxu0 %v5029
      %5056 = vmatprep.subr.bf16.mxu0 0
      %5057 = vmatpush2.bf16.msra.mxu0 0
      %5058 = vmatprep.subr.bf16.mxu0 0
      %5059 = vmatpush2.bf16.msra.mxu0 0
      %5060 = vmatprep.subr.bf16.mxu0 0
      %5061 = vmatpush2.bf16.msra.mxu0 0
      %5062 = vmatprep.subr.bf16.mxu0 0
      %5063 = vmatpush2.bf16.msra.mxu0 0
      %5064 = vmatprep.subr.bf16.mxu0 0
      %5065 = vmatpush2.bf16.msra.mxu0 0
      %5066 = vmatprep.subr.bf16.mxu0 0
      %5067 = vmatpush2.bf16.msra.mxu0 0
      %5068 = vmatprep.subr.bf16.mxu0 0
      %5069 = vmatpush2.bf16.msra.mxu0 0
      %5070 = vmatprep.subr.bf16.mxu0 0
      %5071 = vmatpush2.bf16.msra.mxu0 0
      %5072 = vmatprep.mubr.bf16.mxu0 0
      %5073 = vmatmul.mubr.bf16.gmra.mxu0 %v5038
      %v5074 = vpop.f32.mrf.mxu0
      %v5075 = vadd.f32 %v5011, %v5074
      %v5076 = vpop.f32.mrf.mxu0
      %v5077 = vpop.f32.mrf.mxu0
      %v5078 = vpop.f32.mrf.mxu0
      %5079 = vdwg.mxu0
      %v5080 = vadd.f32 %v5075, %v4916
      %s5081 = scalar_lea.vmem %s14, 1
      %v5082 = vld [vmem:[%s5081] sm:$0x1]
      %s5083 = scalar_lea.vmem %s15, 1
      %v5084 = vld [vmem:[%s5083] sm:$0x1]
      %v5085 = vsel %vm643, %v5080, 0.0
      %5086 = vadd.xlane.f32.xlu0 %v5085
      %v5087 = vpop.xlane.xlu0 %5086
      %v5088 = vmul.f32 %v5087, %v647
      %v5089 = vsub.f32 %v5080, %v5088
      %v5090 = vmul.f32 %v5089, %v5089
      %v5091 = vsel %vm643, %v5090, 0.0
      %5092 = vadd.xlane.f32.xlu0 %v5091
      %v5093 = vpop.xlane.xlu0 %5092
      %v5094 = vmul.f32 %v5093, %v647
      %v5095 = vadd.f32 %v5094, 1e-12
      %v5096 = vrsqrt.pop %v5095
      %v5097 = vmul.f32 %v5089, %v5096
      %v5099 = vlaneseq
      %v5100 = vshrl.u32 %v5099, 7
      %v5101 = vsub.s32 0, %v5100
      %v5102 = vrot.slane %v5082, %v5101
      %v5104 = vmul.f32 %v5097, %v5102
      %v5106 = vlaneseq
      %v5107 = vshrl.u32 %v5106, 7
      %v5108 = vsub.s32 0, %v5107
      %v5109 = vrot.slane %v5084, %v5108
      %v5111 = vadd.f32 %v5104, %v5109
      %v5112 = vpack.c.bf16 %v5111, %v5111
      %v5113 = vld [vmem:[%s16] sm:$0xf]
      %v5114 = vld [vmem:[%s16 + $0x4] sm:$0xf]
      %v5115 = vld [vmem:[%s16 + $0x8] sm:$0xf]
      %v5116 = vld [vmem:[%s16 + $0xc] sm:$0xf]
      %v5117 = vld [vmem:[%s17] sm:$0x1]
      %v5122 = vunpack.c.l.b16 %v5113
      %v5123 = vunpack.c.l.b16 %v5114
      %v5124 = vunpack.c.l.b16 %v5115
      %v5125 = vunpack.c.l.b16 %v5116
      %v5126 = vpack.c.b16 %v5123, %v5122
      %v5127 = vpack.c.b16 %v5125, %v5124
      %v5131 = vsel %vm643, %v5112, 0
      %5133 = vmatprep.subr.bf16.mxu0 0
      %5134 = vmatpush1.bf16.msra.mxu0 0
      %5135 = vmatprep.subr.bf16.mxu0 0
      %5136 = vmatpush1.bf16.msra.mxu0 0
      %5137 = vmatprep.subr.bf16.mxu0 0
      %5138 = vmatpush1.bf16.msra.mxu0 0
      %5139 = vmatprep.subr.bf16.mxu0 0
      %5140 = vmatpush1.bf16.msra.mxu0 0
      %5141 = vmatprep.subr.bf16.mxu0 0
      %5142 = vmatpush1.bf16.msra.mxu0 0
      %5143 = vmatprep.subr.bf16.mxu0 0
      %5144 = vmatpush1.bf16.msra.mxu0 0
      %5145 = vmatprep.subr.bf16.mxu0 0
      %5146 = vmatpush1.bf16.msra.mxu0 %v5127
      %5147 = vmatprep.subr.bf16.mxu0 0
      %5148 = vmatpush1.bf16.msra.mxu0 %v5126
      %5149 = vmatprep.subr.bf16.mxu0 0
      %5150 = vmatpush2.bf16.msra.mxu0 0
      %5151 = vmatprep.subr.bf16.mxu0 0
      %5152 = vmatpush2.bf16.msra.mxu0 0
      %5153 = vmatprep.subr.bf16.mxu0 0
      %5154 = vmatpush2.bf16.msra.mxu0 0
      %5155 = vmatprep.subr.bf16.mxu0 0
      %5156 = vmatpush2.bf16.msra.mxu0 0
      %5157 = vmatprep.subr.bf16.mxu0 0
      %5158 = vmatpush2.bf16.msra.mxu0 0
      %5159 = vmatprep.subr.bf16.mxu0 0
      %5160 = vmatpush2.bf16.msra.mxu0 0
      %5161 = vmatprep.subr.bf16.mxu0 0
      %5162 = vmatpush2.bf16.msra.mxu0 0
      %5163 = vmatprep.subr.bf16.mxu0 0
      %5164 = vmatpush2.bf16.msra.mxu0 0
      %5165 = vmatprep.mubr.bf16.mxu0 0
      %5166 = vmatmul.mubr.bf16.gmra.mxu0 %v5131
      %v5167 = vpop.f32.mrf.mxu0
      %v5168 = vadd.f32 %v5117, %v5167
      %v5169 = vpop.f32.mrf.mxu0
      %v5170 = vpop.f32.mrf.mxu0
      %v5171 = vpop.f32.mrf.mxu0
      %5172 = vdwg.mxu0
      %v5173 = vtanh.pop %v5168
      %v5174 = vpack.c.bf16 %v5173, %v5173
      %v5175 = vld [vmem:[%s18] sm:$0xf]
      %v5176 = vld [vmem:[%s18 + $0x4] sm:$0xf]
      %v5177 = vld [vmem:[%s18 + $0x8] sm:$0xf]
      %v5178 = vld [vmem:[%s18 + $0xc] sm:$0xf]
      %v5179 = vld [vmem:[%s19] sm:$0x1]
      %v5184 = vunpack.c.l.b16 %v5175
      %v5185 = vunpack.c.l.b16 %v5176
      %v5186 = vunpack.c.l.b16 %v5177
      %v5187 = vunpack.c.l.b16 %v5178
      %v5188 = vpack.c.b16 %v5185, %v5184
      %v5189 = vpack.c.b16 %v5187, %v5186
      %v5193 = vsel %vm643, %v5174, 0
      %5195 = vmatprep.subr.bf16.mxu0 0
      %5196 = vmatpush1.bf16.msra.mxu0 0
      %5197 = vmatprep.subr.bf16.mxu0 0
      %5198 = vmatpush1.bf16.msra.mxu0 0
      %5199 = vmatprep.subr.bf16.mxu0 0
      %5200 = vmatpush1.bf16.msra.mxu0 0
      %5201 = vmatprep.subr.bf16.mxu0 0
      %5202 = vmatpush1.bf16.msra.mxu0 0
      %5203 = vmatprep.subr.bf16.mxu0 0
      %5204 = vmatpush1.bf16.msra.mxu0 0
      %5205 = vmatprep.subr.bf16.mxu0 0
      %5206 = vmatpush1.bf16.msra.mxu0 0
      %5207 = vmatprep.subr.bf16.mxu0 0
      %5208 = vmatpush1.bf16.msra.mxu0 %v5189
      %5209 = vmatprep.subr.bf16.mxu0 0
      %5210 = vmatpush1.bf16.msra.mxu0 %v5188
      %5211 = vmatprep.subr.bf16.mxu0 0
      %5212 = vmatpush2.bf16.msra.mxu0 0
      %5213 = vmatprep.subr.bf16.mxu0 0
      %5214 = vmatpush2.bf16.msra.mxu0 0
      %5215 = vmatprep.subr.bf16.mxu0 0
      %5216 = vmatpush2.bf16.msra.mxu0 0
      %5217 = vmatprep.subr.bf16.mxu0 0
      %5218 = vmatpush2.bf16.msra.mxu0 0
      %5219 = vmatprep.subr.bf16.mxu0 0
      %5220 = vmatpush2.bf16.msra.mxu0 0
      %5221 = vmatprep.subr.bf16.mxu0 0
      %5222 = vmatpush2.bf16.msra.mxu0 0
      %5223 = vmatprep.subr.bf16.mxu0 0
      %5224 = vmatpush2.bf16.msra.mxu0 0
      %5225 = vmatprep.subr.bf16.mxu0 0
      %5226 = vmatpush2.bf16.msra.mxu0 0
      %5227 = vmatprep.mubr.bf16.mxu0 0
      %5228 = vmatmul.mubr.bf16.gmra.mxu0 %v5193
      %v5229 = vpop.f32.mrf.mxu0
      %v5230 = vadd.f32 %v5179, %v5229
      %v5231 = vpop.f32.mrf.mxu0
      %v5232 = vpop.f32.mrf.mxu0
      %v5233 = vpop.f32.mrf.mxu0
      %5234 = vdwg.mxu0
      %v5235 = vlaneseq
      %v5236 = vshrl.u32 %v5235, 7
      %v5237 = vsub.s32 0, %v5236
      %v5238 = vrot.slane %v5230, %v5237
      %5239 = vst [vmem:[%s638] sm:$0xff] %v5238
      %p5240 = scmp.lt.s32.totalorder %s31, 1
      %s5241 = scalar_select %p5240, %s31, 1
      %s5242 = smul.addr %s5241, 8
      %s5243 = scalar_lea.vmem %s20, %s5242
      // Predicated region
      $region101: #{bert_classifier.1} parent=99 // pred_check
        %p5244 = pneg %p479
      $region102: #{bert_classifier.1} parent=99 // pred_check_branch
        %5246 = sbr.rel (%p5244) target = $region104
      $region103: #{bert_classifier.1} parent=99 // pred_region
        _
      $region104: #{bert_classifier.1} parent=99 // pred_fallthru
        _
    $region100: #{bert_classifier.1} parent=5 // pred_fallthru
      _
    %p5247 = scmp.le.s32.totalorder 2, %s26
    // Predicated region
    $region105: #{bert_classifier.1} parent=5 // pred_check
      %p5248 = pneg %p5247
    $region106: #{bert_classifier.1} parent=5 // pred_check_branch
      %5250 = sbr.rel (%p5248) target = $region108
    $region107: #{bert_classifier.1} parent=5 // pred_region
      %s5251 = ssub.s32 %s26, 2
      // Predicated region
      $region109: #{bert_classifier.1} parent=107 // pred_check
        %p5252 = pneg %p485
      $region110: #{bert_classifier.1} parent=107 // pred_check_branch
        %5254 = sbr.rel (%p5252) target = $region112
      $region111: #{bert_classifier.1} parent=107 // pred_region
        %p5255 = scmp.lt.s32.totalorder %s32, 1
        %s5256 = scalar_select %p5255, %s32, 1
        %s5257 = smul.addr %s5256, 8
        %s5258 = scalar_lea.vmem %s20, %s5257
      $region112: #{bert_classifier.1} parent=107 // pred_fallthru
        _
    $region108: #{bert_classifier.1} parent=5 // pred_fallthru
      _
  $region6: #{bert_classifier.1} parent=0 // loop_footer
    %s30 = sadd.s32 1, %s26
  $region7: #{bert_classifier.1} parent=0 // loop_footer_branch
    %25 = sbr.rel target = $region3
  $region8: #{bert_classifier.1} parent=0 // loop_exit
    _

</llo_original>
